<compile_context>
chip_gen: v6e
topology: v6e:2x2x1
jax: 0.10.0
libtpu: 0.0.40
codegen_flags: <defaults>
</compile_context>

<pallas_src>
import functools

import jax
import jax.numpy as jnp
from jax import lax
from jax.experimental import pallas as pl
from jax.experimental.pallas import tpu as pltpu


# ----------------------------------------------------------------------------
# Fused Pallas kernel
# ----------------------------------------------------------------------------

def _seq2seq_kernel(batch,
                    enc_x_ref, dec_x_ref,
                    enc_wx_ref, enc_wh_ref, enc_b_ref,
                    dec_wx_ref, dec_wh_ref, dec_b_ref,
                    fc_w_ref, fc_b_ref,
                    out_ref,
                    seq_scr, xg_scr):
    """Whole seq2seq forward, single invocation, everything VMEM resident.

    enc_x_ref : (S*B, H)    bf16  embedded src (features zero-padded E -> H)
    dec_x_ref : (T*B, H)    bf16  embedded trg
    enc_wx_ref: (L, H, 4H)  bf16  input->gates weights (x-part, zero-padded)
    enc_wh_ref: (L, H, 4H)  bf16  hidden->gates weights
    enc_b_ref : (L, 1, 4H)  f32   combined biases (b_ih + b_hh)
    dec_*     : decoder counterparts, same shapes
    fc_w_ref  : (H, Vp)     bf16  (Vp = trg vocab padded to a multiple of 128)
    fc_b_ref  : (1, Vp)     f32
    out_ref   : (T*B, Vp)   f32   lane-dense logits slab
    seq_scr   : (max(S,T)*B, H)  f32  inter-layer sequence buffer
    xg_scr    : (max(S,T)*B, 4H) f32  precomputed input-to-gate contributions

    PyTorch gate order: i, f, g, o.
    """
    f32 = jnp.float32
    bf16 = jnp.bfloat16
    B = batch
    H = enc_x_ref.shape[1]
    G = 4 * H
    S = enc_x_ref.shape[0] // B
    T = dec_x_ref.shape[0] // B
    L = enc_wx_ref.shape[0]

    # Lane mask selecting the tanh gate (g). Hoisted once: JAX does not CSE
    # iota/broadcast, so building it inside the unrolled steps would re-emit it
    # every step.
    lane = lax.broadcasted_iota(jnp.int32, (B, G), 1)
    tanh_lane = jnp.logical_and(lane >= 2 * H, lane < 3 * H)

    def lstm_layer(x_seq, wx, wh, b, h0, c0, n_steps, write_seq_out):
        """One LSTM layer over n_steps timesteps.

        x_seq: (n_steps*B, H) bf16 whole-sequence input (already flattened).
        wx, wh: (H, 4H) bf16; b: (1, 4H) f32.
        Returns final (h, c), each (B, H) f32.
        """
        n_rows = n_steps * B

        # (1) Input-to-gate contributions for the whole sequence in one
        #     well-shaped matmul; bias folded in here, off the serial chain.
        xg_scr[pl.ds(0, n_rows), :] = (
            jnp.dot(x_seq, wx, preferred_element_type=f32) + b)

        # (2) Serial recurrence: per step only the small h @ W_hh matmul.
        def step(t, carry):
            h, c = carry
            row = pl.multiple_of(t * B, B)
            gates = (xg_scr[pl.ds(row, B), :] +
                     jnp.dot(h.astype(bf16), wh, preferred_element_type=f32))
            # One sigmoid + one tanh over the full (B, 4H) tile, lane-selected.
            act = jnp.where(tanh_lane, jnp.tanh(gates), jax.nn.sigmoid(gates))
            i_g = act[:, 0 * H:1 * H]
            f_g = act[:, 1 * H:2 * H]
            g_g = act[:, 2 * H:3 * H]
            o_g = act[:, 3 * H:4 * H]
            c_new = f_g * c + i_g * g_g
            h_new = o_g * jnp.tanh(c_new)
            if write_seq_out:
                seq_scr[pl.ds(row, B), :] = h_new
            return (h_new, c_new)

        return lax.fori_loop(0, n_steps, step, (h0, c0), unroll=True)

    zeros = jnp.zeros((B, H), f32)

    # ---- Encoder: L stacked layers, zero init; keep per-layer (h_T, c_T). ----
    enc_hc = []
    for layer in range(L):
        if layer == 0:
            x_seq = enc_x_ref[...]                              # (S*B, H) bf16
        else:
            x_seq = seq_scr[pl.ds(0, S * B), :].astype(bf16)
        h, c = lstm_layer(x_seq, enc_wx_ref[layer], enc_wh_ref[layer],
                          enc_b_ref[layer], zeros, zeros, S,
                          write_seq_out=(layer != L - 1))       # last seq unused
        enc_hc.append((h, c))

    # ---- Decoder: L stacked layers initialized from the encoder state. ----
    # Every layer first consumes the previous layer's whole sequence (the Xg
    # precompute), so writing its own outputs back into seq_scr is safe; the
    # last layer's outputs therefore end up in seq_scr[:T*B] for the fc.
    for layer in range(L):
        if layer == 0:
            x_seq = dec_x_ref[...]                              # (T*B, H) bf16
        else:
            x_seq = seq_scr[pl.ds(0, T * B), :].astype(bf16)
        h0, c0 = enc_hc[layer]
        lstm_layer(x_seq, dec_wx_ref[layer], dec_wh_ref[layer],
                   dec_b_ref[layer], h0, c0, T, write_seq_out=True)

    # ---- Final projection: one (T*B, H) @ (H, Vp) matmul, lane-dense out. ----
    y = seq_scr[pl.ds(0, T * B), :].astype(bf16)
    out_ref[...] = (jnp.dot(y, fc_w_ref[...], preferred_element_type=f32)
                    + fc_b_ref[...])


@functools.partial(jax.jit, static_argnames=("batch",))
def _seq2seq_pallas(enc_x, dec_x, enc_wx, enc_wh, enc_b,
                    dec_wx, dec_wh, dec_b, fc_w, fc_b, *, batch):
    SB, H = enc_x.shape
    TB = dec_x.shape[0]
    Vp = fc_w.shape[-1]
    n_rows = max(SB, TB)

    vmem = pl.BlockSpec(memory_space=pltpu.MemorySpace.VMEM)
    kernel = functools.partial(_seq2seq_kernel, batch)

    return pl.pallas_call(
        kernel,
        out_shape=jax.ShapeDtypeStruct((TB, Vp), jnp.float32),
        in_specs=[vmem] * 10,
        out_specs=vmem,
        scratch_shapes=[pltpu.VMEM((n_rows, H), jnp.float32),       # seq buffer
                        pltpu.VMEM((n_rows, 4 * H), jnp.float32)],  # Xg buffer
    )(enc_x, dec_x, enc_wx, enc_wh, enc_b, dec_wx, dec_wh, dec_b, fc_w, fc_b)


# ----------------------------------------------------------------------------
# Parameter construction (deterministic, synthetic) in kernel-friendly layout
# ----------------------------------------------------------------------------

def make_seq2seq_params(key, src_vocab, trg_vocab, emb_dim, hid_dim, n_layers):
    assert emb_dim <= hid_dim, "kernel packs embeddings into H-wide features"
    H = hid_dim
    scale = 0.1

    def lstm_stack(key):
        wxs, whs, bs = [], [], []
        for layer in range(n_layers):
            layer_in = emb_dim if layer == 0 else H
            key, k1, k2, k3, k4 = jax.random.split(key, 5)
            w_ih = scale * jax.random.normal(k1, (4 * H, layer_in), jnp.float32)
            w_hh = scale * jax.random.normal(k2, (4 * H, H), jnp.float32)
            b_ih = scale * jax.random.normal(k3, (4 * H,), jnp.float32)
            b_hh = scale * jax.random.normal(k4, (4 * H,), jnp.float32)
            # x-part zero-padded to width H so all layers share one (H, 4H)
            # shape (the matching padded x features are zero as well).
            w_x = jnp.zeros((H, 4 * H), jnp.float32).at[:layer_in, :].set(w_ih.T)
            wxs.append(w_x)
            whs.append(w_hh.T)
            bs.append((b_ih + b_hh).reshape(1, 4 * H))
        return (jnp.stack(wxs).astype(jnp.bfloat16),
                jnp.stack(whs).astype(jnp.bfloat16),
                jnp.stack(bs).astype(jnp.float32), key)

    key, ke, kd = jax.random.split(key, 3)
    enc_emb = scale * jax.random.normal(ke, (src_vocab, emb_dim), jnp.float32)
    dec_emb = scale * jax.random.normal(kd, (trg_vocab, emb_dim), jnp.float32)
    enc_wx, enc_wh, enc_b, key = lstm_stack(key)
    dec_wx, dec_wh, dec_b, key = lstm_stack(key)

    key, kf1, kf2 = jax.random.split(key, 3)
    fc_w = scale * jax.random.normal(kf1, (trg_vocab, H), jnp.float32)
    fc_b = scale * jax.random.normal(kf2, (trg_vocab,), jnp.float32)
    v_pad = ((trg_vocab + 127) // 128) * 128      # lane-dense fc output width
    fc_w_p = (jnp.zeros((H, v_pad), jnp.float32)
              .at[:, :trg_vocab].set(fc_w.T).astype(jnp.bfloat16))
    fc_b_p = jnp.zeros((1, v_pad), jnp.float32).at[0, :trg_vocab].set(fc_b)

    return dict(enc_emb=enc_emb, dec_emb=dec_emb,
                enc_wx=enc_wx, enc_wh=enc_wh, enc_b=enc_b,
                dec_wx=dec_wx, dec_wh=dec_wh, dec_b=dec_b,
                fc_w=fc_w_p, fc_b=fc_b_p,
                emb_dim=emb_dim, hid_dim=hid_dim, n_layers=n_layers,
                trg_vocab=trg_vocab)


# ----------------------------------------------------------------------------
# Seq2Seq forward (mirrors the PyTorch module's forward)
# ----------------------------------------------------------------------------

def seq2seq_forward(params, src, trg, teacher_forcing_ratio=0.5):
    """src: (src_len, B) int32, trg: (trg_len, B) int32.
    Returns decoder logits: (trg_len, B, trg_vocab_size) float32.

    Matches the reference forward: encoder(src) -> (hidden, cell);
    decoder(trg, hidden, cell) -> output. teacher_forcing_ratio is unused by
    the reference forward as written (decoder consumes the full trg sequence).
    """
    del teacher_forcing_ratio
    H = params["hid_dim"]
    E = params["emb_dim"]
    V = params["trg_vocab"]
    Vp = params["fc_w"].shape[-1]
    S, B0 = src.shape
    T = trg.shape[0]
    # Pad batch to a full sublane group (>= 8 rows) so every vreg row is used.
    Bp = max(8, -(-B0 // 8) * 8)

    def embed(emb_table, tokens):
        # Embedding gather stays in plain JAX (glue); features padded E -> H,
        # batch padded B0 -> Bp, flattened sequence-major, cast to bf16.
        x = jnp.take(emb_table, tokens, axis=0)                  # (len, B0, E)
        x = jnp.pad(x, ((0, 0), (0, Bp - B0), (0, H - E)))       # (len, Bp, H)
        return x.reshape(-1, H).astype(jnp.bfloat16)             # (len*Bp, H)

    enc_x = embed(params["enc_emb"], src)
    dec_x = embed(params["dec_emb"], trg)

    out_flat = _seq2seq_pallas(enc_x, dec_x,
                               params["enc_wx"], params["enc_wh"],
                               params["enc_b"],
                               params["dec_wx"], params["dec_wh"],
                               params["dec_b"],
                               params["fc_w"], params["fc_b"],
                               batch=Bp)                          # (T*Bp, Vp)
    return out_flat.reshape(T, Bp, Vp)[:, :B0, :V]


# ----------------------------------------------------------------------------
# Main
# ----------------------------------------------------------------------------

if __name__ == "__main__":
    SRC_VOCAB = 24
    TRG_VOCAB = 24
    EMB_DIM = 16
    HID_DIM = 32          # 4*HID_DIM = 128 -> lane-friendly gate layout
    N_LAYERS = 2
    SRC_LEN = 10
    TRG_LEN = 8
    BATCH = 2

    key = jax.random.PRNGKey(0)
    key, k_src, k_trg, k_par = jax.random.split(key, 4)

    src = jax.random.randint(k_src, (SRC_LEN, BATCH), 0, SRC_VOCAB, jnp.int32)
    trg = jax.random.randint(k_trg, (TRG_LEN, BATCH), 0, TRG_VOCAB, jnp.int32)

    params = make_seq2seq_params(k_par, SRC_VOCAB, TRG_VOCAB,
                                 EMB_DIM, HID_DIM, N_LAYERS)

    out = seq2seq_forward(params, src, trg)
    out = jax.block_until_ready(out)

    assert out.shape == (TRG_LEN, BATCH, TRG_VOCAB), out.shape
    assert out.dtype == jnp.float32
    assert bool(jnp.all(jnp.isfinite(out)))
    print("KERNEL_OK")
</pallas_src>

<mosaic_0001>
module attributes {stable_mosaic.version = 11 : i64} {
  func.func @_seq2seq_kernel(%arg0: memref<80x32xbf16, #tpu.memory_space<vmem>>, %arg1: memref<64x32xbf16, #tpu.memory_space<vmem>>, %arg2: memref<2x32x128xbf16, #tpu.memory_space<vmem>>, %arg3: memref<2x32x128xbf16, #tpu.memory_space<vmem>>, %arg4: memref<2x1x128xf32, #tpu.memory_space<vmem>>, %arg5: memref<2x32x128xbf16, #tpu.memory_space<vmem>>, %arg6: memref<2x32x128xbf16, #tpu.memory_space<vmem>>, %arg7: memref<2x1x128xf32, #tpu.memory_space<vmem>>, %arg8: memref<32x128xbf16, #tpu.memory_space<vmem>>, %arg9: memref<1x128xf32, #tpu.memory_space<vmem>>, %arg10: memref<64x128xf32, #tpu.memory_space<vmem>>, %arg11: memref<80x32xf32, #tpu.memory_space<vmem>>, %arg12: memref<80x128xf32, #tpu.memory_space<vmem>>) attributes {dimension_semantics = [], scalar_prefetch = 0 : i64, scratch_operands = 2 : i64, tpu.core_type = #tpu.core_type<tc>} {
    %0 = tpu.iota {dimensions = array<i32: 1>} : vector<8x128xi32>
    %c64_i32 = arith.constant 64 : i32
    %1 = vector.broadcast %c64_i32 : i32 to vector<8x128xi32>
    %2 = arith.cmpi sge, %0, %1 : vector<8x128xi32>
    %c96_i32 = arith.constant 96 : i32
    %3 = vector.broadcast %c96_i32 : i32 to vector<8x128xi32>
    %4 = arith.cmpi slt, %0, %3 : vector<8x128xi32>
    %5 = arith.andi %2, %4 : vector<8x128xi1>
    %cst = arith.constant 0.000000e+00 : f32
    %6 = vector.broadcast %cst : f32 to vector<8x32xf32>
    %c0 = arith.constant 0 : index
    %c0_0 = arith.constant 0 : index
    %7 = vector.load %arg0[%c0, %c0_0] : memref<80x32xbf16, #tpu.memory_space<vmem>>, vector<80x32xbf16>
    %c0_1 = arith.constant 0 : index
    %c0_2 = arith.constant 0 : index
    %c0_3 = arith.constant 0 : index
    %8 = vector.load %arg2[%c0_1, %c0_2, %c0_3] : memref<2x32x128xbf16, #tpu.memory_space<vmem>>, vector<1x32x128xbf16>
    %9 = vector.shape_cast %8 : vector<1x32x128xbf16> to vector<32x128xbf16>
    %c0_4 = arith.constant 0 : index
    %c0_5 = arith.constant 0 : index
    %c0_6 = arith.constant 0 : index
    %10 = vector.load %arg3[%c0_4, %c0_5, %c0_6] : memref<2x32x128xbf16, #tpu.memory_space<vmem>>, vector<1x32x128xbf16>
    %11 = vector.shape_cast %10 : vector<1x32x128xbf16> to vector<32x128xbf16>
    %c0_7 = arith.constant 0 : index
    %c0_8 = arith.constant 0 : index
    %c0_9 = arith.constant 0 : index
    %12 = vector.load %arg4[%c0_7, %c0_8, %c0_9] : memref<2x1x128xf32, #tpu.memory_space<vmem>>, vector<1x1x128xf32>
    %13 = vector.shape_cast %12 : vector<1x1x128xf32> to vector<1x128xf32>
    %cst_10 = arith.constant dense<0.000000e+00> : vector<80x128xf32>
    %14 = tpu.matmul %7, %9, %cst_10 {dimension_numbers = #tpu.dot_dimension_numbers<[1], [0], [0], [1], [0, 0, 1, 1], [], []>} : vector<80x32xbf16>, vector<32x128xbf16>, vector<80x128xf32> -> vector<80x128xf32>
    %15 = vector.broadcast %13 : vector<1x128xf32> to vector<80x128xf32>
    %16 = arith.addf %14, %15 : vector<80x128xf32>
    %c0_11 = arith.constant 0 : index
    %c0_12 = arith.constant 0 : index
    %17 = vector.load %arg12[%c0_11, %c0_12] : memref<80x128xf32, #tpu.memory_space<vmem>>, vector<80x128xf32>
    tpu.vector_store %arg12[%c0_11, %c0_12], %16 {strides = array<i32>} : memref<80x128xf32, #tpu.memory_space<vmem>>, vector<80x128xf32>,
    %c0_i32 = arith.constant 0 : i32
    %c8_i32 = arith.constant 8 : i32
    %18 = arith.muli %c0_i32, %c8_i32 : i32
    %19 = tpu.assume_multiple %18, 8 : i32
    %20 = arith.index_cast %19 : i32 to index
    %c0_13 = arith.constant 0 : index
    %21 = vector.load %arg12[%20, %c0_13] : memref<80x128xf32, #tpu.memory_space<vmem>>, vector<8x128xf32>
    %22 = arith.truncf %6 : vector<8x32xf32> to vector<8x32xbf16>
    %cst_14 = arith.constant dense<0.000000e+00> : vector<8x128xf32>
    %23 = tpu.matmul %22, %11, %cst_14 {dimension_numbers = #tpu.dot_dimension_numbers<[1], [0], [0], [1], [0, 0, 1, 1], [], []>} : vector<8x32xbf16>, vector<32x128xbf16>, vector<8x128xf32> -> vector<8x128xf32>
    %24 = arith.addf %21, %23 : vector<8x128xf32>
    %25 = math.tanh %24 : vector<8x128xf32>
    %26 = arith.negf %24 : vector<8x128xf32>
    %27 = math.exp %26 : vector<8x128xf32>
    %cst_15 = arith.constant 1.000000e+00 : f32
    %28 = vector.broadcast %cst_15 : f32 to vector<8x128xf32>
    %29 = arith.addf %28, %27 : vector<8x128xf32>
    %30 = arith.divf %28, %29 : vector<8x128xf32>
    %31 = arith.select %5, %25, %30 : vector<8x128xi1>, vector<8x128xf32>
    %32 = vector.extract_strided_slice %31 {offsets = [0, 0], sizes = [8, 32], strides = [1, 1]} : vector<8x128xf32> to vector<8x32xf32>
    %33 = vector.extract_strided_slice %31 {offsets = [0, 32], sizes = [8, 32], strides = [1, 1]} : vector<8x128xf32> to vector<8x32xf32>
    %34 = vector.extract_strided_slice %31 {offsets = [0, 64], sizes = [8, 32], strides = [1, 1]} : vector<8x128xf32> to vector<8x32xf32>
    %35 = vector.extract_strided_slice %31 {offsets = [0, 96], sizes = [8, 32], strides = [1, 1]} : vector<8x128xf32> to vector<8x32xf32>
    %36 = arith.mulf %33, %6 : vector<8x32xf32>
    %37 = arith.mulf %32, %34 : vector<8x32xf32>
    %38 = arith.addf %36, %37 : vector<8x32xf32>
    %39 = math.tanh %38 : vector<8x32xf32>
    %40 = arith.mulf %35, %39 : vector<8x32xf32>
    %41 = arith.index_cast %19 : i32 to index
    %c0_16 = arith.constant 0 : index
    %42 = vector.load %arg11[%41, %c0_16] : memref<80x32xf32, #tpu.memory_space<vmem>>, vector<8x32xf32>
    tpu.vector_store %arg11[%41, %c0_16], %40 {strides = array<i32>} : memref<80x32xf32, #tpu.memory_space<vmem>>, vector<8x32xf32>,
    %c1_i32 = arith.constant 1 : i32
    %c8_i32_17 = arith.constant 8 : i32
    %43 = arith.muli %c1_i32, %c8_i32_17 : i32
    %44 = tpu.assume_multiple %43, 8 : i32
    %45 = arith.index_cast %44 : i32 to index
    %c0_18 = arith.constant 0 : index
    %46 = vector.load %arg12[%45, %c0_18] : memref<80x128xf32, #tpu.memory_space<vmem>>, vector<8x128xf32>
    %47 = arith.truncf %40 : vector<8x32xf32> to vector<8x32xbf16>
    %cst_19 = arith.constant dense<0.000000e+00> : vector<8x128xf32>
    %48 = tpu.matmul %47, %11, %cst_19 {dimension_numbers = #tpu.dot_dimension_numbers<[1], [0], [0], [1], [0, 0, 1, 1], [], []>} : vector<8x32xbf16>, vector<32x128xbf16>, vector<8x128xf32> -> vector<8x128xf32>
    %49 = arith.addf %46, %48 : vector<8x128xf32>
    %50 = math.tanh %49 : vector<8x128xf32>
    %51 = arith.negf %49 : vector<8x128xf32>
    %52 = math.exp %51 : vector<8x128xf32>
    %cst_20 = arith.constant 1.000000e+00 : f32
    %53 = vector.broadcast %cst_20 : f32 to vector<8x128xf32>
    %54 = arith.addf %53, %52 : vector<8x128xf32>
    %55 = arith.divf %53, %54 : vector<8x128xf32>
    %56 = arith.select %5, %50, %55 : vector<8x128xi1>, vector<8x128xf32>
    %57 = vector.extract_strided_slice %56 {offsets = [0, 0], sizes = [8, 32], strides = [1, 1]} : vector<8x128xf32> to vector<8x32xf32>
    %58 = vector.extract_strided_slice %56 {offsets = [0, 32], sizes = [8, 32], strides = [1, 1]} : vector<8x128xf32> to vector<8x32xf32>
    %59 = vector.extract_strided_slice %56 {offsets = [0, 64], sizes = [8, 32], strides = [1, 1]} : vector<8x128xf32> to vector<8x32xf32>
    %60 = vector.extract_strided_slice %56 {offsets = [0, 96], sizes = [8, 32], strides = [1, 1]} : vector<8x128xf32> to vector<8x32xf32>
    %61 = arith.mulf %58, %38 : vector<8x32xf32>
    %62 = arith.mulf %57, %59 : vector<8x32xf32>
    %63 = arith.addf %61, %62 : vector<8x32xf32>
    %64 = math.tanh %63 : vector<8x32xf32>
    %65 = arith.mulf %60, %64 : vector<8x32xf32>
    %66 = arith.index_cast %44 : i32 to index
    %c0_21 = arith.constant 0 : index
    %67 = vector.load %arg11[%66, %c0_21] : memref<80x32xf32, #tpu.memory_space<vmem>>, vector<8x32xf32>
    tpu.vector_store %arg11[%66, %c0_21], %65 {strides = array<i32>} : memref<80x32xf32, #tpu.memory_space<vmem>>, vector<8x32xf32>,
    %c2_i32 = arith.constant 2 : i32
    %c8_i32_22 = arith.constant 8 : i32
    %68 = arith.muli %c2_i32, %c8_i32_22 : i32
    %69 = tpu.assume_multiple %68, 8 : i32
    %70 = arith.index_cast %69 : i32 to index
    %c0_23 = arith.constant 0 : index
    %71 = vector.load %arg12[%70, %c0_23] : memref<80x128xf32, #tpu.memory_space<vmem>>, vector<8x128xf32>
    %72 = arith.truncf %65 : vector<8x32xf32> to vector<8x32xbf16>
    %cst_24 = arith.constant dense<0.000000e+00> : vector<8x128xf32>
    %73 = tpu.matmul %72, %11, %cst_24 {dimension_numbers = #tpu.dot_dimension_numbers<[1], [0], [0], [1], [0, 0, 1, 1], [], []>} : vector<8x32xbf16>, vector<32x128xbf16>, vector<8x128xf32> -> vector<8x128xf32>
    %74 = arith.addf %71, %73 : vector<8x128xf32>
    %75 = math.tanh %74 : vector<8x128xf32>
    %76 = arith.negf %74 : vector<8x128xf32>
    %77 = math.exp %76 : vector<8x128xf32>
    %cst_25 = arith.constant 1.000000e+00 : f32
    %78 = vector.broadcast %cst_25 : f32 to vector<8x128xf32>
    %79 = arith.addf %78, %77 : vector<8x128xf32>
    %80 = arith.divf %78, %79 : vector<8x128xf32>
    %81 = arith.select %5, %75, %80 : vector<8x128xi1>, vector<8x128xf32>
    %82 = vector.extract_strided_slice %81 {offsets = [0, 0], sizes = [8, 32], strides = [1, 1]} : vector<8x128xf32> to vector<8x32xf32>
    %83 = vector.extract_strided_slice %81 {offsets = [0, 32], sizes = [8, 32], strides = [1, 1]} : vector<8x128xf32> to vector<8x32xf32>
    %84 = vector.extract_strided_slice %81 {offsets = [0, 64], sizes = [8, 32], strides = [1, 1]} : vector<8x128xf32> to vector<8x32xf32>
    %85 = vector.extract_strided_slice %81 {offsets = [0, 96], sizes = [8, 32], strides = [1, 1]} : vector<8x128xf32> to vector<8x32xf32>
    %86 = arith.mulf %83, %63 : vector<8x32xf32>
    %87 = arith.mulf %82, %84 : vector<8x32xf32>
    %88 = arith.addf %86, %87 : vector<8x32xf32>
    %89 = math.tanh %88 : vector<8x32xf32>
    %90 = arith.mulf %85, %89 : vector<8x32xf32>
    %91 = arith.index_cast %69 : i32 to index
    %c0_26 = arith.constant 0 : index
    %92 = vector.load %arg11[%91, %c0_26] : memref<80x32xf32, #tpu.memory_space<vmem>>, vector<8x32xf32>
    tpu.vector_store %arg11[%91, %c0_26], %90 {strides = array<i32>} : memref<80x32xf32, #tpu.memory_space<vmem>>, vector<8x32xf32>,
    %c3_i32 = arith.constant 3 : i32
    %c8_i32_27 = arith.constant 8 : i32
    %93 = arith.muli %c3_i32, %c8_i32_27 : i32
    %94 = tpu.assume_multiple %93, 8 : i32
    %95 = arith.index_cast %94 : i32 to index
    %c0_28 = arith.constant 0 : index
    %96 = vector.load %arg12[%95, %c0_28] : memref<80x128xf32, #tpu.memory_space<vmem>>, vector<8x128xf32>
    %97 = arith.truncf %90 : vector<8x32xf32> to vector<8x32xbf16>
    %cst_29 = arith.constant dense<0.000000e+00> : vector<8x128xf32>
    %98 = tpu.matmul %97, %11, %cst_29 {dimension_numbers = #tpu.dot_dimension_numbers<[1], [0], [0], [1], [0, 0, 1, 1], [], []>} : vector<8x32xbf16>, vector<32x128xbf16>, vector<8x128xf32> -> vector<8x128xf32>
    %99 = arith.addf %96, %98 : vector<8x128xf32>
    %100 = math.tanh %99 : vector<8x128xf32>
    %101 = arith.negf %99 : vector<8x128xf32>
    %102 = math.exp %101 : vector<8x128xf32>
    %cst_30 = arith.constant 1.000000e+00 : f32
    %103 = vector.broadcast %cst_30 : f32 to vector<8x128xf32>
    %104 = arith.addf %103, %102 : vector<8x128xf32>
    %105 = arith.divf %103, %104 : vector<8x128xf32>
    %106 = arith.select %5, %100, %105 : vector<8x128xi1>, vector<8x128xf32>
    %107 = vector.extract_strided_slice %106 {offsets = [0, 0], sizes = [8, 32], strides = [1, 1]} : vector<8x128xf32> to vector<8x32xf32>
    %108 = vector.extract_strided_slice %106 {offsets = [0, 32], sizes = [8, 32], strides = [1, 1]} : vector<8x128xf32> to vector<8x32xf32>
    %109 = vector.extract_strided_slice %106 {offsets = [0, 64], sizes = [8, 32], strides = [1, 1]} : vector<8x128xf32> to vector<8x32xf32>
    %110 = vector.extract_strided_slice %106 {offsets = [0, 96], sizes = [8, 32], strides = [1, 1]} : vector<8x128xf32> to vector<8x32xf32>
    %111 = arith.mulf %108, %88 : vector<8x32xf32>
    %112 = arith.mulf %107, %109 : vector<8x32xf32>
    %113 = arith.addf %111, %112 : vector<8x32xf32>
    %114 = math.tanh %113 : vector<8x32xf32>
    %115 = arith.mulf %110, %114 : vector<8x32xf32>
    %116 = arith.index_cast %94 : i32 to index
    %c0_31 = arith.constant 0 : index
    %117 = vector.load %arg11[%116, %c0_31] : memref<80x32xf32, #tpu.memory_space<vmem>>, vector<8x32xf32>
    tpu.vector_store %arg11[%116, %c0_31], %115 {strides = array<i32>} : memref<80x32xf32, #tpu.memory_space<vmem>>, vector<8x32xf32>,
    %c4_i32 = arith.constant 4 : i32
    %c8_i32_32 = arith.constant 8 : i32
    %118 = arith.muli %c4_i32, %c8_i32_32 : i32
    %119 = tpu.assume_multiple %118, 8 : i32
    %120 = arith.index_cast %119 : i32 to index
    %c0_33 = arith.constant 0 : index
    %121 = vector.load %arg12[%120, %c0_33] : memref<80x128xf32, #tpu.memory_space<vmem>>, vector<8x128xf32>
    %122 = arith.truncf %115 : vector<8x32xf32> to vector<8x32xbf16>
    %cst_34 = arith.constant dense<0.000000e+00> : vector<8x128xf32>
    %123 = tpu.matmul %122, %11, %cst_34 {dimension_numbers = #tpu.dot_dimension_numbers<[1], [0], [0], [1], [0, 0, 1, 1], [], []>} : vector<8x32xbf16>, vector<32x128xbf16>, vector<8x128xf32> -> vector<8x128xf32>
    %124 = arith.addf %121, %123 : vector<8x128xf32>
    %125 = math.tanh %124 : vector<8x128xf32>
    %126 = arith.negf %124 : vector<8x128xf32>
    %127 = math.exp %126 : vector<8x128xf32>
    %cst_35 = arith.constant 1.000000e+00 : f32
    %128 = vector.broadcast %cst_35 : f32 to vector<8x128xf32>
    %129 = arith.addf %128, %127 : vector<8x128xf32>
    %130 = arith.divf %128, %129 : vector<8x128xf32>
    %131 = arith.select %5, %125, %130 : vector<8x128xi1>, vector<8x128xf32>
    %132 = vector.extract_strided_slice %131 {offsets = [0, 0], sizes = [8, 32], strides = [1, 1]} : vector<8x128xf32> to vector<8x32xf32>
    %133 = vector.extract_strided_slice %131 {offsets = [0, 32], sizes = [8, 32], strides = [1, 1]} : vector<8x128xf32> to vector<8x32xf32>
    %134 = vector.extract_strided_slice %131 {offsets = [0, 64], sizes = [8, 32], strides = [1, 1]} : vector<8x128xf32> to vector<8x32xf32>
    %135 = vector.extract_strided_slice %131 {offsets = [0, 96], sizes = [8, 32], strides = [1, 1]} : vector<8x128xf32> to vector<8x32xf32>
    %136 = arith.mulf %133, %113 : vector<8x32xf32>
    %137 = arith.mulf %132, %134 : vector<8x32xf32>
    %138 = arith.addf %136, %137 : vector<8x32xf32>
    %139 = math.tanh %138 : vector<8x32xf32>
    %140 = arith.mulf %135, %139 : vector<8x32xf32>
    %141 = arith.index_cast %119 : i32 to index
    %c0_36 = arith.constant 0 : index
    %142 = vector.load %arg11[%141, %c0_36] : memref<80x32xf32, #tpu.memory_space<vmem>>, vector<8x32xf32>
    tpu.vector_store %arg11[%141, %c0_36], %140 {strides = array<i32>} : memref<80x32xf32, #tpu.memory_space<vmem>>, vector<8x32xf32>,
    %c5_i32 = arith.constant 5 : i32
    %c8_i32_37 = arith.constant 8 : i32
    %143 = arith.muli %c5_i32, %c8_i32_37 : i32
    %144 = tpu.assume_multiple %143, 8 : i32
    %145 = arith.index_cast %144 : i32 to index
    %c0_38 = arith.constant 0 : index
    %146 = vector.load %arg12[%145, %c0_38] : memref<80x128xf32, #tpu.memory_space<vmem>>, vector<8x128xf32>
    %147 = arith.truncf %140 : vector<8x32xf32> to vector<8x32xbf16>
    %cst_39 = arith.constant dense<0.000000e+00> : vector<8x128xf32>
    %148 = tpu.matmul %147, %11, %cst_39 {dimension_numbers = #tpu.dot_dimension_numbers<[1], [0], [0], [1], [0, 0, 1, 1], [], []>} : vector<8x32xbf16>, vector<32x128xbf16>, vector<8x128xf32> -> vector<8x128xf32>
    %149 = arith.addf %146, %148 : vector<8x128xf32>
    %150 = math.tanh %149 : vector<8x128xf32>
    %151 = arith.negf %149 : vector<8x128xf32>
    %152 = math.exp %151 : vector<8x128xf32>
    %cst_40 = arith.constant 1.000000e+00 : f32
    %153 = vector.broadcast %cst_40 : f32 to vector<8x128xf32>
    %154 = arith.addf %153, %152 : vector<8x128xf32>
    %155 = arith.divf %153, %154 : vector<8x128xf32>
    %156 = arith.select %5, %150, %155 : vector<8x128xi1>, vector<8x128xf32>
    %157 = vector.extract_strided_slice %156 {offsets = [0, 0], sizes = [8, 32], strides = [1, 1]} : vector<8x128xf32> to vector<8x32xf32>
    %158 = vector.extract_strided_slice %156 {offsets = [0, 32], sizes = [8, 32], strides = [1, 1]} : vector<8x128xf32> to vector<8x32xf32>
    %159 = vector.extract_strided_slice %156 {offsets = [0, 64], sizes = [8, 32], strides = [1, 1]} : vector<8x128xf32> to vector<8x32xf32>
    %160 = vector.extract_strided_slice %156 {offsets = [0, 96], sizes = [8, 32], strides = [1, 1]} : vector<8x128xf32> to vector<8x32xf32>
    %161 = arith.mulf %158, %138 : vector<8x32xf32>
    %162 = arith.mulf %157, %159 : vector<8x32xf32>
    %163 = arith.addf %161, %162 : vector<8x32xf32>
    %164 = math.tanh %163 : vector<8x32xf32>
    %165 = arith.mulf %160, %164 : vector<8x32xf32>
    %166 = arith.index_cast %144 : i32 to index
    %c0_41 = arith.constant 0 : index
    %167 = vector.load %arg11[%166, %c0_41] : memref<80x32xf32, #tpu.memory_space<vmem>>, vector<8x32xf32>
    tpu.vector_store %arg11[%166, %c0_41], %165 {strides = array<i32>} : memref<80x32xf32, #tpu.memory_space<vmem>>, vector<8x32xf32>,
    %c6_i32 = arith.constant 6 : i32
    %c8_i32_42 = arith.constant 8 : i32
    %168 = arith.muli %c6_i32, %c8_i32_42 : i32
    %169 = tpu.assume_multiple %168, 8 : i32
    %170 = arith.index_cast %169 : i32 to index
    %c0_43 = arith.constant 0 : index
    %171 = vector.load %arg12[%170, %c0_43] : memref<80x128xf32, #tpu.memory_space<vmem>>, vector<8x128xf32>
    %172 = arith.truncf %165 : vector<8x32xf32> to vector<8x32xbf16>
    %cst_44 = arith.constant dense<0.000000e+00> : vector<8x128xf32>
    %173 = tpu.matmul %172, %11, %cst_44 {dimension_numbers = #tpu.dot_dimension_numbers<[1], [0], [0], [1], [0, 0, 1, 1], [], []>} : vector<8x32xbf16>, vector<32x128xbf16>, vector<8x128xf32> -> vector<8x128xf32>
    %174 = arith.addf %171, %173 : vector<8x128xf32>
    %175 = math.tanh %174 : vector<8x128xf32>
    %176 = arith.negf %174 : vector<8x128xf32>
    %177 = math.exp %176 : vector<8x128xf32>
    %cst_45 = arith.constant 1.000000e+00 : f32
    %178 = vector.broadcast %cst_45 : f32 to vector<8x128xf32>
    %179 = arith.addf %178, %177 : vector<8x128xf32>
    %180 = arith.divf %178, %179 : vector<8x128xf32>
    %181 = arith.select %5, %175, %180 : vector<8x128xi1>, vector<8x128xf32>
    %182 = vector.extract_strided_slice %181 {offsets = [0, 0], sizes = [8, 32], strides = [1, 1]} : vector<8x128xf32> to vector<8x32xf32>
    %183 = vector.extract_strided_slice %181 {offsets = [0, 32], sizes = [8, 32], strides = [1, 1]} : vector<8x128xf32> to vector<8x32xf32>
    %184 = vector.extract_strided_slice %181 {offsets = [0, 64], sizes = [8, 32], strides = [1, 1]} : vector<8x128xf32> to vector<8x32xf32>
    %185 = vector.extract_strided_slice %181 {offsets = [0, 96], sizes = [8, 32], strides = [1, 1]} : vector<8x128xf32> to vector<8x32xf32>
    %186 = arith.mulf %183, %163 : vector<8x32xf32>
    %187 = arith.mulf %182, %184 : vector<8x32xf32>
    %188 = arith.addf %186, %187 : vector<8x32xf32>
    %189 = math.tanh %188 : vector<8x32xf32>
    %190 = arith.mulf %185, %189 : vector<8x32xf32>
    %191 = arith.index_cast %169 : i32 to index
    %c0_46 = arith.constant 0 : index
    %192 = vector.load %arg11[%191, %c0_46] : memref<80x32xf32, #tpu.memory_space<vmem>>, vector<8x32xf32>
    tpu.vector_store %arg11[%191, %c0_46], %190 {strides = array<i32>} : memref<80x32xf32, #tpu.memory_space<vmem>>, vector<8x32xf32>,
    %c7_i32 = arith.constant 7 : i32
    %c8_i32_47 = arith.constant 8 : i32
    %193 = arith.muli %c7_i32, %c8_i32_47 : i32
    %194 = tpu.assume_multiple %193, 8 : i32
    %195 = arith.index_cast %194 : i32 to index
    %c0_48 = arith.constant 0 : index
    %196 = vector.load %arg12[%195, %c0_48] : memref<80x128xf32, #tpu.memory_space<vmem>>, vector<8x128xf32>
    %197 = arith.truncf %190 : vector<8x32xf32> to vector<8x32xbf16>
    %cst_49 = arith.constant dense<0.000000e+00> : vector<8x128xf32>
    %198 = tpu.matmul %197, %11, %cst_49 {dimension_numbers = #tpu.dot_dimension_numbers<[1], [0], [0], [1], [0, 0, 1, 1], [], []>} : vector<8x32xbf16>, vector<32x128xbf16>, vector<8x128xf32> -> vector<8x128xf32>
    %199 = arith.addf %196, %198 : vector<8x128xf32>
    %200 = math.tanh %199 : vector<8x128xf32>
    %201 = arith.negf %199 : vector<8x128xf32>
    %202 = math.exp %201 : vector<8x128xf32>
    %cst_50 = arith.constant 1.000000e+00 : f32
    %203 = vector.broadcast %cst_50 : f32 to vector<8x128xf32>
    %204 = arith.addf %203, %202 : vector<8x128xf32>
    %205 = arith.divf %203, %204 : vector<8x128xf32>
    %206 = arith.select %5, %200, %205 : vector<8x128xi1>, vector<8x128xf32>
    %207 = vector.extract_strided_slice %206 {offsets = [0, 0], sizes = [8, 32], strides = [1, 1]} : vector<8x128xf32> to vector<8x32xf32>
    %208 = vector.extract_strided_slice %206 {offsets = [0, 32], sizes = [8, 32], strides = [1, 1]} : vector<8x128xf32> to vector<8x32xf32>
    %209 = vector.extract_strided_slice %206 {offsets = [0, 64], sizes = [8, 32], strides = [1, 1]} : vector<8x128xf32> to vector<8x32xf32>
    %210 = vector.extract_strided_slice %206 {offsets = [0, 96], sizes = [8, 32], strides = [1, 1]} : vector<8x128xf32> to vector<8x32xf32>
    %211 = arith.mulf %208, %188 : vector<8x32xf32>
    %212 = arith.mulf %207, %209 : vector<8x32xf32>
    %213 = arith.addf %211, %212 : vector<8x32xf32>
    %214 = math.tanh %213 : vector<8x32xf32>
    %215 = arith.mulf %210, %214 : vector<8x32xf32>
    %216 = arith.index_cast %194 : i32 to index
    %c0_51 = arith.constant 0 : index
    %217 = vector.load %arg11[%216, %c0_51] : memref<80x32xf32, #tpu.memory_space<vmem>>, vector<8x32xf32>
    tpu.vector_store %arg11[%216, %c0_51], %215 {strides = array<i32>} : memref<80x32xf32, #tpu.memory_space<vmem>>, vector<8x32xf32>,
    %c8_i32_52 = arith.constant 8 : i32
    %c8_i32_53 = arith.constant 8 : i32
    %218 = arith.muli %c8_i32_52, %c8_i32_53 : i32
    %219 = tpu.assume_multiple %218, 8 : i32
    %220 = arith.index_cast %219 : i32 to index
    %c0_54 = arith.constant 0 : index
    %221 = vector.load %arg12[%220, %c0_54] : memref<80x128xf32, #tpu.memory_space<vmem>>, vector<8x128xf32>
    %222 = arith.truncf %215 : vector<8x32xf32> to vector<8x32xbf16>
    %cst_55 = arith.constant dense<0.000000e+00> : vector<8x128xf32>
    %223 = tpu.matmul %222, %11, %cst_55 {dimension_numbers = #tpu.dot_dimension_numbers<[1], [0], [0], [1], [0, 0, 1, 1], [], []>} : vector<8x32xbf16>, vector<32x128xbf16>, vector<8x128xf32> -> vector<8x128xf32>
    %224 = arith.addf %221, %223 : vector<8x128xf32>
    %225 = math.tanh %224 : vector<8x128xf32>
    %226 = arith.negf %224 : vector<8x128xf32>
    %227 = math.exp %226 : vector<8x128xf32>
    %cst_56 = arith.constant 1.000000e+00 : f32
    %228 = vector.broadcast %cst_56 : f32 to vector<8x128xf32>
    %229 = arith.addf %228, %227 : vector<8x128xf32>
    %230 = arith.divf %228, %229 : vector<8x128xf32>
    %231 = arith.select %5, %225, %230 : vector<8x128xi1>, vector<8x128xf32>
    %232 = vector.extract_strided_slice %231 {offsets = [0, 0], sizes = [8, 32], strides = [1, 1]} : vector<8x128xf32> to vector<8x32xf32>
    %233 = vector.extract_strided_slice %231 {offsets = [0, 32], sizes = [8, 32], strides = [1, 1]} : vector<8x128xf32> to vector<8x32xf32>
    %234 = vector.extract_strided_slice %231 {offsets = [0, 64], sizes = [8, 32], strides = [1, 1]} : vector<8x128xf32> to vector<8x32xf32>
    %235 = vector.extract_strided_slice %231 {offsets = [0, 96], sizes = [8, 32], strides = [1, 1]} : vector<8x128xf32> to vector<8x32xf32>
    %236 = arith.mulf %233, %213 : vector<8x32xf32>
    %237 = arith.mulf %232, %234 : vector<8x32xf32>
    %238 = arith.addf %236, %237 : vector<8x32xf32>
    %239 = math.tanh %238 : vector<8x32xf32>
    %240 = arith.mulf %235, %239 : vector<8x32xf32>
    %241 = arith.index_cast %219 : i32 to index
    %c0_57 = arith.constant 0 : index
    %242 = vector.load %arg11[%241, %c0_57] : memref<80x32xf32, #tpu.memory_space<vmem>>, vector<8x32xf32>
    tpu.vector_store %arg11[%241, %c0_57], %240 {strides = array<i32>} : memref<80x32xf32, #tpu.memory_space<vmem>>, vector<8x32xf32>,
    %c9_i32 = arith.constant 9 : i32
    %c8_i32_58 = arith.constant 8 : i32
    %243 = arith.muli %c9_i32, %c8_i32_58 : i32
    %244 = tpu.assume_multiple %243, 8 : i32
    %245 = arith.index_cast %244 : i32 to index
    %c0_59 = arith.constant 0 : index
    %246 = vector.load %arg12[%245, %c0_59] : memref<80x128xf32, #tpu.memory_space<vmem>>, vector<8x128xf32>
    %247 = arith.truncf %240 : vector<8x32xf32> to vector<8x32xbf16>
    %cst_60 = arith.constant dense<0.000000e+00> : vector<8x128xf32>
    %248 = tpu.matmul %247, %11, %cst_60 {dimension_numbers = #tpu.dot_dimension_numbers<[1], [0], [0], [1], [0, 0, 1, 1], [], []>} : vector<8x32xbf16>, vector<32x128xbf16>, vector<8x128xf32> -> vector<8x128xf32>
    %249 = arith.addf %246, %248 : vector<8x128xf32>
    %250 = math.tanh %249 : vector<8x128xf32>
    %251 = arith.negf %249 : vector<8x128xf32>
    %252 = math.exp %251 : vector<8x128xf32>
    %cst_61 = arith.constant 1.000000e+00 : f32
    %253 = vector.broadcast %cst_61 : f32 to vector<8x128xf32>
    %254 = arith.addf %253, %252 : vector<8x128xf32>
    %255 = arith.divf %253, %254 : vector<8x128xf32>
    %256 = arith.select %5, %250, %255 : vector<8x128xi1>, vector<8x128xf32>
    %257 = vector.extract_strided_slice %256 {offsets = [0, 0], sizes = [8, 32], strides = [1, 1]} : vector<8x128xf32> to vector<8x32xf32>
    %258 = vector.extract_strided_slice %256 {offsets = [0, 32], sizes = [8, 32], strides = [1, 1]} : vector<8x128xf32> to vector<8x32xf32>
    %259 = vector.extract_strided_slice %256 {offsets = [0, 64], sizes = [8, 32], strides = [1, 1]} : vector<8x128xf32> to vector<8x32xf32>
    %260 = vector.extract_strided_slice %256 {offsets = [0, 96], sizes = [8, 32], strides = [1, 1]} : vector<8x128xf32> to vector<8x32xf32>
    %261 = arith.mulf %258, %238 : vector<8x32xf32>
    %262 = arith.mulf %257, %259 : vector<8x32xf32>
    %263 = arith.addf %261, %262 : vector<8x32xf32>
    %264 = math.tanh %263 : vector<8x32xf32>
    %265 = arith.mulf %260, %264 : vector<8x32xf32>
    %266 = arith.index_cast %244 : i32 to index
    %c0_62 = arith.constant 0 : index
    %267 = vector.load %arg11[%266, %c0_62] : memref<80x32xf32, #tpu.memory_space<vmem>>, vector<8x32xf32>
    tpu.vector_store %arg11[%266, %c0_62], %265 {strides = array<i32>} : memref<80x32xf32, #tpu.memory_space<vmem>>, vector<8x32xf32>,
    %c10_i32 = arith.constant 10 : i32
    %c0_63 = arith.constant 0 : index
    %c0_64 = arith.constant 0 : index
    %268 = vector.load %arg11[%c0_63, %c0_64] : memref<80x32xf32, #tpu.memory_space<vmem>>, vector<80x32xf32>
    %269 = arith.truncf %268 : vector<80x32xf32> to vector<80x32xbf16>
    %c1 = arith.constant 1 : index
    %c0_65 = arith.constant 0 : index
    %c0_66 = arith.constant 0 : index
    %270 = vector.load %arg2[%c1, %c0_65, %c0_66] : memref<2x32x128xbf16, #tpu.memory_space<vmem>>, vector<1x32x128xbf16>
    %271 = vector.shape_cast %270 : vector<1x32x128xbf16> to vector<32x128xbf16>
    %c1_67 = arith.constant 1 : index
    %c0_68 = arith.constant 0 : index
    %c0_69 = arith.constant 0 : index
    %272 = vector.load %arg3[%c1_67, %c0_68, %c0_69] : memref<2x32x128xbf16, #tpu.memory_space<vmem>>, vector<1x32x128xbf16>
    %273 = vector.shape_cast %272 : vector<1x32x128xbf16> to vector<32x128xbf16>
    %c1_70 = arith.constant 1 : index
    %c0_71 = arith.constant 0 : index
    %c0_72 = arith.constant 0 : index
    %274 = vector.load %arg4[%c1_70, %c0_71, %c0_72] : memref<2x1x128xf32, #tpu.memory_space<vmem>>, vector<1x1x128xf32>
    %275 = vector.shape_cast %274 : vector<1x1x128xf32> to vector<1x128xf32>
    %cst_73 = arith.constant dense<0.000000e+00> : vector<80x128xf32>
    %276 = tpu.matmul %269, %271, %cst_73 {dimension_numbers = #tpu.dot_dimension_numbers<[1], [0], [0], [1], [0, 0, 1, 1], [], []>} : vector<80x32xbf16>, vector<32x128xbf16>, vector<80x128xf32> -> vector<80x128xf32>
    %277 = vector.broadcast %275 : vector<1x128xf32> to vector<80x128xf32>
    %278 = arith.addf %276, %277 : vector<80x128xf32>
    %c0_74 = arith.constant 0 : index
    %c0_75 = arith.constant 0 : index
    %279 = vector.load %arg12[%c0_74, %c0_75] : memref<80x128xf32, #tpu.memory_space<vmem>>, vector<80x128xf32>
    tpu.vector_store %arg12[%c0_74, %c0_75], %278 {strides = array<i32>} : memref<80x128xf32, #tpu.memory_space<vmem>>, vector<80x128xf32>,
    %c0_i32_76 = arith.constant 0 : i32
    %c8_i32_77 = arith.constant 8 : i32
    %280 = arith.muli %c0_i32_76, %c8_i32_77 : i32
    %281 = tpu.assume_multiple %280, 8 : i32
    %282 = arith.index_cast %281 : i32 to index
    %c0_78 = arith.constant 0 : index
    %283 = vector.load %arg12[%282, %c0_78] : memref<80x128xf32, #tpu.memory_space<vmem>>, vector<8x128xf32>
    %284 = arith.truncf %6 : vector<8x32xf32> to vector<8x32xbf16>
    %cst_79 = arith.constant dense<0.000000e+00> : vector<8x128xf32>
    %285 = tpu.matmul %284, %273, %cst_79 {dimension_numbers = #tpu.dot_dimension_numbers<[1], [0], [0], [1], [0, 0, 1, 1], [], []>} : vector<8x32xbf16>, vector<32x128xbf16>, vector<8x128xf32> -> vector<8x128xf32>
    %286 = arith.addf %283, %285 : vector<8x128xf32>
    %287 = math.tanh %286 : vector<8x128xf32>
    %288 = arith.negf %286 : vector<8x128xf32>
    %289 = math.exp %288 : vector<8x128xf32>
    %cst_80 = arith.constant 1.000000e+00 : f32
    %290 = vector.broadcast %cst_80 : f32 to vector<8x128xf32>
    %291 = arith.addf %290, %289 : vector<8x128xf32>
    %292 = arith.divf %290, %291 : vector<8x128xf32>
    %293 = arith.select %5, %287, %292 : vector<8x128xi1>, vector<8x128xf32>
    %294 = vector.extract_strided_slice %293 {offsets = [0, 0], sizes = [8, 32], strides = [1, 1]} : vector<8x128xf32> to vector<8x32xf32>
    %295 = vector.extract_strided_slice %293 {offsets = [0, 32], sizes = [8, 32], strides = [1, 1]} : vector<8x128xf32> to vector<8x32xf32>
    %296 = vector.extract_strided_slice %293 {offsets = [0, 64], sizes = [8, 32], strides = [1, 1]} : vector<8x128xf32> to vector<8x32xf32>
    %297 = vector.extract_strided_slice %293 {offsets = [0, 96], sizes = [8, 32], strides = [1, 1]} : vector<8x128xf32> to vector<8x32xf32>
    %298 = arith.mulf %295, %6 : vector<8x32xf32>
    %299 = arith.mulf %294, %296 : vector<8x32xf32>
    %300 = arith.addf %298, %299 : vector<8x32xf32>
    %301 = math.tanh %300 : vector<8x32xf32>
    %302 = arith.mulf %297, %301 : vector<8x32xf32>
    %c1_i32_81 = arith.constant 1 : i32
    %c8_i32_82 = arith.constant 8 : i32
    %303 = arith.muli %c1_i32_81, %c8_i32_82 : i32
    %304 = tpu.assume_multiple %303, 8 : i32
    %305 = arith.index_cast %304 : i32 to index
    %c0_83 = arith.constant 0 : index
    %306 = vector.load %arg12[%305, %c0_83] : memref<80x128xf32, #tpu.memory_space<vmem>>, vector<8x128xf32>
    %307 = arith.truncf %302 : vector<8x32xf32> to vector<8x32xbf16>
    %cst_84 = arith.constant dense<0.000000e+00> : vector<8x128xf32>
    %308 = tpu.matmul %307, %273, %cst_84 {dimension_numbers = #tpu.dot_dimension_numbers<[1], [0], [0], [1], [0, 0, 1, 1], [], []>} : vector<8x32xbf16>, vector<32x128xbf16>, vector<8x128xf32> -> vector<8x128xf32>
    %309 = arith.addf %306, %308 : vector<8x128xf32>
    %310 = math.tanh %309 : vector<8x128xf32>
    %311 = arith.negf %309 : vector<8x128xf32>
    %312 = math.exp %311 : vector<8x128xf32>
    %cst_85 = arith.constant 1.000000e+00 : f32
    %313 = vector.broadcast %cst_85 : f32 to vector<8x128xf32>
    %314 = arith.addf %313, %312 : vector<8x128xf32>
    %315 = arith.divf %313, %314 : vector<8x128xf32>
    %316 = arith.select %5, %310, %315 : vector<8x128xi1>, vector<8x128xf32>
    %317 = vector.extract_strided_slice %316 {offsets = [0, 0], sizes = [8, 32], strides = [1, 1]} : vector<8x128xf32> to vector<8x32xf32>
    %318 = vector.extract_strided_slice %316 {offsets = [0, 32], sizes = [8, 32], strides = [1, 1]} : vector<8x128xf32> to vector<8x32xf32>
    %319 = vector.extract_strided_slice %316 {offsets = [0, 64], sizes = [8, 32], strides = [1, 1]} : vector<8x128xf32> to vector<8x32xf32>
    %320 = vector.extract_strided_slice %316 {offsets = [0, 96], sizes = [8, 32], strides = [1, 1]} : vector<8x128xf32> to vector<8x32xf32>
    %321 = arith.mulf %318, %300 : vector<8x32xf32>
    %322 = arith.mulf %317, %319 : vector<8x32xf32>
    %323 = arith.addf %321, %322 : vector<8x32xf32>
    %324 = math.tanh %323 : vector<8x32xf32>
    %325 = arith.mulf %320, %324 : vector<8x32xf32>
    %c2_i32_86 = arith.constant 2 : i32
    %c8_i32_87 = arith.constant 8 : i32
    %326 = arith.muli %c2_i32_86, %c8_i32_87 : i32
    %327 = tpu.assume_multiple %326, 8 : i32
    %328 = arith.index_cast %327 : i32 to index
    %c0_88 = arith.constant 0 : index
    %329 = vector.load %arg12[%328, %c0_88] : memref<80x128xf32, #tpu.memory_space<vmem>>, vector<8x128xf32>
    %330 = arith.truncf %325 : vector<8x32xf32> to vector<8x32xbf16>
    %cst_89 = arith.constant dense<0.000000e+00> : vector<8x128xf32>
    %331 = tpu.matmul %330, %273, %cst_89 {dimension_numbers = #tpu.dot_dimension_numbers<[1], [0], [0], [1], [0, 0, 1, 1], [], []>} : vector<8x32xbf16>, vector<32x128xbf16>, vector<8x128xf32> -> vector<8x128xf32>
    %332 = arith.addf %329, %331 : vector<8x128xf32>
    %333 = math.tanh %332 : vector<8x128xf32>
    %334 = arith.negf %332 : vector<8x128xf32>
    %335 = math.exp %334 : vector<8x128xf32>
    %cst_90 = arith.constant 1.000000e+00 : f32
    %336 = vector.broadcast %cst_90 : f32 to vector<8x128xf32>
    %337 = arith.addf %336, %335 : vector<8x128xf32>
    %338 = arith.divf %336, %337 : vector<8x128xf32>
    %339 = arith.select %5, %333, %338 : vector<8x128xi1>, vector<8x128xf32>
    %340 = vector.extract_strided_slice %339 {offsets = [0, 0], sizes = [8, 32], strides = [1, 1]} : vector<8x128xf32> to vector<8x32xf32>
    %341 = vector.extract_strided_slice %339 {offsets = [0, 32], sizes = [8, 32], strides = [1, 1]} : vector<8x128xf32> to vector<8x32xf32>
    %342 = vector.extract_strided_slice %339 {offsets = [0, 64], sizes = [8, 32], strides = [1, 1]} : vector<8x128xf32> to vector<8x32xf32>
    %343 = vector.extract_strided_slice %339 {offsets = [0, 96], sizes = [8, 32], strides = [1, 1]} : vector<8x128xf32> to vector<8x32xf32>
    %344 = arith.mulf %341, %323 : vector<8x32xf32>
    %345 = arith.mulf %340, %342 : vector<8x32xf32>
    %346 = arith.addf %344, %345 : vector<8x32xf32>
    %347 = math.tanh %346 : vector<8x32xf32>
    %348 = arith.mulf %343, %347 : vector<8x32xf32>
    %c3_i32_91 = arith.constant 3 : i32
    %c8_i32_92 = arith.constant 8 : i32
    %349 = arith.muli %c3_i32_91, %c8_i32_92 : i32
    %350 = tpu.assume_multiple %349, 8 : i32
    %351 = arith.index_cast %350 : i32 to index
    %c0_93 = arith.constant 0 : index
    %352 = vector.load %arg12[%351, %c0_93] : memref<80x128xf32, #tpu.memory_space<vmem>>, vector<8x128xf32>
    %353 = arith.truncf %348 : vector<8x32xf32> to vector<8x32xbf16>
    %cst_94 = arith.constant dense<0.000000e+00> : vector<8x128xf32>
    %354 = tpu.matmul %353, %273, %cst_94 {dimension_numbers = #tpu.dot_dimension_numbers<[1], [0], [0], [1], [0, 0, 1, 1], [], []>} : vector<8x32xbf16>, vector<32x128xbf16>, vector<8x128xf32> -> vector<8x128xf32>
    %355 = arith.addf %352, %354 : vector<8x128xf32>
    %356 = math.tanh %355 : vector<8x128xf32>
    %357 = arith.negf %355 : vector<8x128xf32>
    %358 = math.exp %357 : vector<8x128xf32>
    %cst_95 = arith.constant 1.000000e+00 : f32
    %359 = vector.broadcast %cst_95 : f32 to vector<8x128xf32>
    %360 = arith.addf %359, %358 : vector<8x128xf32>
    %361 = arith.divf %359, %360 : vector<8x128xf32>
    %362 = arith.select %5, %356, %361 : vector<8x128xi1>, vector<8x128xf32>
    %363 = vector.extract_strided_slice %362 {offsets = [0, 0], sizes = [8, 32], strides = [1, 1]} : vector<8x128xf32> to vector<8x32xf32>
    %364 = vector.extract_strided_slice %362 {offsets = [0, 32], sizes = [8, 32], strides = [1, 1]} : vector<8x128xf32> to vector<8x32xf32>
    %365 = vector.extract_strided_slice %362 {offsets = [0, 64], sizes = [8, 32], strides = [1, 1]} : vector<8x128xf32> to vector<8x32xf32>
    %366 = vector.extract_strided_slice %362 {offsets = [0, 96], sizes = [8, 32], strides = [1, 1]} : vector<8x128xf32> to vector<8x32xf32>
    %367 = arith.mulf %364, %346 : vector<8x32xf32>
    %368 = arith.mulf %363, %365 : vector<8x32xf32>
    %369 = arith.addf %367, %368 : vector<8x32xf32>
    %370 = math.tanh %369 : vector<8x32xf32>
    %371 = arith.mulf %366, %370 : vector<8x32xf32>
    %c4_i32_96 = arith.constant 4 : i32
    %c8_i32_97 = arith.constant 8 : i32
    %372 = arith.muli %c4_i32_96, %c8_i32_97 : i32
    %373 = tpu.assume_multiple %372, 8 : i32
    %374 = arith.index_cast %373 : i32 to index
    %c0_98 = arith.constant 0 : index
    %375 = vector.load %arg12[%374, %c0_98] : memref<80x128xf32, #tpu.memory_space<vmem>>, vector<8x128xf32>
    %376 = arith.truncf %371 : vector<8x32xf32> to vector<8x32xbf16>
    %cst_99 = arith.constant dense<0.000000e+00> : vector<8x128xf32>
    %377 = tpu.matmul %376, %273, %cst_99 {dimension_numbers = #tpu.dot_dimension_numbers<[1], [0], [0], [1], [0, 0, 1, 1], [], []>} : vector<8x32xbf16>, vector<32x128xbf16>, vector<8x128xf32> -> vector<8x128xf32>
    %378 = arith.addf %375, %377 : vector<8x128xf32>
    %379 = math.tanh %378 : vector<8x128xf32>
    %380 = arith.negf %378 : vector<8x128xf32>
    %381 = math.exp %380 : vector<8x128xf32>
    %cst_100 = arith.constant 1.000000e+00 : f32
    %382 = vector.broadcast %cst_100 : f32 to vector<8x128xf32>
    %383 = arith.addf %382, %381 : vector<8x128xf32>
    %384 = arith.divf %382, %383 : vector<8x128xf32>
    %385 = arith.select %5, %379, %384 : vector<8x128xi1>, vector<8x128xf32>
    %386 = vector.extract_strided_slice %385 {offsets = [0, 0], sizes = [8, 32], strides = [1, 1]} : vector<8x128xf32> to vector<8x32xf32>
    %387 = vector.extract_strided_slice %385 {offsets = [0, 32], sizes = [8, 32], strides = [1, 1]} : vector<8x128xf32> to vector<8x32xf32>
    %388 = vector.extract_strided_slice %385 {offsets = [0, 64], sizes = [8, 32], strides = [1, 1]} : vector<8x128xf32> to vector<8x32xf32>
    %389 = vector.extract_strided_slice %385 {offsets = [0, 96], sizes = [8, 32], strides = [1, 1]} : vector<8x128xf32> to vector<8x32xf32>
    %390 = arith.mulf %387, %369 : vector<8x32xf32>
    %391 = arith.mulf %386, %388 : vector<8x32xf32>
    %392 = arith.addf %390, %391 : vector<8x32xf32>
    %393 = math.tanh %392 : vector<8x32xf32>
    %394 = arith.mulf %389, %393 : vector<8x32xf32>
    %c5_i32_101 = arith.constant 5 : i32
    %c8_i32_102 = arith.constant 8 : i32
    %395 = arith.muli %c5_i32_101, %c8_i32_102 : i32
    %396 = tpu.assume_multiple %395, 8 : i32
    %397 = arith.index_cast %396 : i32 to index
    %c0_103 = arith.constant 0 : index
    %398 = vector.load %arg12[%397, %c0_103] : memref<80x128xf32, #tpu.memory_space<vmem>>, vector<8x128xf32>
    %399 = arith.truncf %394 : vector<8x32xf32> to vector<8x32xbf16>
    %cst_104 = arith.constant dense<0.000000e+00> : vector<8x128xf32>
    %400 = tpu.matmul %399, %273, %cst_104 {dimension_numbers = #tpu.dot_dimension_numbers<[1], [0], [0], [1], [0, 0, 1, 1], [], []>} : vector<8x32xbf16>, vector<32x128xbf16>, vector<8x128xf32> -> vector<8x128xf32>
    %401 = arith.addf %398, %400 : vector<8x128xf32>
    %402 = math.tanh %401 : vector<8x128xf32>
    %403 = arith.negf %401 : vector<8x128xf32>
    %404 = math.exp %403 : vector<8x128xf32>
    %cst_105 = arith.constant 1.000000e+00 : f32
    %405 = vector.broadcast %cst_105 : f32 to vector<8x128xf32>
    %406 = arith.addf %405, %404 : vector<8x128xf32>
    %407 = arith.divf %405, %406 : vector<8x128xf32>
    %408 = arith.select %5, %402, %407 : vector<8x128xi1>, vector<8x128xf32>
    %409 = vector.extract_strided_slice %408 {offsets = [0, 0], sizes = [8, 32], strides = [1, 1]} : vector<8x128xf32> to vector<8x32xf32>
    %410 = vector.extract_strided_slice %408 {offsets = [0, 32], sizes = [8, 32], strides = [1, 1]} : vector<8x128xf32> to vector<8x32xf32>
    %411 = vector.extract_strided_slice %408 {offsets = [0, 64], sizes = [8, 32], strides = [1, 1]} : vector<8x128xf32> to vector<8x32xf32>
    %412 = vector.extract_strided_slice %408 {offsets = [0, 96], sizes = [8, 32], strides = [1, 1]} : vector<8x128xf32> to vector<8x32xf32>
    %413 = arith.mulf %410, %392 : vector<8x32xf32>
    %414 = arith.mulf %409, %411 : vector<8x32xf32>
    %415 = arith.addf %413, %414 : vector<8x32xf32>
    %416 = math.tanh %415 : vector<8x32xf32>
    %417 = arith.mulf %412, %416 : vector<8x32xf32>
    %c6_i32_106 = arith.constant 6 : i32
    %c8_i32_107 = arith.constant 8 : i32
    %418 = arith.muli %c6_i32_106, %c8_i32_107 : i32
    %419 = tpu.assume_multiple %418, 8 : i32
    %420 = arith.index_cast %419 : i32 to index
    %c0_108 = arith.constant 0 : index
    %421 = vector.load %arg12[%420, %c0_108] : memref<80x128xf32, #tpu.memory_space<vmem>>, vector<8x128xf32>
    %422 = arith.truncf %417 : vector<8x32xf32> to vector<8x32xbf16>
    %cst_109 = arith.constant dense<0.000000e+00> : vector<8x128xf32>
    %423 = tpu.matmul %422, %273, %cst_109 {dimension_numbers = #tpu.dot_dimension_numbers<[1], [0], [0], [1], [0, 0, 1, 1], [], []>} : vector<8x32xbf16>, vector<32x128xbf16>, vector<8x128xf32> -> vector<8x128xf32>
    %424 = arith.addf %421, %423 : vector<8x128xf32>
    %425 = math.tanh %424 : vector<8x128xf32>
    %426 = arith.negf %424 : vector<8x128xf32>
    %427 = math.exp %426 : vector<8x128xf32>
    %cst_110 = arith.constant 1.000000e+00 : f32
    %428 = vector.broadcast %cst_110 : f32 to vector<8x128xf32>
    %429 = arith.addf %428, %427 : vector<8x128xf32>
    %430 = arith.divf %428, %429 : vector<8x128xf32>
    %431 = arith.select %5, %425, %430 : vector<8x128xi1>, vector<8x128xf32>
    %432 = vector.extract_strided_slice %431 {offsets = [0, 0], sizes = [8, 32], strides = [1, 1]} : vector<8x128xf32> to vector<8x32xf32>
    %433 = vector.extract_strided_slice %431 {offsets = [0, 32], sizes = [8, 32], strides = [1, 1]} : vector<8x128xf32> to vector<8x32xf32>
    %434 = vector.extract_strided_slice %431 {offsets = [0, 64], sizes = [8, 32], strides = [1, 1]} : vector<8x128xf32> to vector<8x32xf32>
    %435 = vector.extract_strided_slice %431 {offsets = [0, 96], sizes = [8, 32], strides = [1, 1]} : vector<8x128xf32> to vector<8x32xf32>
    %436 = arith.mulf %433, %415 : vector<8x32xf32>
    %437 = arith.mulf %432, %434 : vector<8x32xf32>
    %438 = arith.addf %436, %437 : vector<8x32xf32>
    %439 = math.tanh %438 : vector<8x32xf32>
    %440 = arith.mulf %435, %439 : vector<8x32xf32>
    %c7_i32_111 = arith.constant 7 : i32
    %c8_i32_112 = arith.constant 8 : i32
    %441 = arith.muli %c7_i32_111, %c8_i32_112 : i32
    %442 = tpu.assume_multiple %441, 8 : i32
    %443 = arith.index_cast %442 : i32 to index
    %c0_113 = arith.constant 0 : index
    %444 = vector.load %arg12[%443, %c0_113] : memref<80x128xf32, #tpu.memory_space<vmem>>, vector<8x128xf32>
    %445 = arith.truncf %440 : vector<8x32xf32> to vector<8x32xbf16>
    %cst_114 = arith.constant dense<0.000000e+00> : vector<8x128xf32>
    %446 = tpu.matmul %445, %273, %cst_114 {dimension_numbers = #tpu.dot_dimension_numbers<[1], [0], [0], [1], [0, 0, 1, 1], [], []>} : vector<8x32xbf16>, vector<32x128xbf16>, vector<8x128xf32> -> vector<8x128xf32>
    %447 = arith.addf %444, %446 : vector<8x128xf32>
    %448 = math.tanh %447 : vector<8x128xf32>
    %449 = arith.negf %447 : vector<8x128xf32>
    %450 = math.exp %449 : vector<8x128xf32>
    %cst_115 = arith.constant 1.000000e+00 : f32
    %451 = vector.broadcast %cst_115 : f32 to vector<8x128xf32>
    %452 = arith.addf %451, %450 : vector<8x128xf32>
    %453 = arith.divf %451, %452 : vector<8x128xf32>
    %454 = arith.select %5, %448, %453 : vector<8x128xi1>, vector<8x128xf32>
    %455 = vector.extract_strided_slice %454 {offsets = [0, 0], sizes = [8, 32], strides = [1, 1]} : vector<8x128xf32> to vector<8x32xf32>
    %456 = vector.extract_strided_slice %454 {offsets = [0, 32], sizes = [8, 32], strides = [1, 1]} : vector<8x128xf32> to vector<8x32xf32>
    %457 = vector.extract_strided_slice %454 {offsets = [0, 64], sizes = [8, 32], strides = [1, 1]} : vector<8x128xf32> to vector<8x32xf32>
    %458 = vector.extract_strided_slice %454 {offsets = [0, 96], sizes = [8, 32], strides = [1, 1]} : vector<8x128xf32> to vector<8x32xf32>
    %459 = arith.mulf %456, %438 : vector<8x32xf32>
    %460 = arith.mulf %455, %457 : vector<8x32xf32>
    %461 = arith.addf %459, %460 : vector<8x32xf32>
    %462 = math.tanh %461 : vector<8x32xf32>
    %463 = arith.mulf %458, %462 : vector<8x32xf32>
    %c8_i32_116 = arith.constant 8 : i32
    %c8_i32_117 = arith.constant 8 : i32
    %464 = arith.muli %c8_i32_116, %c8_i32_117 : i32
    %465 = tpu.assume_multiple %464, 8 : i32
    %466 = arith.index_cast %465 : i32 to index
    %c0_118 = arith.constant 0 : index
    %467 = vector.load %arg12[%466, %c0_118] : memref<80x128xf32, #tpu.memory_space<vmem>>, vector<8x128xf32>
    %468 = arith.truncf %463 : vector<8x32xf32> to vector<8x32xbf16>
    %cst_119 = arith.constant dense<0.000000e+00> : vector<8x128xf32>
    %469 = tpu.matmul %468, %273, %cst_119 {dimension_numbers = #tpu.dot_dimension_numbers<[1], [0], [0], [1], [0, 0, 1, 1], [], []>} : vector<8x32xbf16>, vector<32x128xbf16>, vector<8x128xf32> -> vector<8x128xf32>
    %470 = arith.addf %467, %469 : vector<8x128xf32>
    %471 = math.tanh %470 : vector<8x128xf32>
    %472 = arith.negf %470 : vector<8x128xf32>
    %473 = math.exp %472 : vector<8x128xf32>
    %cst_120 = arith.constant 1.000000e+00 : f32
    %474 = vector.broadcast %cst_120 : f32 to vector<8x128xf32>
    %475 = arith.addf %474, %473 : vector<8x128xf32>
    %476 = arith.divf %474, %475 : vector<8x128xf32>
    %477 = arith.select %5, %471, %476 : vector<8x128xi1>, vector<8x128xf32>
    %478 = vector.extract_strided_slice %477 {offsets = [0, 0], sizes = [8, 32], strides = [1, 1]} : vector<8x128xf32> to vector<8x32xf32>
    %479 = vector.extract_strided_slice %477 {offsets = [0, 32], sizes = [8, 32], strides = [1, 1]} : vector<8x128xf32> to vector<8x32xf32>
    %480 = vector.extract_strided_slice %477 {offsets = [0, 64], sizes = [8, 32], strides = [1, 1]} : vector<8x128xf32> to vector<8x32xf32>
    %481 = vector.extract_strided_slice %477 {offsets = [0, 96], sizes = [8, 32], strides = [1, 1]} : vector<8x128xf32> to vector<8x32xf32>
    %482 = arith.mulf %479, %461 : vector<8x32xf32>
    %483 = arith.mulf %478, %480 : vector<8x32xf32>
    %484 = arith.addf %482, %483 : vector<8x32xf32>
    %485 = math.tanh %484 : vector<8x32xf32>
    %486 = arith.mulf %481, %485 : vector<8x32xf32>
    %c9_i32_121 = arith.constant 9 : i32
    %c8_i32_122 = arith.constant 8 : i32
    %487 = arith.muli %c9_i32_121, %c8_i32_122 : i32
    %488 = tpu.assume_multiple %487, 8 : i32
    %489 = arith.index_cast %488 : i32 to index
    %c0_123 = arith.constant 0 : index
    %490 = vector.load %arg12[%489, %c0_123] : memref<80x128xf32, #tpu.memory_space<vmem>>, vector<8x128xf32>
    %491 = arith.truncf %486 : vector<8x32xf32> to vector<8x32xbf16>
    %cst_124 = arith.constant dense<0.000000e+00> : vector<8x128xf32>
    %492 = tpu.matmul %491, %273, %cst_124 {dimension_numbers = #tpu.dot_dimension_numbers<[1], [0], [0], [1], [0, 0, 1, 1], [], []>} : vector<8x32xbf16>, vector<32x128xbf16>, vector<8x128xf32> -> vector<8x128xf32>
    %493 = arith.addf %490, %492 : vector<8x128xf32>
    %494 = math.tanh %493 : vector<8x128xf32>
    %495 = arith.negf %493 : vector<8x128xf32>
    %496 = math.exp %495 : vector<8x128xf32>
    %cst_125 = arith.constant 1.000000e+00 : f32
    %497 = vector.broadcast %cst_125 : f32 to vector<8x128xf32>
    %498 = arith.addf %497, %496 : vector<8x128xf32>
    %499 = arith.divf %497, %498 : vector<8x128xf32>
    %500 = arith.select %5, %494, %499 : vector<8x128xi1>, vector<8x128xf32>
    %501 = vector.extract_strided_slice %500 {offsets = [0, 0], sizes = [8, 32], strides = [1, 1]} : vector<8x128xf32> to vector<8x32xf32>
    %502 = vector.extract_strided_slice %500 {offsets = [0, 32], sizes = [8, 32], strides = [1, 1]} : vector<8x128xf32> to vector<8x32xf32>
    %503 = vector.extract_strided_slice %500 {offsets = [0, 64], sizes = [8, 32], strides = [1, 1]} : vector<8x128xf32> to vector<8x32xf32>
    %504 = vector.extract_strided_slice %500 {offsets = [0, 96], sizes = [8, 32], strides = [1, 1]} : vector<8x128xf32> to vector<8x32xf32>
    %505 = arith.mulf %502, %484 : vector<8x32xf32>
    %506 = arith.mulf %501, %503 : vector<8x32xf32>
    %507 = arith.addf %505, %506 : vector<8x32xf32>
    %508 = math.tanh %507 : vector<8x32xf32>
    %509 = arith.mulf %504, %508 : vector<8x32xf32>
    %c10_i32_126 = arith.constant 10 : i32
    %c0_127 = arith.constant 0 : index
    %c0_128 = arith.constant 0 : index
    %510 = vector.load %arg1[%c0_127, %c0_128] : memref<64x32xbf16, #tpu.memory_space<vmem>>, vector<64x32xbf16>
    %c0_129 = arith.constant 0 : index
    %c0_130 = arith.constant 0 : index
    %c0_131 = arith.constant 0 : index
    %511 = vector.load %arg5[%c0_129, %c0_130, %c0_131] : memref<2x32x128xbf16, #tpu.memory_space<vmem>>, vector<1x32x128xbf16>
    %512 = vector.shape_cast %511 : vector<1x32x128xbf16> to vector<32x128xbf16>
    %c0_132 = arith.constant 0 : index
    %c0_133 = arith.constant 0 : index
    %c0_134 = arith.constant 0 : index
    %513 = vector.load %arg6[%c0_132, %c0_133, %c0_134] : memref<2x32x128xbf16, #tpu.memory_space<vmem>>, vector<1x32x128xbf16>
    %514 = vector.shape_cast %513 : vector<1x32x128xbf16> to vector<32x128xbf16>
    %c0_135 = arith.constant 0 : index
    %c0_136 = arith.constant 0 : index
    %c0_137 = arith.constant 0 : index
    %515 = vector.load %arg7[%c0_135, %c0_136, %c0_137] : memref<2x1x128xf32, #tpu.memory_space<vmem>>, vector<1x1x128xf32>
    %516 = vector.shape_cast %515 : vector<1x1x128xf32> to vector<1x128xf32>
    %cst_138 = arith.constant dense<0.000000e+00> : vector<64x128xf32>
    %517 = tpu.matmul %510, %512, %cst_138 {dimension_numbers = #tpu.dot_dimension_numbers<[1], [0], [0], [1], [0, 0, 1, 1], [], []>} : vector<64x32xbf16>, vector<32x128xbf16>, vector<64x128xf32> -> vector<64x128xf32>
    %518 = vector.broadcast %516 : vector<1x128xf32> to vector<64x128xf32>
    %519 = arith.addf %517, %518 : vector<64x128xf32>
    %c0_139 = arith.constant 0 : index
    %c0_140 = arith.constant 0 : index
    %520 = vector.load %arg12[%c0_139, %c0_140] : memref<80x128xf32, #tpu.memory_space<vmem>>, vector<64x128xf32>
    tpu.vector_store %arg12[%c0_139, %c0_140], %519 {strides = array<i32>} : memref<80x128xf32, #tpu.memory_space<vmem>>, vector<64x128xf32>,
    %c0_i32_141 = arith.constant 0 : i32
    %c8_i32_142 = arith.constant 8 : i32
    %521 = arith.muli %c0_i32_141, %c8_i32_142 : i32
    %522 = tpu.assume_multiple %521, 8 : i32
    %523 = arith.index_cast %522 : i32 to index
    %c0_143 = arith.constant 0 : index
    %524 = vector.load %arg12[%523, %c0_143] : memref<80x128xf32, #tpu.memory_space<vmem>>, vector<8x128xf32>
    %525 = arith.truncf %265 : vector<8x32xf32> to vector<8x32xbf16>
    %cst_144 = arith.constant dense<0.000000e+00> : vector<8x128xf32>
    %526 = tpu.matmul %525, %514, %cst_144 {dimension_numbers = #tpu.dot_dimension_numbers<[1], [0], [0], [1], [0, 0, 1, 1], [], []>} : vector<8x32xbf16>, vector<32x128xbf16>, vector<8x128xf32> -> vector<8x128xf32>
    %527 = arith.addf %524, %526 : vector<8x128xf32>
    %528 = math.tanh %527 : vector<8x128xf32>
    %529 = arith.negf %527 : vector<8x128xf32>
    %530 = math.exp %529 : vector<8x128xf32>
    %cst_145 = arith.constant 1.000000e+00 : f32
    %531 = vector.broadcast %cst_145 : f32 to vector<8x128xf32>
    %532 = arith.addf %531, %530 : vector<8x128xf32>
    %533 = arith.divf %531, %532 : vector<8x128xf32>
    %534 = arith.select %5, %528, %533 : vector<8x128xi1>, vector<8x128xf32>
    %535 = vector.extract_strided_slice %534 {offsets = [0, 0], sizes = [8, 32], strides = [1, 1]} : vector<8x128xf32> to vector<8x32xf32>
    %536 = vector.extract_strided_slice %534 {offsets = [0, 32], sizes = [8, 32], strides = [1, 1]} : vector<8x128xf32> to vector<8x32xf32>
    %537 = vector.extract_strided_slice %534 {offsets = [0, 64], sizes = [8, 32], strides = [1, 1]} : vector<8x128xf32> to vector<8x32xf32>
    %538 = vector.extract_strided_slice %534 {offsets = [0, 96], sizes = [8, 32], strides = [1, 1]} : vector<8x128xf32> to vector<8x32xf32>
    %539 = arith.mulf %536, %263 : vector<8x32xf32>
    %540 = arith.mulf %535, %537 : vector<8x32xf32>
    %541 = arith.addf %539, %540 : vector<8x32xf32>
    %542 = math.tanh %541 : vector<8x32xf32>
    %543 = arith.mulf %538, %542 : vector<8x32xf32>
    %544 = arith.index_cast %522 : i32 to index
    %c0_146 = arith.constant 0 : index
    %545 = vector.load %arg11[%544, %c0_146] : memref<80x32xf32, #tpu.memory_space<vmem>>, vector<8x32xf32>
    tpu.vector_store %arg11[%544, %c0_146], %543 {strides = array<i32>} : memref<80x32xf32, #tpu.memory_space<vmem>>, vector<8x32xf32>,
    %c1_i32_147 = arith.constant 1 : i32
    %c8_i32_148 = arith.constant 8 : i32
    %546 = arith.muli %c1_i32_147, %c8_i32_148 : i32
    %547 = tpu.assume_multiple %546, 8 : i32
    %548 = arith.index_cast %547 : i32 to index
    %c0_149 = arith.constant 0 : index
    %549 = vector.load %arg12[%548, %c0_149] : memref<80x128xf32, #tpu.memory_space<vmem>>, vector<8x128xf32>
    %550 = arith.truncf %543 : vector<8x32xf32> to vector<8x32xbf16>
    %cst_150 = arith.constant dense<0.000000e+00> : vector<8x128xf32>
    %551 = tpu.matmul %550, %514, %cst_150 {dimension_numbers = #tpu.dot_dimension_numbers<[1], [0], [0], [1], [0, 0, 1, 1], [], []>} : vector<8x32xbf16>, vector<32x128xbf16>, vector<8x128xf32> -> vector<8x128xf32>
    %552 = arith.addf %549, %551 : vector<8x128xf32>
    %553 = math.tanh %552 : vector<8x128xf32>
    %554 = arith.negf %552 : vector<8x128xf32>
    %555 = math.exp %554 : vector<8x128xf32>
    %cst_151 = arith.constant 1.000000e+00 : f32
    %556 = vector.broadcast %cst_151 : f32 to vector<8x128xf32>
    %557 = arith.addf %556, %555 : vector<8x128xf32>
    %558 = arith.divf %556, %557 : vector<8x128xf32>
    %559 = arith.select %5, %553, %558 : vector<8x128xi1>, vector<8x128xf32>
    %560 = vector.extract_strided_slice %559 {offsets = [0, 0], sizes = [8, 32], strides = [1, 1]} : vector<8x128xf32> to vector<8x32xf32>
    %561 = vector.extract_strided_slice %559 {offsets = [0, 32], sizes = [8, 32], strides = [1, 1]} : vector<8x128xf32> to vector<8x32xf32>
    %562 = vector.extract_strided_slice %559 {offsets = [0, 64], sizes = [8, 32], strides = [1, 1]} : vector<8x128xf32> to vector<8x32xf32>
    %563 = vector.extract_strided_slice %559 {offsets = [0, 96], sizes = [8, 32], strides = [1, 1]} : vector<8x128xf32> to vector<8x32xf32>
    %564 = arith.mulf %561, %541 : vector<8x32xf32>
    %565 = arith.mulf %560, %562 : vector<8x32xf32>
    %566 = arith.addf %564, %565 : vector<8x32xf32>
    %567 = math.tanh %566 : vector<8x32xf32>
    %568 = arith.mulf %563, %567 : vector<8x32xf32>
    %569 = arith.index_cast %547 : i32 to index
    %c0_152 = arith.constant 0 : index
    %570 = vector.load %arg11[%569, %c0_152] : memref<80x32xf32, #tpu.memory_space<vmem>>, vector<8x32xf32>
    tpu.vector_store %arg11[%569, %c0_152], %568 {strides = array<i32>} : memref<80x32xf32, #tpu.memory_space<vmem>>, vector<8x32xf32>,
    %c2_i32_153 = arith.constant 2 : i32
    %c8_i32_154 = arith.constant 8 : i32
    %571 = arith.muli %c2_i32_153, %c8_i32_154 : i32
    %572 = tpu.assume_multiple %571, 8 : i32
    %573 = arith.index_cast %572 : i32 to index
    %c0_155 = arith.constant 0 : index
    %574 = vector.load %arg12[%573, %c0_155] : memref<80x128xf32, #tpu.memory_space<vmem>>, vector<8x128xf32>
    %575 = arith.truncf %568 : vector<8x32xf32> to vector<8x32xbf16>
    %cst_156 = arith.constant dense<0.000000e+00> : vector<8x128xf32>
    %576 = tpu.matmul %575, %514, %cst_156 {dimension_numbers = #tpu.dot_dimension_numbers<[1], [0], [0], [1], [0, 0, 1, 1], [], []>} : vector<8x32xbf16>, vector<32x128xbf16>, vector<8x128xf32> -> vector<8x128xf32>
    %577 = arith.addf %574, %576 : vector<8x128xf32>
    %578 = math.tanh %577 : vector<8x128xf32>
    %579 = arith.negf %577 : vector<8x128xf32>
    %580 = math.exp %579 : vector<8x128xf32>
    %cst_157 = arith.constant 1.000000e+00 : f32
    %581 = vector.broadcast %cst_157 : f32 to vector<8x128xf32>
    %582 = arith.addf %581, %580 : vector<8x128xf32>
    %583 = arith.divf %581, %582 : vector<8x128xf32>
    %584 = arith.select %5, %578, %583 : vector<8x128xi1>, vector<8x128xf32>
    %585 = vector.extract_strided_slice %584 {offsets = [0, 0], sizes = [8, 32], strides = [1, 1]} : vector<8x128xf32> to vector<8x32xf32>
    %586 = vector.extract_strided_slice %584 {offsets = [0, 32], sizes = [8, 32], strides = [1, 1]} : vector<8x128xf32> to vector<8x32xf32>
    %587 = vector.extract_strided_slice %584 {offsets = [0, 64], sizes = [8, 32], strides = [1, 1]} : vector<8x128xf32> to vector<8x32xf32>
    %588 = vector.extract_strided_slice %584 {offsets = [0, 96], sizes = [8, 32], strides = [1, 1]} : vector<8x128xf32> to vector<8x32xf32>
    %589 = arith.mulf %586, %566 : vector<8x32xf32>
    %590 = arith.mulf %585, %587 : vector<8x32xf32>
    %591 = arith.addf %589, %590 : vector<8x32xf32>
    %592 = math.tanh %591 : vector<8x32xf32>
    %593 = arith.mulf %588, %592 : vector<8x32xf32>
    %594 = arith.index_cast %572 : i32 to index
    %c0_158 = arith.constant 0 : index
    %595 = vector.load %arg11[%594, %c0_158] : memref<80x32xf32, #tpu.memory_space<vmem>>, vector<8x32xf32>
    tpu.vector_store %arg11[%594, %c0_158], %593 {strides = array<i32>} : memref<80x32xf32, #tpu.memory_space<vmem>>, vector<8x32xf32>,
    %c3_i32_159 = arith.constant 3 : i32
    %c8_i32_160 = arith.constant 8 : i32
    %596 = arith.muli %c3_i32_159, %c8_i32_160 : i32
    %597 = tpu.assume_multiple %596, 8 : i32
    %598 = arith.index_cast %597 : i32 to index
    %c0_161 = arith.constant 0 : index
    %599 = vector.load %arg12[%598, %c0_161] : memref<80x128xf32, #tpu.memory_space<vmem>>, vector<8x128xf32>
    %600 = arith.truncf %593 : vector<8x32xf32> to vector<8x32xbf16>
    %cst_162 = arith.constant dense<0.000000e+00> : vector<8x128xf32>
    %601 = tpu.matmul %600, %514, %cst_162 {dimension_numbers = #tpu.dot_dimension_numbers<[1], [0], [0], [1], [0, 0, 1, 1], [], []>} : vector<8x32xbf16>, vector<32x128xbf16>, vector<8x128xf32> -> vector<8x128xf32>
    %602 = arith.addf %599, %601 : vector<8x128xf32>
    %603 = math.tanh %602 : vector<8x128xf32>
    %604 = arith.negf %602 : vector<8x128xf32>
    %605 = math.exp %604 : vector<8x128xf32>
    %cst_163 = arith.constant 1.000000e+00 : f32
    %606 = vector.broadcast %cst_163 : f32 to vector<8x128xf32>
    %607 = arith.addf %606, %605 : vector<8x128xf32>
    %608 = arith.divf %606, %607 : vector<8x128xf32>
    %609 = arith.select %5, %603, %608 : vector<8x128xi1>, vector<8x128xf32>
    %610 = vector.extract_strided_slice %609 {offsets = [0, 0], sizes = [8, 32], strides = [1, 1]} : vector<8x128xf32> to vector<8x32xf32>
    %611 = vector.extract_strided_slice %609 {offsets = [0, 32], sizes = [8, 32], strides = [1, 1]} : vector<8x128xf32> to vector<8x32xf32>
    %612 = vector.extract_strided_slice %609 {offsets = [0, 64], sizes = [8, 32], strides = [1, 1]} : vector<8x128xf32> to vector<8x32xf32>
    %613 = vector.extract_strided_slice %609 {offsets = [0, 96], sizes = [8, 32], strides = [1, 1]} : vector<8x128xf32> to vector<8x32xf32>
    %614 = arith.mulf %611, %591 : vector<8x32xf32>
    %615 = arith.mulf %610, %612 : vector<8x32xf32>
    %616 = arith.addf %614, %615 : vector<8x32xf32>
    %617 = math.tanh %616 : vector<8x32xf32>
    %618 = arith.mulf %613, %617 : vector<8x32xf32>
    %619 = arith.index_cast %597 : i32 to index
    %c0_164 = arith.constant 0 : index
    %620 = vector.load %arg11[%619, %c0_164] : memref<80x32xf32, #tpu.memory_space<vmem>>, vector<8x32xf32>
    tpu.vector_store %arg11[%619, %c0_164], %618 {strides = array<i32>} : memref<80x32xf32, #tpu.memory_space<vmem>>, vector<8x32xf32>,
    %c4_i32_165 = arith.constant 4 : i32
    %c8_i32_166 = arith.constant 8 : i32
    %621 = arith.muli %c4_i32_165, %c8_i32_166 : i32
    %622 = tpu.assume_multiple %621, 8 : i32
    %623 = arith.index_cast %622 : i32 to index
    %c0_167 = arith.constant 0 : index
    %624 = vector.load %arg12[%623, %c0_167] : memref<80x128xf32, #tpu.memory_space<vmem>>, vector<8x128xf32>
    %625 = arith.truncf %618 : vector<8x32xf32> to vector<8x32xbf16>
    %cst_168 = arith.constant dense<0.000000e+00> : vector<8x128xf32>
    %626 = tpu.matmul %625, %514, %cst_168 {dimension_numbers = #tpu.dot_dimension_numbers<[1], [0], [0], [1], [0, 0, 1, 1], [], []>} : vector<8x32xbf16>, vector<32x128xbf16>, vector<8x128xf32> -> vector<8x128xf32>
    %627 = arith.addf %624, %626 : vector<8x128xf32>
    %628 = math.tanh %627 : vector<8x128xf32>
    %629 = arith.negf %627 : vector<8x128xf32>
    %630 = math.exp %629 : vector<8x128xf32>
    %cst_169 = arith.constant 1.000000e+00 : f32
    %631 = vector.broadcast %cst_169 : f32 to vector<8x128xf32>
    %632 = arith.addf %631, %630 : vector<8x128xf32>
    %633 = arith.divf %631, %632 : vector<8x128xf32>
    %634 = arith.select %5, %628, %633 : vector<8x128xi1>, vector<8x128xf32>
    %635 = vector.extract_strided_slice %634 {offsets = [0, 0], sizes = [8, 32], strides = [1, 1]} : vector<8x128xf32> to vector<8x32xf32>
    %636 = vector.extract_strided_slice %634 {offsets = [0, 32], sizes = [8, 32], strides = [1, 1]} : vector<8x128xf32> to vector<8x32xf32>
    %637 = vector.extract_strided_slice %634 {offsets = [0, 64], sizes = [8, 32], strides = [1, 1]} : vector<8x128xf32> to vector<8x32xf32>
    %638 = vector.extract_strided_slice %634 {offsets = [0, 96], sizes = [8, 32], strides = [1, 1]} : vector<8x128xf32> to vector<8x32xf32>
    %639 = arith.mulf %636, %616 : vector<8x32xf32>
    %640 = arith.mulf %635, %637 : vector<8x32xf32>
    %641 = arith.addf %639, %640 : vector<8x32xf32>
    %642 = math.tanh %641 : vector<8x32xf32>
    %643 = arith.mulf %638, %642 : vector<8x32xf32>
    %644 = arith.index_cast %622 : i32 to index
    %c0_170 = arith.constant 0 : index
    %645 = vector.load %arg11[%644, %c0_170] : memref<80x32xf32, #tpu.memory_space<vmem>>, vector<8x32xf32>
    tpu.vector_store %arg11[%644, %c0_170], %643 {strides = array<i32>} : memref<80x32xf32, #tpu.memory_space<vmem>>, vector<8x32xf32>,
    %c5_i32_171 = arith.constant 5 : i32
    %c8_i32_172 = arith.constant 8 : i32
    %646 = arith.muli %c5_i32_171, %c8_i32_172 : i32
    %647 = tpu.assume_multiple %646, 8 : i32
    %648 = arith.index_cast %647 : i32 to index
    %c0_173 = arith.constant 0 : index
    %649 = vector.load %arg12[%648, %c0_173] : memref<80x128xf32, #tpu.memory_space<vmem>>, vector<8x128xf32>
    %650 = arith.truncf %643 : vector<8x32xf32> to vector<8x32xbf16>
    %cst_174 = arith.constant dense<0.000000e+00> : vector<8x128xf32>
    %651 = tpu.matmul %650, %514, %cst_174 {dimension_numbers = #tpu.dot_dimension_numbers<[1], [0], [0], [1], [0, 0, 1, 1], [], []>} : vector<8x32xbf16>, vector<32x128xbf16>, vector<8x128xf32> -> vector<8x128xf32>
    %652 = arith.addf %649, %651 : vector<8x128xf32>
    %653 = math.tanh %652 : vector<8x128xf32>
    %654 = arith.negf %652 : vector<8x128xf32>
    %655 = math.exp %654 : vector<8x128xf32>
    %cst_175 = arith.constant 1.000000e+00 : f32
    %656 = vector.broadcast %cst_175 : f32 to vector<8x128xf32>
    %657 = arith.addf %656, %655 : vector<8x128xf32>
    %658 = arith.divf %656, %657 : vector<8x128xf32>
    %659 = arith.select %5, %653, %658 : vector<8x128xi1>, vector<8x128xf32>
    %660 = vector.extract_strided_slice %659 {offsets = [0, 0], sizes = [8, 32], strides = [1, 1]} : vector<8x128xf32> to vector<8x32xf32>
    %661 = vector.extract_strided_slice %659 {offsets = [0, 32], sizes = [8, 32], strides = [1, 1]} : vector<8x128xf32> to vector<8x32xf32>
    %662 = vector.extract_strided_slice %659 {offsets = [0, 64], sizes = [8, 32], strides = [1, 1]} : vector<8x128xf32> to vector<8x32xf32>
    %663 = vector.extract_strided_slice %659 {offsets = [0, 96], sizes = [8, 32], strides = [1, 1]} : vector<8x128xf32> to vector<8x32xf32>
    %664 = arith.mulf %661, %641 : vector<8x32xf32>
    %665 = arith.mulf %660, %662 : vector<8x32xf32>
    %666 = arith.addf %664, %665 : vector<8x32xf32>
    %667 = math.tanh %666 : vector<8x32xf32>
    %668 = arith.mulf %663, %667 : vector<8x32xf32>
    %669 = arith.index_cast %647 : i32 to index
    %c0_176 = arith.constant 0 : index
    %670 = vector.load %arg11[%669, %c0_176] : memref<80x32xf32, #tpu.memory_space<vmem>>, vector<8x32xf32>
    tpu.vector_store %arg11[%669, %c0_176], %668 {strides = array<i32>} : memref<80x32xf32, #tpu.memory_space<vmem>>, vector<8x32xf32>,
    %c6_i32_177 = arith.constant 6 : i32
    %c8_i32_178 = arith.constant 8 : i32
    %671 = arith.muli %c6_i32_177, %c8_i32_178 : i32
    %672 = tpu.assume_multiple %671, 8 : i32
    %673 = arith.index_cast %672 : i32 to index
    %c0_179 = arith.constant 0 : index
    %674 = vector.load %arg12[%673, %c0_179] : memref<80x128xf32, #tpu.memory_space<vmem>>, vector<8x128xf32>
    %675 = arith.truncf %668 : vector<8x32xf32> to vector<8x32xbf16>
    %cst_180 = arith.constant dense<0.000000e+00> : vector<8x128xf32>
    %676 = tpu.matmul %675, %514, %cst_180 {dimension_numbers = #tpu.dot_dimension_numbers<[1], [0], [0], [1], [0, 0, 1, 1], [], []>} : vector<8x32xbf16>, vector<32x128xbf16>, vector<8x128xf32> -> vector<8x128xf32>
    %677 = arith.addf %674, %676 : vector<8x128xf32>
    %678 = math.tanh %677 : vector<8x128xf32>
    %679 = arith.negf %677 : vector<8x128xf32>
    %680 = math.exp %679 : vector<8x128xf32>
    %cst_181 = arith.constant 1.000000e+00 : f32
    %681 = vector.broadcast %cst_181 : f32 to vector<8x128xf32>
    %682 = arith.addf %681, %680 : vector<8x128xf32>
    %683 = arith.divf %681, %682 : vector<8x128xf32>
    %684 = arith.select %5, %678, %683 : vector<8x128xi1>, vector<8x128xf32>
    %685 = vector.extract_strided_slice %684 {offsets = [0, 0], sizes = [8, 32], strides = [1, 1]} : vector<8x128xf32> to vector<8x32xf32>
    %686 = vector.extract_strided_slice %684 {offsets = [0, 32], sizes = [8, 32], strides = [1, 1]} : vector<8x128xf32> to vector<8x32xf32>
    %687 = vector.extract_strided_slice %684 {offsets = [0, 64], sizes = [8, 32], strides = [1, 1]} : vector<8x128xf32> to vector<8x32xf32>
    %688 = vector.extract_strided_slice %684 {offsets = [0, 96], sizes = [8, 32], strides = [1, 1]} : vector<8x128xf32> to vector<8x32xf32>
    %689 = arith.mulf %686, %666 : vector<8x32xf32>
    %690 = arith.mulf %685, %687 : vector<8x32xf32>
    %691 = arith.addf %689, %690 : vector<8x32xf32>
    %692 = math.tanh %691 : vector<8x32xf32>
    %693 = arith.mulf %688, %692 : vector<8x32xf32>
    %694 = arith.index_cast %672 : i32 to index
    %c0_182 = arith.constant 0 : index
    %695 = vector.load %arg11[%694, %c0_182] : memref<80x32xf32, #tpu.memory_space<vmem>>, vector<8x32xf32>
    tpu.vector_store %arg11[%694, %c0_182], %693 {strides = array<i32>} : memref<80x32xf32, #tpu.memory_space<vmem>>, vector<8x32xf32>,
    %c7_i32_183 = arith.constant 7 : i32
    %c8_i32_184 = arith.constant 8 : i32
    %696 = arith.muli %c7_i32_183, %c8_i32_184 : i32
    %697 = tpu.assume_multiple %696, 8 : i32
    %698 = arith.index_cast %697 : i32 to index
    %c0_185 = arith.constant 0 : index
    %699 = vector.load %arg12[%698, %c0_185] : memref<80x128xf32, #tpu.memory_space<vmem>>, vector<8x128xf32>
    %700 = arith.truncf %693 : vector<8x32xf32> to vector<8x32xbf16>
    %cst_186 = arith.constant dense<0.000000e+00> : vector<8x128xf32>
    %701 = tpu.matmul %700, %514, %cst_186 {dimension_numbers = #tpu.dot_dimension_numbers<[1], [0], [0], [1], [0, 0, 1, 1], [], []>} : vector<8x32xbf16>, vector<32x128xbf16>, vector<8x128xf32> -> vector<8x128xf32>
    %702 = arith.addf %699, %701 : vector<8x128xf32>
    %703 = math.tanh %702 : vector<8x128xf32>
    %704 = arith.negf %702 : vector<8x128xf32>
    %705 = math.exp %704 : vector<8x128xf32>
    %cst_187 = arith.constant 1.000000e+00 : f32
    %706 = vector.broadcast %cst_187 : f32 to vector<8x128xf32>
    %707 = arith.addf %706, %705 : vector<8x128xf32>
    %708 = arith.divf %706, %707 : vector<8x128xf32>
    %709 = arith.select %5, %703, %708 : vector<8x128xi1>, vector<8x128xf32>
    %710 = vector.extract_strided_slice %709 {offsets = [0, 0], sizes = [8, 32], strides = [1, 1]} : vector<8x128xf32> to vector<8x32xf32>
    %711 = vector.extract_strided_slice %709 {offsets = [0, 32], sizes = [8, 32], strides = [1, 1]} : vector<8x128xf32> to vector<8x32xf32>
    %712 = vector.extract_strided_slice %709 {offsets = [0, 64], sizes = [8, 32], strides = [1, 1]} : vector<8x128xf32> to vector<8x32xf32>
    %713 = vector.extract_strided_slice %709 {offsets = [0, 96], sizes = [8, 32], strides = [1, 1]} : vector<8x128xf32> to vector<8x32xf32>
    %714 = arith.mulf %711, %691 : vector<8x32xf32>
    %715 = arith.mulf %710, %712 : vector<8x32xf32>
    %716 = arith.addf %714, %715 : vector<8x32xf32>
    %717 = math.tanh %716 : vector<8x32xf32>
    %718 = arith.mulf %713, %717 : vector<8x32xf32>
    %719 = arith.index_cast %697 : i32 to index
    %c0_188 = arith.constant 0 : index
    %720 = vector.load %arg11[%719, %c0_188] : memref<80x32xf32, #tpu.memory_space<vmem>>, vector<8x32xf32>
    tpu.vector_store %arg11[%719, %c0_188], %718 {strides = array<i32>} : memref<80x32xf32, #tpu.memory_space<vmem>>, vector<8x32xf32>,
    %c8_i32_189 = arith.constant 8 : i32
    %c0_190 = arith.constant 0 : index
    %c0_191 = arith.constant 0 : index
    %721 = vector.load %arg11[%c0_190, %c0_191] : memref<80x32xf32, #tpu.memory_space<vmem>>, vector<64x32xf32>
    %722 = arith.truncf %721 : vector<64x32xf32> to vector<64x32xbf16>
    %c1_192 = arith.constant 1 : index
    %c0_193 = arith.constant 0 : index
    %c0_194 = arith.constant 0 : index
    %723 = vector.load %arg5[%c1_192, %c0_193, %c0_194] : memref<2x32x128xbf16, #tpu.memory_space<vmem>>, vector<1x32x128xbf16>
    %724 = vector.shape_cast %723 : vector<1x32x128xbf16> to vector<32x128xbf16>
    %c1_195 = arith.constant 1 : index
    %c0_196 = arith.constant 0 : index
    %c0_197 = arith.constant 0 : index
    %725 = vector.load %arg6[%c1_195, %c0_196, %c0_197] : memref<2x32x128xbf16, #tpu.memory_space<vmem>>, vector<1x32x128xbf16>
    %726 = vector.shape_cast %725 : vector<1x32x128xbf16> to vector<32x128xbf16>
    %c1_198 = arith.constant 1 : index
    %c0_199 = arith.constant 0 : index
    %c0_200 = arith.constant 0 : index
    %727 = vector.load %arg7[%c1_198, %c0_199, %c0_200] : memref<2x1x128xf32, #tpu.memory_space<vmem>>, vector<1x1x128xf32>
    %728 = vector.shape_cast %727 : vector<1x1x128xf32> to vector<1x128xf32>
    %cst_201 = arith.constant dense<0.000000e+00> : vector<64x128xf32>
    %729 = tpu.matmul %722, %724, %cst_201 {dimension_numbers = #tpu.dot_dimension_numbers<[1], [0], [0], [1], [0, 0, 1, 1], [], []>} : vector<64x32xbf16>, vector<32x128xbf16>, vector<64x128xf32> -> vector<64x128xf32>
    %730 = vector.broadcast %728 : vector<1x128xf32> to vector<64x128xf32>
    %731 = arith.addf %729, %730 : vector<64x128xf32>
    %c0_202 = arith.constant 0 : index
    %c0_203 = arith.constant 0 : index
    %732 = vector.load %arg12[%c0_202, %c0_203] : memref<80x128xf32, #tpu.memory_space<vmem>>, vector<64x128xf32>
    tpu.vector_store %arg12[%c0_202, %c0_203], %731 {strides = array<i32>} : memref<80x128xf32, #tpu.memory_space<vmem>>, vector<64x128xf32>,
    %c0_i32_204 = arith.constant 0 : i32
    %c8_i32_205 = arith.constant 8 : i32
    %733 = arith.muli %c0_i32_204, %c8_i32_205 : i32
    %734 = tpu.assume_multiple %733, 8 : i32
    %735 = arith.index_cast %734 : i32 to index
    %c0_206 = arith.constant 0 : index
    %736 = vector.load %arg12[%735, %c0_206] : memref<80x128xf32, #tpu.memory_space<vmem>>, vector<8x128xf32>
    %737 = arith.truncf %509 : vector<8x32xf32> to vector<8x32xbf16>
    %cst_207 = arith.constant dense<0.000000e+00> : vector<8x128xf32>
    %738 = tpu.matmul %737, %726, %cst_207 {dimension_numbers = #tpu.dot_dimension_numbers<[1], [0], [0], [1], [0, 0, 1, 1], [], []>} : vector<8x32xbf16>, vector<32x128xbf16>, vector<8x128xf32> -> vector<8x128xf32>
    %739 = arith.addf %736, %738 : vector<8x128xf32>
    %740 = math.tanh %739 : vector<8x128xf32>
    %741 = arith.negf %739 : vector<8x128xf32>
    %742 = math.exp %741 : vector<8x128xf32>
    %cst_208 = arith.constant 1.000000e+00 : f32
    %743 = vector.broadcast %cst_208 : f32 to vector<8x128xf32>
    %744 = arith.addf %743, %742 : vector<8x128xf32>
    %745 = arith.divf %743, %744 : vector<8x128xf32>
    %746 = arith.select %5, %740, %745 : vector<8x128xi1>, vector<8x128xf32>
    %747 = vector.extract_strided_slice %746 {offsets = [0, 0], sizes = [8, 32], strides = [1, 1]} : vector<8x128xf32> to vector<8x32xf32>
    %748 = vector.extract_strided_slice %746 {offsets = [0, 32], sizes = [8, 32], strides = [1, 1]} : vector<8x128xf32> to vector<8x32xf32>
    %749 = vector.extract_strided_slice %746 {offsets = [0, 64], sizes = [8, 32], strides = [1, 1]} : vector<8x128xf32> to vector<8x32xf32>
    %750 = vector.extract_strided_slice %746 {offsets = [0, 96], sizes = [8, 32], strides = [1, 1]} : vector<8x128xf32> to vector<8x32xf32>
    %751 = arith.mulf %748, %507 : vector<8x32xf32>
    %752 = arith.mulf %747, %749 : vector<8x32xf32>
    %753 = arith.addf %751, %752 : vector<8x32xf32>
    %754 = math.tanh %753 : vector<8x32xf32>
    %755 = arith.mulf %750, %754 : vector<8x32xf32>
    %756 = arith.index_cast %734 : i32 to index
    %c0_209 = arith.constant 0 : index
    %757 = vector.load %arg11[%756, %c0_209] : memref<80x32xf32, #tpu.memory_space<vmem>>, vector<8x32xf32>
    tpu.vector_store %arg11[%756, %c0_209], %755 {strides = array<i32>} : memref<80x32xf32, #tpu.memory_space<vmem>>, vector<8x32xf32>,
    %c1_i32_210 = arith.constant 1 : i32
    %c8_i32_211 = arith.constant 8 : i32
    %758 = arith.muli %c1_i32_210, %c8_i32_211 : i32
    %759 = tpu.assume_multiple %758, 8 : i32
    %760 = arith.index_cast %759 : i32 to index
    %c0_212 = arith.constant 0 : index
    %761 = vector.load %arg12[%760, %c0_212] : memref<80x128xf32, #tpu.memory_space<vmem>>, vector<8x128xf32>
    %762 = arith.truncf %755 : vector<8x32xf32> to vector<8x32xbf16>
    %cst_213 = arith.constant dense<0.000000e+00> : vector<8x128xf32>
    %763 = tpu.matmul %762, %726, %cst_213 {dimension_numbers = #tpu.dot_dimension_numbers<[1], [0], [0], [1], [0, 0, 1, 1], [], []>} : vector<8x32xbf16>, vector<32x128xbf16>, vector<8x128xf32> -> vector<8x128xf32>
    %764 = arith.addf %761, %763 : vector<8x128xf32>
    %765 = math.tanh %764 : vector<8x128xf32>
    %766 = arith.negf %764 : vector<8x128xf32>
    %767 = math.exp %766 : vector<8x128xf32>
    %cst_214 = arith.constant 1.000000e+00 : f32
    %768 = vector.broadcast %cst_214 : f32 to vector<8x128xf32>
    %769 = arith.addf %768, %767 : vector<8x128xf32>
    %770 = arith.divf %768, %769 : vector<8x128xf32>
    %771 = arith.select %5, %765, %770 : vector<8x128xi1>, vector<8x128xf32>
    %772 = vector.extract_strided_slice %771 {offsets = [0, 0], sizes = [8, 32], strides = [1, 1]} : vector<8x128xf32> to vector<8x32xf32>
    %773 = vector.extract_strided_slice %771 {offsets = [0, 32], sizes = [8, 32], strides = [1, 1]} : vector<8x128xf32> to vector<8x32xf32>
    %774 = vector.extract_strided_slice %771 {offsets = [0, 64], sizes = [8, 32], strides = [1, 1]} : vector<8x128xf32> to vector<8x32xf32>
    %775 = vector.extract_strided_slice %771 {offsets = [0, 96], sizes = [8, 32], strides = [1, 1]} : vector<8x128xf32> to vector<8x32xf32>
    %776 = arith.mulf %773, %753 : vector<8x32xf32>
    %777 = arith.mulf %772, %774 : vector<8x32xf32>
    %778 = arith.addf %776, %777 : vector<8x32xf32>
    %779 = math.tanh %778 : vector<8x32xf32>
    %780 = arith.mulf %775, %779 : vector<8x32xf32>
    %781 = arith.index_cast %759 : i32 to index
    %c0_215 = arith.constant 0 : index
    %782 = vector.load %arg11[%781, %c0_215] : memref<80x32xf32, #tpu.memory_space<vmem>>, vector<8x32xf32>
    tpu.vector_store %arg11[%781, %c0_215], %780 {strides = array<i32>} : memref<80x32xf32, #tpu.memory_space<vmem>>, vector<8x32xf32>,
    %c2_i32_216 = arith.constant 2 : i32
    %c8_i32_217 = arith.constant 8 : i32
    %783 = arith.muli %c2_i32_216, %c8_i32_217 : i32
    %784 = tpu.assume_multiple %783, 8 : i32
    %785 = arith.index_cast %784 : i32 to index
    %c0_218 = arith.constant 0 : index
    %786 = vector.load %arg12[%785, %c0_218] : memref<80x128xf32, #tpu.memory_space<vmem>>, vector<8x128xf32>
    %787 = arith.truncf %780 : vector<8x32xf32> to vector<8x32xbf16>
    %cst_219 = arith.constant dense<0.000000e+00> : vector<8x128xf32>
    %788 = tpu.matmul %787, %726, %cst_219 {dimension_numbers = #tpu.dot_dimension_numbers<[1], [0], [0], [1], [0, 0, 1, 1], [], []>} : vector<8x32xbf16>, vector<32x128xbf16>, vector<8x128xf32> -> vector<8x128xf32>
    %789 = arith.addf %786, %788 : vector<8x128xf32>
    %790 = math.tanh %789 : vector<8x128xf32>
    %791 = arith.negf %789 : vector<8x128xf32>
    %792 = math.exp %791 : vector<8x128xf32>
    %cst_220 = arith.constant 1.000000e+00 : f32
    %793 = vector.broadcast %cst_220 : f32 to vector<8x128xf32>
    %794 = arith.addf %793, %792 : vector<8x128xf32>
    %795 = arith.divf %793, %794 : vector<8x128xf32>
    %796 = arith.select %5, %790, %795 : vector<8x128xi1>, vector<8x128xf32>
    %797 = vector.extract_strided_slice %796 {offsets = [0, 0], sizes = [8, 32], strides = [1, 1]} : vector<8x128xf32> to vector<8x32xf32>
    %798 = vector.extract_strided_slice %796 {offsets = [0, 32], sizes = [8, 32], strides = [1, 1]} : vector<8x128xf32> to vector<8x32xf32>
    %799 = vector.extract_strided_slice %796 {offsets = [0, 64], sizes = [8, 32], strides = [1, 1]} : vector<8x128xf32> to vector<8x32xf32>
    %800 = vector.extract_strided_slice %796 {offsets = [0, 96], sizes = [8, 32], strides = [1, 1]} : vector<8x128xf32> to vector<8x32xf32>
    %801 = arith.mulf %798, %778 : vector<8x32xf32>
    %802 = arith.mulf %797, %799 : vector<8x32xf32>
    %803 = arith.addf %801, %802 : vector<8x32xf32>
    %804 = math.tanh %803 : vector<8x32xf32>
    %805 = arith.mulf %800, %804 : vector<8x32xf32>
    %806 = arith.index_cast %784 : i32 to index
    %c0_221 = arith.constant 0 : index
    %807 = vector.load %arg11[%806, %c0_221] : memref<80x32xf32, #tpu.memory_space<vmem>>, vector<8x32xf32>
    tpu.vector_store %arg11[%806, %c0_221], %805 {strides = array<i32>} : memref<80x32xf32, #tpu.memory_space<vmem>>, vector<8x32xf32>,
    %c3_i32_222 = arith.constant 3 : i32
    %c8_i32_223 = arith.constant 8 : i32
    %808 = arith.muli %c3_i32_222, %c8_i32_223 : i32
    %809 = tpu.assume_multiple %808, 8 : i32
    %810 = arith.index_cast %809 : i32 to index
    %c0_224 = arith.constant 0 : index
    %811 = vector.load %arg12[%810, %c0_224] : memref<80x128xf32, #tpu.memory_space<vmem>>, vector<8x128xf32>
    %812 = arith.truncf %805 : vector<8x32xf32> to vector<8x32xbf16>
    %cst_225 = arith.constant dense<0.000000e+00> : vector<8x128xf32>
    %813 = tpu.matmul %812, %726, %cst_225 {dimension_numbers = #tpu.dot_dimension_numbers<[1], [0], [0], [1], [0, 0, 1, 1], [], []>} : vector<8x32xbf16>, vector<32x128xbf16>, vector<8x128xf32> -> vector<8x128xf32>
    %814 = arith.addf %811, %813 : vector<8x128xf32>
    %815 = math.tanh %814 : vector<8x128xf32>
    %816 = arith.negf %814 : vector<8x128xf32>
    %817 = math.exp %816 : vector<8x128xf32>
    %cst_226 = arith.constant 1.000000e+00 : f32
    %818 = vector.broadcast %cst_226 : f32 to vector<8x128xf32>
    %819 = arith.addf %818, %817 : vector<8x128xf32>
    %820 = arith.divf %818, %819 : vector<8x128xf32>
    %821 = arith.select %5, %815, %820 : vector<8x128xi1>, vector<8x128xf32>
    %822 = vector.extract_strided_slice %821 {offsets = [0, 0], sizes = [8, 32], strides = [1, 1]} : vector<8x128xf32> to vector<8x32xf32>
    %823 = vector.extract_strided_slice %821 {offsets = [0, 32], sizes = [8, 32], strides = [1, 1]} : vector<8x128xf32> to vector<8x32xf32>
    %824 = vector.extract_strided_slice %821 {offsets = [0, 64], sizes = [8, 32], strides = [1, 1]} : vector<8x128xf32> to vector<8x32xf32>
    %825 = vector.extract_strided_slice %821 {offsets = [0, 96], sizes = [8, 32], strides = [1, 1]} : vector<8x128xf32> to vector<8x32xf32>
    %826 = arith.mulf %823, %803 : vector<8x32xf32>
    %827 = arith.mulf %822, %824 : vector<8x32xf32>
    %828 = arith.addf %826, %827 : vector<8x32xf32>
    %829 = math.tanh %828 : vector<8x32xf32>
    %830 = arith.mulf %825, %829 : vector<8x32xf32>
    %831 = arith.index_cast %809 : i32 to index
    %c0_227 = arith.constant 0 : index
    %832 = vector.load %arg11[%831, %c0_227] : memref<80x32xf32, #tpu.memory_space<vmem>>, vector<8x32xf32>
    tpu.vector_store %arg11[%831, %c0_227], %830 {strides = array<i32>} : memref<80x32xf32, #tpu.memory_space<vmem>>, vector<8x32xf32>,
    %c4_i32_228 = arith.constant 4 : i32
    %c8_i32_229 = arith.constant 8 : i32
    %833 = arith.muli %c4_i32_228, %c8_i32_229 : i32
    %834 = tpu.assume_multiple %833, 8 : i32
    %835 = arith.index_cast %834 : i32 to index
    %c0_230 = arith.constant 0 : index
    %836 = vector.load %arg12[%835, %c0_230] : memref<80x128xf32, #tpu.memory_space<vmem>>, vector<8x128xf32>
    %837 = arith.truncf %830 : vector<8x32xf32> to vector<8x32xbf16>
    %cst_231 = arith.constant dense<0.000000e+00> : vector<8x128xf32>
    %838 = tpu.matmul %837, %726, %cst_231 {dimension_numbers = #tpu.dot_dimension_numbers<[1], [0], [0], [1], [0, 0, 1, 1], [], []>} : vector<8x32xbf16>, vector<32x128xbf16>, vector<8x128xf32> -> vector<8x128xf32>
    %839 = arith.addf %836, %838 : vector<8x128xf32>
    %840 = math.tanh %839 : vector<8x128xf32>
    %841 = arith.negf %839 : vector<8x128xf32>
    %842 = math.exp %841 : vector<8x128xf32>
    %cst_232 = arith.constant 1.000000e+00 : f32
    %843 = vector.broadcast %cst_232 : f32 to vector<8x128xf32>
    %844 = arith.addf %843, %842 : vector<8x128xf32>
    %845 = arith.divf %843, %844 : vector<8x128xf32>
    %846 = arith.select %5, %840, %845 : vector<8x128xi1>, vector<8x128xf32>
    %847 = vector.extract_strided_slice %846 {offsets = [0, 0], sizes = [8, 32], strides = [1, 1]} : vector<8x128xf32> to vector<8x32xf32>
    %848 = vector.extract_strided_slice %846 {offsets = [0, 32], sizes = [8, 32], strides = [1, 1]} : vector<8x128xf32> to vector<8x32xf32>
    %849 = vector.extract_strided_slice %846 {offsets = [0, 64], sizes = [8, 32], strides = [1, 1]} : vector<8x128xf32> to vector<8x32xf32>
    %850 = vector.extract_strided_slice %846 {offsets = [0, 96], sizes = [8, 32], strides = [1, 1]} : vector<8x128xf32> to vector<8x32xf32>
    %851 = arith.mulf %848, %828 : vector<8x32xf32>
    %852 = arith.mulf %847, %849 : vector<8x32xf32>
    %853 = arith.addf %851, %852 : vector<8x32xf32>
    %854 = math.tanh %853 : vector<8x32xf32>
    %855 = arith.mulf %850, %854 : vector<8x32xf32>
    %856 = arith.index_cast %834 : i32 to index
    %c0_233 = arith.constant 0 : index
    %857 = vector.load %arg11[%856, %c0_233] : memref<80x32xf32, #tpu.memory_space<vmem>>, vector<8x32xf32>
    tpu.vector_store %arg11[%856, %c0_233], %855 {strides = array<i32>} : memref<80x32xf32, #tpu.memory_space<vmem>>, vector<8x32xf32>,
    %c5_i32_234 = arith.constant 5 : i32
    %c8_i32_235 = arith.constant 8 : i32
    %858 = arith.muli %c5_i32_234, %c8_i32_235 : i32
    %859 = tpu.assume_multiple %858, 8 : i32
    %860 = arith.index_cast %859 : i32 to index
    %c0_236 = arith.constant 0 : index
    %861 = vector.load %arg12[%860, %c0_236] : memref<80x128xf32, #tpu.memory_space<vmem>>, vector<8x128xf32>
    %862 = arith.truncf %855 : vector<8x32xf32> to vector<8x32xbf16>
    %cst_237 = arith.constant dense<0.000000e+00> : vector<8x128xf32>
    %863 = tpu.matmul %862, %726, %cst_237 {dimension_numbers = #tpu.dot_dimension_numbers<[1], [0], [0], [1], [0, 0, 1, 1], [], []>} : vector<8x32xbf16>, vector<32x128xbf16>, vector<8x128xf32> -> vector<8x128xf32>
    %864 = arith.addf %861, %863 : vector<8x128xf32>
    %865 = math.tanh %864 : vector<8x128xf32>
    %866 = arith.negf %864 : vector<8x128xf32>
    %867 = math.exp %866 : vector<8x128xf32>
    %cst_238 = arith.constant 1.000000e+00 : f32
    %868 = vector.broadcast %cst_238 : f32 to vector<8x128xf32>
    %869 = arith.addf %868, %867 : vector<8x128xf32>
    %870 = arith.divf %868, %869 : vector<8x128xf32>
    %871 = arith.select %5, %865, %870 : vector<8x128xi1>, vector<8x128xf32>
    %872 = vector.extract_strided_slice %871 {offsets = [0, 0], sizes = [8, 32], strides = [1, 1]} : vector<8x128xf32> to vector<8x32xf32>
    %873 = vector.extract_strided_slice %871 {offsets = [0, 32], sizes = [8, 32], strides = [1, 1]} : vector<8x128xf32> to vector<8x32xf32>
    %874 = vector.extract_strided_slice %871 {offsets = [0, 64], sizes = [8, 32], strides = [1, 1]} : vector<8x128xf32> to vector<8x32xf32>
    %875 = vector.extract_strided_slice %871 {offsets = [0, 96], sizes = [8, 32], strides = [1, 1]} : vector<8x128xf32> to vector<8x32xf32>
    %876 = arith.mulf %873, %853 : vector<8x32xf32>
    %877 = arith.mulf %872, %874 : vector<8x32xf32>
    %878 = arith.addf %876, %877 : vector<8x32xf32>
    %879 = math.tanh %878 : vector<8x32xf32>
    %880 = arith.mulf %875, %879 : vector<8x32xf32>
    %881 = arith.index_cast %859 : i32 to index
    %c0_239 = arith.constant 0 : index
    %882 = vector.load %arg11[%881, %c0_239] : memref<80x32xf32, #tpu.memory_space<vmem>>, vector<8x32xf32>
    tpu.vector_store %arg11[%881, %c0_239], %880 {strides = array<i32>} : memref<80x32xf32, #tpu.memory_space<vmem>>, vector<8x32xf32>,
    %c6_i32_240 = arith.constant 6 : i32
    %c8_i32_241 = arith.constant 8 : i32
    %883 = arith.muli %c6_i32_240, %c8_i32_241 : i32
    %884 = tpu.assume_multiple %883, 8 : i32
    %885 = arith.index_cast %884 : i32 to index
    %c0_242 = arith.constant 0 : index
    %886 = vector.load %arg12[%885, %c0_242] : memref<80x128xf32, #tpu.memory_space<vmem>>, vector<8x128xf32>
    %887 = arith.truncf %880 : vector<8x32xf32> to vector<8x32xbf16>
    %cst_243 = arith.constant dense<0.000000e+00> : vector<8x128xf32>
    %888 = tpu.matmul %887, %726, %cst_243 {dimension_numbers = #tpu.dot_dimension_numbers<[1], [0], [0], [1], [0, 0, 1, 1], [], []>} : vector<8x32xbf16>, vector<32x128xbf16>, vector<8x128xf32> -> vector<8x128xf32>
    %889 = arith.addf %886, %888 : vector<8x128xf32>
    %890 = math.tanh %889 : vector<8x128xf32>
    %891 = arith.negf %889 : vector<8x128xf32>
    %892 = math.exp %891 : vector<8x128xf32>
    %cst_244 = arith.constant 1.000000e+00 : f32
    %893 = vector.broadcast %cst_244 : f32 to vector<8x128xf32>
    %894 = arith.addf %893, %892 : vector<8x128xf32>
    %895 = arith.divf %893, %894 : vector<8x128xf32>
    %896 = arith.select %5, %890, %895 : vector<8x128xi1>, vector<8x128xf32>
    %897 = vector.extract_strided_slice %896 {offsets = [0, 0], sizes = [8, 32], strides = [1, 1]} : vector<8x128xf32> to vector<8x32xf32>
    %898 = vector.extract_strided_slice %896 {offsets = [0, 32], sizes = [8, 32], strides = [1, 1]} : vector<8x128xf32> to vector<8x32xf32>
    %899 = vector.extract_strided_slice %896 {offsets = [0, 64], sizes = [8, 32], strides = [1, 1]} : vector<8x128xf32> to vector<8x32xf32>
    %900 = vector.extract_strided_slice %896 {offsets = [0, 96], sizes = [8, 32], strides = [1, 1]} : vector<8x128xf32> to vector<8x32xf32>
    %901 = arith.mulf %898, %878 : vector<8x32xf32>
    %902 = arith.mulf %897, %899 : vector<8x32xf32>
    %903 = arith.addf %901, %902 : vector<8x32xf32>
    %904 = math.tanh %903 : vector<8x32xf32>
    %905 = arith.mulf %900, %904 : vector<8x32xf32>
    %906 = arith.index_cast %884 : i32 to index
    %c0_245 = arith.constant 0 : index
    %907 = vector.load %arg11[%906, %c0_245] : memref<80x32xf32, #tpu.memory_space<vmem>>, vector<8x32xf32>
    tpu.vector_store %arg11[%906, %c0_245], %905 {strides = array<i32>} : memref<80x32xf32, #tpu.memory_space<vmem>>, vector<8x32xf32>,
    %c7_i32_246 = arith.constant 7 : i32
    %c8_i32_247 = arith.constant 8 : i32
    %908 = arith.muli %c7_i32_246, %c8_i32_247 : i32
    %909 = tpu.assume_multiple %908, 8 : i32
    %910 = arith.index_cast %909 : i32 to index
    %c0_248 = arith.constant 0 : index
    %911 = vector.load %arg12[%910, %c0_248] : memref<80x128xf32, #tpu.memory_space<vmem>>, vector<8x128xf32>
    %912 = arith.truncf %905 : vector<8x32xf32> to vector<8x32xbf16>
    %cst_249 = arith.constant dense<0.000000e+00> : vector<8x128xf32>
    %913 = tpu.matmul %912, %726, %cst_249 {dimension_numbers = #tpu.dot_dimension_numbers<[1], [0], [0], [1], [0, 0, 1, 1], [], []>} : vector<8x32xbf16>, vector<32x128xbf16>, vector<8x128xf32> -> vector<8x128xf32>
    %914 = arith.addf %911, %913 : vector<8x128xf32>
    %915 = math.tanh %914 : vector<8x128xf32>
    %916 = arith.negf %914 : vector<8x128xf32>
    %917 = math.exp %916 : vector<8x128xf32>
    %cst_250 = arith.constant 1.000000e+00 : f32
    %918 = vector.broadcast %cst_250 : f32 to vector<8x128xf32>
    %919 = arith.addf %918, %917 : vector<8x128xf32>
    %920 = arith.divf %918, %919 : vector<8x128xf32>
    %921 = arith.select %5, %915, %920 : vector<8x128xi1>, vector<8x128xf32>
    %922 = vector.extract_strided_slice %921 {offsets = [0, 0], sizes = [8, 32], strides = [1, 1]} : vector<8x128xf32> to vector<8x32xf32>
    %923 = vector.extract_strided_slice %921 {offsets = [0, 32], sizes = [8, 32], strides = [1, 1]} : vector<8x128xf32> to vector<8x32xf32>
    %924 = vector.extract_strided_slice %921 {offsets = [0, 64], sizes = [8, 32], strides = [1, 1]} : vector<8x128xf32> to vector<8x32xf32>
    %925 = vector.extract_strided_slice %921 {offsets = [0, 96], sizes = [8, 32], strides = [1, 1]} : vector<8x128xf32> to vector<8x32xf32>
    %926 = arith.mulf %923, %903 : vector<8x32xf32>
    %927 = arith.mulf %922, %924 : vector<8x32xf32>
    %928 = arith.addf %926, %927 : vector<8x32xf32>
    %929 = math.tanh %928 : vector<8x32xf32>
    %930 = arith.mulf %925, %929 : vector<8x32xf32>
    %931 = arith.index_cast %909 : i32 to index
    %c0_251 = arith.constant 0 : index
    %932 = vector.load %arg11[%931, %c0_251] : memref<80x32xf32, #tpu.memory_space<vmem>>, vector<8x32xf32>
    tpu.vector_store %arg11[%931, %c0_251], %930 {strides = array<i32>} : memref<80x32xf32, #tpu.memory_space<vmem>>, vector<8x32xf32>,
    %c8_i32_252 = arith.constant 8 : i32
    %c0_253 = arith.constant 0 : index
    %c0_254 = arith.constant 0 : index
    %933 = vector.load %arg11[%c0_253, %c0_254] : memref<80x32xf32, #tpu.memory_space<vmem>>, vector<64x32xf32>
    %934 = arith.truncf %933 : vector<64x32xf32> to vector<64x32xbf16>
    %c0_255 = arith.constant 0 : index
    %c0_256 = arith.constant 0 : index
    %935 = vector.load %arg8[%c0_255, %c0_256] : memref<32x128xbf16, #tpu.memory_space<vmem>>, vector<32x128xbf16>
    %cst_257 = arith.constant dense<0.000000e+00> : vector<64x128xf32>
    %936 = tpu.matmul %934, %935, %cst_257 {dimension_numbers = #tpu.dot_dimension_numbers<[1], [0], [0], [1], [0, 0, 1, 1], [], []>} : vector<64x32xbf16>, vector<32x128xbf16>, vector<64x128xf32> -> vector<64x128xf32>
    %c0_258 = arith.constant 0 : index
    %c0_259 = arith.constant 0 : index
    %937 = vector.load %arg9[%c0_258, %c0_259] : memref<1x128xf32, #tpu.memory_space<vmem>>, vector<1x128xf32>
    %938 = vector.broadcast %937 : vector<1x128xf32> to vector<64x128xf32>
    %939 = arith.addf %936, %938 : vector<64x128xf32>
    %c0_260 = arith.constant 0 : index
    %c0_261 = arith.constant 0 : index
    %940 = vector.load %arg10[%c0_260, %c0_261] : memref<64x128xf32, #tpu.memory_space<vmem>>, vector<64x128xf32>
    tpu.vector_store %arg10[%c0_260, %c0_261], %939 {strides = array<i32>} : memref<64x128xf32, #tpu.memory_space<vmem>>, vector<64x128xf32>,
    return
  }
}

</mosaic_0001>

<llo_original>
// kernel: _seq2seq_pallas.1
$region0: #{_seq2seq_pallas.1}
  #allocation0 [shape = 'u32[]', space=smem, size = 0x4, offset = 0x4, fixed_abs, tag = 'smem constant byte address 0x4 - core index']
  #allocation1 [shape = 'u32[144,128]{1,0:T(1,128)}', space=vmem, size = 0x12000, scoped, tag = 'internal scratch']
  #allocation2 [shape = 'f32[80,32]{1,0:T(8,128)}', space=vmem, size = 0xa000, scoped, tag = 'scratch operand']
  #allocation3 [shape = 'f32[80,128]{1,0:T(8,128)}', space=vmem, size = 0xa000, scoped, tag = 'scratch operand']
  %s0 = inlined_call_operand.vmem [shape: bf16[80,32], index: 0, kind: input, shape index: {}]
  %s1 = inlined_call_operand.vmem [shape: bf16[64,32], index: 1, kind: input, shape index: {}]
  %s2 = inlined_call_operand.vmem [shape: bf16[2,32,128], index: 2, kind: input, shape index: {}]
  %s3 = inlined_call_operand.vmem [shape: bf16[2,32,128], index: 3, kind: input, shape index: {}]
  %s4 = inlined_call_operand.hbm [shape: f32[2,1,128], index: 4, kind: input, shape index: {}]
  %s5 = inlined_call_operand.vmem [shape: bf16[2,32,128], index: 5, kind: input, shape index: {}]
  %s6 = inlined_call_operand.hbm [shape: bf16[2,32,128], index: 6, kind: input, shape index: {}]
  %s7 = inlined_call_operand.vmem [shape: f32[2,1,128], index: 7, kind: input, shape index: {}]
  %s8 = inlined_call_operand.vmem [shape: bf16[32,128], index: 8, kind: input, shape index: {}]
  %s9 = inlined_call_operand.vmem [shape: f32[1,128], index: 9, kind: input, shape index: {}]
  %s10 = inlined_call_operand.hbm [shape: f32[64,128], index: 10, kind: output, shape index: {}]
  %s11 = sld [smem:[#allocation0]]
  $region58: #{_seq2seq_pallas.1} parent=0
    _
  %s13 = ssub.s32 1, %s11
  %s14 = scalar_select 0, %s13, %s11
  $region1: #{_seq2seq_pallas.1} parent=0
    #allocation4 [shape = 'u8[1024]{0}', space=vmem, size = 0x400, scoped, tag = 'input window, operand 4, single buffered']
    #allocation5 [shape = 's32[1]{0}', space=sflag, size = 0x4, scoped, tag = 'scoped memory for _seq2seq_pallas.1']
    #allocation6 [shape = 's32[1]{0}', space=sflag, size = 0x4, scoped, tag = 'scoped memory for _seq2seq_pallas.1']
    #allocation7 [shape = 'u8[16384]{0}', space=vmem, size = 0x4000, scoped, tag = 'input window, operand 6, single buffered']
    #allocation8 [shape = 's32[1]{0}', space=sflag, size = 0x4, scoped, tag = 'scoped memory for _seq2seq_pallas.1']
    #allocation9 [shape = 'u8[32768]{0}', space=vmem, size = 0x8000, scoped, tag = 'output window, operand 0, single buffered']
    %15 = vsyncpa [#allocation5], 0
    %16 = vsyncpa [#allocation8], 0
    %17 = vsyncpa [#allocation6], 0
    // Predicated region
    $region2: #{_seq2seq_pallas.1} parent=1 // pred_check
      _
    $region3: #{_seq2seq_pallas.1} parent=1 // pred_check_branch
      %19 = sbr.rel (0) target = $region5
    $region4: #{_seq2seq_pallas.1} parent=1 // pred_region
      _
    $region5: #{_seq2seq_pallas.1} parent=1 // pred_fallthru
      _
    // Predicated region
    $region6: #{_seq2seq_pallas.1} parent=1 // pred_check
      _
    $region7: #{_seq2seq_pallas.1} parent=1 // pred_check_branch
      %21 = sbr.rel (0) target = $region9
    $region8: #{_seq2seq_pallas.1} parent=1 // pred_region
      _
    $region9: #{_seq2seq_pallas.1} parent=1 // pred_fallthru
      _
    // Predicated region
    $region10: #{_seq2seq_pallas.1} parent=1 // pred_check
      _
    $region11: #{_seq2seq_pallas.1} parent=1 // pred_check_branch
      %23 = sbr.rel (0) target = $region13
    $region12: #{_seq2seq_pallas.1} parent=1 // pred_region
      _
    $region13: #{_seq2seq_pallas.1} parent=1 // pred_fallthru
      _
    // Predicated region
    $region14: #{_seq2seq_pallas.1} parent=1 // pred_check
      _
    $region15: #{_seq2seq_pallas.1} parent=1 // pred_check_branch
      %25 = sbr.rel (0) target = $region17
    $region16: #{_seq2seq_pallas.1} parent=1 // pred_region
      _
    $region17: #{_seq2seq_pallas.1} parent=1 // pred_fallthru
      _
    // Predicated region
    $region18: #{_seq2seq_pallas.1} parent=1 // pred_check
      _
    $region19: #{_seq2seq_pallas.1} parent=1 // pred_check_branch
      %27 = sbr.rel (0) target = $region21
    $region20: #{_seq2seq_pallas.1} parent=1 // pred_region
      %s29 = ssub.s32 32, 32
      %30 = vsyncadd [#allocation5], %s29
      %s31 = sshll.u32 [#allocation4], 4
      %s32 = int_to_ptr.vmem [resolvable:$true] %s31
      %37 = dma.hbm_to_vmem [thread:$0]  %s4, 32, %s32, [#allocation5], 16, 16, 1
    $region21: #{_seq2seq_pallas.1} parent=1 // pred_fallthru
      _
    // Predicated region
    $region22: #{_seq2seq_pallas.1} parent=1 // pred_check
      _
    $region23: #{_seq2seq_pallas.1} parent=1 // pred_check_branch
      %39 = sbr.rel (0) target = $region25
    $region24: #{_seq2seq_pallas.1} parent=1 // pred_region
      _
    $region25: #{_seq2seq_pallas.1} parent=1 // pred_fallthru
      _
    // Predicated region
    $region26: #{_seq2seq_pallas.1} parent=1 // pred_check
      _
    $region27: #{_seq2seq_pallas.1} parent=1 // pred_check_branch
      %41 = sbr.rel (0) target = $region29
    $region28: #{_seq2seq_pallas.1} parent=1 // pred_region
      %s43 = ssub.s32 512, 512
      %44 = vsyncadd [#allocation8], %s43
      %s45 = sshll.u32 [#allocation7], 4
      %s46 = int_to_ptr.vmem [resolvable:$true] %s45
      %51 = dma.hbm_to_vmem [thread:$0]  %s6, 512, %s46, [#allocation8], 64, 64, 4
    $region29: #{_seq2seq_pallas.1} parent=1 // pred_fallthru
      _
    // Predicated region
    $region30: #{_seq2seq_pallas.1} parent=1 // pred_check
      _
    $region31: #{_seq2seq_pallas.1} parent=1 // pred_check_branch
      %53 = sbr.rel (0) target = $region33
    $region32: #{_seq2seq_pallas.1} parent=1 // pred_region
      _
    $region33: #{_seq2seq_pallas.1} parent=1 // pred_fallthru
      _
    // Predicated region
    $region34: #{_seq2seq_pallas.1} parent=1 // pred_check
      _
    $region35: #{_seq2seq_pallas.1} parent=1 // pred_check_branch
      %55 = sbr.rel (0) target = $region37
    $region36: #{_seq2seq_pallas.1} parent=1 // pred_region
      _
    $region37: #{_seq2seq_pallas.1} parent=1 // pred_fallthru
      _
    // Predicated region
    $region38: #{_seq2seq_pallas.1} parent=1 // pred_check
      _
    $region39: #{_seq2seq_pallas.1} parent=1 // pred_check_branch
      %57 = sbr.rel (0) target = $region41
    $region40: #{_seq2seq_pallas.1} parent=1 // pred_region
      _
    $region41: #{_seq2seq_pallas.1} parent=1 // pred_fallthru
      _
    // Predicated region
    $region42: #{_seq2seq_pallas.1} parent=1 // pred_check
      _
    $region43: #{_seq2seq_pallas.1} parent=1 // pred_check_branch
      %59 = sbr.rel (0) target = $region45
    $region44: #{_seq2seq_pallas.1} parent=1 // pred_region
      %60 = dma.done [#allocation5], 32
    $region45: #{_seq2seq_pallas.1} parent=1 // pred_fallthru
      _
    // Predicated region
    $region46: #{_seq2seq_pallas.1} parent=1 // pred_check
      _
    $region47: #{_seq2seq_pallas.1} parent=1 // pred_check_branch
      %62 = sbr.rel (0) target = $region49
    $region48: #{_seq2seq_pallas.1} parent=1 // pred_region
      %63 = dma.done [#allocation8], 512
    $region49: #{_seq2seq_pallas.1} parent=1 // pred_fallthru
      _
    %v65 = vlaneseq
    %v66 = vand.u32 %v65, 127
    %vm67 = vcmp.ge.s32.totalorder %v66, 64
    %vm68 = vcmp.lt.s32.totalorder %v66, 96
    %vm69 = vmand %vm67, %vm68
    %v70 = vld [vmem:[%s0] sm:$0xf]
    %v71 = vld [vmem:[%s0 + $0x4] sm:$0xf]
    %v72 = vld [vmem:[%s0 + $0x8] sm:$0xf]
    %v73 = vld [vmem:[%s0 + $0xc] sm:$0xf]
    %v74 = vld [vmem:[%s0 + $0x10] sm:$0xf]
    %v75 = vld [vmem:[%s0 + $0x14] sm:$0xf]
    %v76 = vld [vmem:[%s0 + $0x18] sm:$0xf]
    %v77 = vld [vmem:[%s0 + $0x1c] sm:$0xf]
    %v78 = vld [vmem:[%s0 + $0x20] sm:$0xf]
    %v79 = vld [vmem:[%s0 + $0x24] sm:$0xf]
    %v80 = vld [vmem:[%s2] sm:$0xf]
    %v81 = vld [vmem:[%s2 + $0x4] sm:$0xf]
    %v82 = vld [vmem:[%s2 + $0x8] sm:$0xf]
    %v83 = vld [vmem:[%s2 + $0xc] sm:$0xf]
    %v84 = vld [vmem:[%s3] sm:$0xf]
    %v85 = vld [vmem:[%s3 + $0x4] sm:$0xf]
    %v86 = vld [vmem:[%s3 + $0x8] sm:$0xf]
    %v87 = vld [vmem:[%s3 + $0xc] sm:$0xf]
    %v88 = vld [vmem:[#allocation4] sm:$0x1]
    %v90 = vlaneseq
    %v91 = vshrl.u32 %v90, 7
    %v92 = vsub.s32 0, %v91
    %v93 = vrot.slane %v88, %v92
    %v105 = vunpack.c.l.b16 %v70
    %v106 = vunpack.c.l.b16 %v71
    %v107 = vunpack.c.l.b16 %v72
    %v108 = vunpack.c.l.b16 %v73
    %v109 = vunpack.c.l.b16 %v74
    %v110 = vunpack.c.l.b16 %v75
    %v111 = vunpack.c.l.b16 %v76
    %v112 = vunpack.c.l.b16 %v77
    %v113 = vunpack.c.l.b16 %v78
    %v114 = vunpack.c.l.b16 %v79
    %v115 = vpack.c.b16 %v106, %v105
    %v116 = vpack.c.b16 %v108, %v107
    %v117 = vpack.c.b16 %v110, %v109
    %v118 = vpack.c.b16 %v112, %v111
    %v119 = vpack.c.b16 %v114, %v113
    %v124 = vunpack.c.l.b16 %v80
    %v125 = vunpack.c.l.b16 %v81
    %v126 = vunpack.c.l.b16 %v82
    %v127 = vunpack.c.l.b16 %v83
    %v128 = vpack.c.b16 %v125, %v124
    %v129 = vpack.c.b16 %v127, %v126
    %vm132 = vcmask 261120
    %v134 = vsel %vm132, %v115, 0
    %v137 = vsel %vm132, %v116, 0
    %v140 = vsel %vm132, %v117, 0
    %v143 = vsel %vm132, %v118, 0
    %v146 = vsel %vm132, %v119, 0
    %148 = vmatprep.subr.bf16.mxu0 0
    %149 = vmatpush1.bf16.msra.mxu0 0
    %150 = vmatprep.subr.bf16.mxu0 0
    %151 = vmatpush1.bf16.msra.mxu0 0
    %152 = vmatprep.subr.bf16.mxu0 0
    %153 = vmatpush1.bf16.msra.mxu0 0
    %154 = vmatprep.subr.bf16.mxu0 0
    %155 = vmatpush1.bf16.msra.mxu0 0
    %156 = vmatprep.subr.bf16.mxu0 0
    %157 = vmatpush1.bf16.msra.mxu0 0
    %158 = vmatprep.subr.bf16.mxu0 0
    %159 = vmatpush1.bf16.msra.mxu0 0
    %160 = vmatprep.subr.bf16.mxu0 0
    %161 = vmatpush1.bf16.msra.mxu0 %v129
    %162 = vmatprep.subr.bf16.mxu0 0
    %163 = vmatpush1.bf16.msra.mxu0 %v128
    %164 = vmatprep.subr.bf16.mxu0 0
    %165 = vmatpush2.bf16.msra.mxu0 0
    %166 = vmatprep.subr.bf16.mxu0 0
    %167 = vmatpush2.bf16.msra.mxu0 0
    %168 = vmatprep.subr.bf16.mxu0 0
    %169 = vmatpush2.bf16.msra.mxu0 0
    %170 = vmatprep.subr.bf16.mxu0 0
    %171 = vmatpush2.bf16.msra.mxu0 0
    %172 = vmatprep.subr.bf16.mxu0 0
    %173 = vmatpush2.bf16.msra.mxu0 0
    %174 = vmatprep.subr.bf16.mxu0 0
    %175 = vmatpush2.bf16.msra.mxu0 0
    %176 = vmatprep.subr.bf16.mxu0 0
    %177 = vmatpush2.bf16.msra.mxu0 0
    %178 = vmatprep.subr.bf16.mxu0 0
    %179 = vmatpush2.bf16.msra.mxu0 0
    %180 = vmatprep.mubr.bf16.mxu0 0
    %181 = vmatmul.mubr.bf16.gmra.mxu0 %v134
    %v182 = vpop.f32.mrf.mxu0
    %v183 = vadd.f32 %v93, %v182
    %v184 = vpop.f32.mrf.mxu0
    %v185 = vpop.f32.mrf.mxu0
    %v186 = vadd.f32 %v93, %v185
    %v187 = vpop.f32.mrf.mxu0
    %188 = vmatprep.mubr.bf16.mxu0 0
    %189 = vmatmul.mubr.bf16.gmra.mxu0 %v137
    %v190 = vpop.f32.mrf.mxu0
    %v191 = vadd.f32 %v93, %v190
    %v192 = vpop.f32.mrf.mxu0
    %v193 = vpop.f32.mrf.mxu0
    %v194 = vadd.f32 %v93, %v193
    %v195 = vpop.f32.mrf.mxu0
    %196 = vmatprep.mubr.bf16.mxu0 0
    %197 = vmatmul.mubr.bf16.gmra.mxu0 %v140
    %v198 = vpop.f32.mrf.mxu0
    %v199 = vadd.f32 %v93, %v198
    %v200 = vpop.f32.mrf.mxu0
    %v201 = vpop.f32.mrf.mxu0
    %v202 = vadd.f32 %v93, %v201
    %v203 = vpop.f32.mrf.mxu0
    %204 = vmatprep.mubr.bf16.mxu0 0
    %205 = vmatmul.mubr.bf16.gmra.mxu0 %v143
    %v206 = vpop.f32.mrf.mxu0
    %v207 = vadd.f32 %v93, %v206
    %v208 = vpop.f32.mrf.mxu0
    %v209 = vpop.f32.mrf.mxu0
    %v210 = vadd.f32 %v93, %v209
    %v211 = vpop.f32.mrf.mxu0
    %212 = vmatprep.mubr.bf16.mxu0 0
    %213 = vmatmul.mubr.bf16.gmra.mxu0 %v146
    %v214 = vpop.f32.mrf.mxu0
    %v215 = vadd.f32 %v93, %v214
    %v216 = vpop.f32.mrf.mxu0
    %v217 = vpop.f32.mrf.mxu0
    %v218 = vadd.f32 %v93, %v217
    %v219 = vpop.f32.mrf.mxu0
    %220 = vdwg.mxu0
    %221 = vst [vmem:[#allocation3] sm:$0xff] %v183
    %222 = vst [vmem:[#allocation3 + $0x8] sm:$0xff] %v186
    %223 = vst [vmem:[#allocation3 + $0x10] sm:$0xff] %v191
    %224 = vst [vmem:[#allocation3 + $0x18] sm:$0xff] %v194
    %225 = vst [vmem:[#allocation3 + $0x20] sm:$0xff] %v199
    %226 = vst [vmem:[#allocation3 + $0x28] sm:$0xff] %v202
    %227 = vst [vmem:[#allocation3 + $0x30] sm:$0xff] %v207
    %228 = vst [vmem:[#allocation3 + $0x38] sm:$0xff] %v210
    %229 = vst [vmem:[#allocation3 + $0x40] sm:$0xff] %v215
    %230 = vst [vmem:[#allocation3 + $0x48] sm:$0xff] %v218
    %v231 = vld [vmem:[#allocation3] sm:$0xff]
    %v236 = vunpack.c.l.b16 %v84
    %v237 = vunpack.c.l.b16 %v85
    %v238 = vunpack.c.l.b16 %v86
    %v239 = vunpack.c.l.b16 %v87
    %v240 = vpack.c.b16 %v237, %v236
    %v241 = vpack.c.b16 %v239, %v238
    %v245 = vsel %vm132, 0, 0
    %247 = vmatprep.subr.bf16.mxu0 0
    %248 = vmatpush1.bf16.msra.mxu0 0
    %249 = vmatprep.subr.bf16.mxu0 0
    %250 = vmatpush1.bf16.msra.mxu0 0
    %251 = vmatprep.subr.bf16.mxu0 0
    %252 = vmatpush1.bf16.msra.mxu0 0
    %253 = vmatprep.subr.bf16.mxu0 0
    %254 = vmatpush1.bf16.msra.mxu0 0
    %255 = vmatprep.subr.bf16.mxu0 0
    %256 = vmatpush1.bf16.msra.mxu0 0
    %257 = vmatprep.subr.bf16.mxu0 0
    %258 = vmatpush1.bf16.msra.mxu0 0
    %259 = vmatprep.subr.bf16.mxu0 0
    %260 = vmatpush1.bf16.msra.mxu0 %v241
    %261 = vmatprep.subr.bf16.mxu0 0
    %262 = vmatpush1.bf16.msra.mxu0 %v240
    %263 = vmatprep.subr.bf16.mxu0 0
    %264 = vmatpush2.bf16.msra.mxu0 0
    %265 = vmatprep.subr.bf16.mxu0 0
    %266 = vmatpush2.bf16.msra.mxu0 0
    %267 = vmatprep.subr.bf16.mxu0 0
    %268 = vmatpush2.bf16.msra.mxu0 0
    %269 = vmatprep.subr.bf16.mxu0 0
    %270 = vmatpush2.bf16.msra.mxu0 0
    %271 = vmatprep.subr.bf16.mxu0 0
    %272 = vmatpush2.bf16.msra.mxu0 0
    %273 = vmatprep.subr.bf16.mxu0 0
    %274 = vmatpush2.bf16.msra.mxu0 0
    %275 = vmatprep.subr.bf16.mxu0 0
    %276 = vmatpush2.bf16.msra.mxu0 0
    %277 = vmatprep.subr.bf16.mxu0 0
    %278 = vmatpush2.bf16.msra.mxu0 0
    %279 = vmatprep.mubr.bf16.mxu0 0
    %280 = vmatmul.mubr.bf16.gmra.mxu0 %v245
    %v281 = vpop.f32.mrf.mxu0
    %v282 = vadd.f32 0.0, %v281
    %v283 = vpop.f32.mrf.mxu0
    %v284 = vpop.f32.mrf.mxu0
    %v285 = vpop.f32.mrf.mxu0
    %286 = vdwg.mxu0
    %v287 = vadd.f32 %v231, %v282
    %v288 = vtanh.pop %v287
    %v289 = vxor.u32 %v287, 2147483648
    %v290 = vmul.f32 %v289, 1.442695
    %v291 = vpow.pop %v290
    %v292 = vadd.f32 %v291, 1.0
    %v293 = vrcp.pop %v292
    %v294 = vmul.f32 1.0, %v293
    %v295 = vsel %vm69, %v288, %v294
    %v296 = vmul.f32 %v295, 0.0
    %298 = vrot.lane.b32.xlu0 %v295, 64
    %v299 = vpop.permute.xlu0 %298
    %v301 = vmul.f32 %v295, %v299
    %303 = vrot.lane.b32.xlu0 %v301, 32
    %v304 = vpop.permute.xlu0 %303
    %v306 = vadd.f32 %v296, %v304
    %v307 = vtanh.pop %v306
    %309 = vrot.lane.b32.xlu0 %v307, 64
    %v310 = vpop.permute.xlu0 %309
    %v312 = vmul.f32 %v295, %v310
    %314 = vrot.lane.b32.xlu0 %v312, 32
    %v315 = vpop.permute.xlu0 %314
    %317 = vst.msk [vmem:[#allocation2] sm:$0xff] %vm132, %v315
    %s318 = scalar_lea.vmem [#allocation3], 8
    %v319 = vld [vmem:[%s318] sm:$0xff]
    %v320 = vpack.c.bf16 %v312, %v312
    %322 = vrot.lane.b32.xlu0 %v320, 32
    %v323 = vpop.permute.xlu0 %322
    %v325 = vsel %vm132, %v323, 0
    %327 = vmatprep.subr.bf16.mxu0 0
    %328 = vmatpush1.bf16.msra.mxu0 0
    %329 = vmatprep.subr.bf16.mxu0 0
    %330 = vmatpush1.bf16.msra.mxu0 0
    %331 = vmatprep.subr.bf16.mxu0 0
    %332 = vmatpush1.bf16.msra.mxu0 0
    %333 = vmatprep.subr.bf16.mxu0 0
    %334 = vmatpush1.bf16.msra.mxu0 0
    %335 = vmatprep.subr.bf16.mxu0 0
    %336 = vmatpush1.bf16.msra.mxu0 0
    %337 = vmatprep.subr.bf16.mxu0 0
    %338 = vmatpush1.bf16.msra.mxu0 0
    %339 = vmatprep.subr.bf16.mxu0 0
    %340 = vmatpush1.bf16.msra.mxu0 %v241
    %341 = vmatprep.subr.bf16.mxu0 0
    %342 = vmatpush1.bf16.msra.mxu0 %v240
    %343 = vmatprep.subr.bf16.mxu0 0
    %344 = vmatpush2.bf16.msra.mxu0 0
    %345 = vmatprep.subr.bf16.mxu0 0
    %346 = vmatpush2.bf16.msra.mxu0 0
    %347 = vmatprep.subr.bf16.mxu0 0
    %348 = vmatpush2.bf16.msra.mxu0 0
    %349 = vmatprep.subr.bf16.mxu0 0
    %350 = vmatpush2.bf16.msra.mxu0 0
    %351 = vmatprep.subr.bf16.mxu0 0
    %352 = vmatpush2.bf16.msra.mxu0 0
    %353 = vmatprep.subr.bf16.mxu0 0
    %354 = vmatpush2.bf16.msra.mxu0 0
    %355 = vmatprep.subr.bf16.mxu0 0
    %356 = vmatpush2.bf16.msra.mxu0 0
    %357 = vmatprep.subr.bf16.mxu0 0
    %358 = vmatpush2.bf16.msra.mxu0 0
    %359 = vmatprep.mubr.bf16.mxu0 0
    %360 = vmatmul.mubr.bf16.gmra.mxu0 %v325
    %v361 = vpop.f32.mrf.mxu0
    %v362 = vadd.f32 0.0, %v361
    %v363 = vpop.f32.mrf.mxu0
    %v364 = vpop.f32.mrf.mxu0
    %v365 = vpop.f32.mrf.mxu0
    %366 = vdwg.mxu0
    %v367 = vadd.f32 %v319, %v362
    %v368 = vtanh.pop %v367
    %v369 = vxor.u32 %v367, 2147483648
    %v370 = vmul.f32 %v369, 1.442695
    %v371 = vpow.pop %v370
    %v372 = vadd.f32 %v371, 1.0
    %v373 = vrcp.pop %v372
    %v374 = vmul.f32 1.0, %v373
    %v375 = vsel %vm69, %v368, %v374
    %v376 = vmul.f32 %v375, %v306
    %378 = vrot.lane.b32.xlu0 %v375, 64
    %v379 = vpop.permute.xlu0 %378
    %v381 = vmul.f32 %v375, %v379
    %383 = vrot.lane.b32.xlu0 %v381, 32
    %v384 = vpop.permute.xlu0 %383
    %v386 = vadd.f32 %v376, %v384
    %v387 = vtanh.pop %v386
    %389 = vrot.lane.b32.xlu0 %v387, 64
    %v390 = vpop.permute.xlu0 %389
    %v392 = vmul.f32 %v375, %v390
    %394 = vrot.lane.b32.xlu0 %v392, 32
    %v395 = vpop.permute.xlu0 %394
    %s397 = scalar_lea.vmem [#allocation2], 8
    %398 = vst.msk [vmem:[%s397] sm:$0xff] %vm132, %v395
    %s399 = scalar_lea.vmem [#allocation3], 16
    %v400 = vld [vmem:[%s399] sm:$0xff]
    %v401 = vpack.c.bf16 %v392, %v392
    %403 = vrot.lane.b32.xlu0 %v401, 32
    %v404 = vpop.permute.xlu0 %403
    %v406 = vsel %vm132, %v404, 0
    %408 = vmatprep.subr.bf16.mxu0 0
    %409 = vmatpush1.bf16.msra.mxu0 0
    %410 = vmatprep.subr.bf16.mxu0 0
    %411 = vmatpush1.bf16.msra.mxu0 0
    %412 = vmatprep.subr.bf16.mxu0 0
    %413 = vmatpush1.bf16.msra.mxu0 0
    %414 = vmatprep.subr.bf16.mxu0 0
    %415 = vmatpush1.bf16.msra.mxu0 0
    %416 = vmatprep.subr.bf16.mxu0 0
    %417 = vmatpush1.bf16.msra.mxu0 0
    %418 = vmatprep.subr.bf16.mxu0 0
    %419 = vmatpush1.bf16.msra.mxu0 0
    %420 = vmatprep.subr.bf16.mxu0 0
    %421 = vmatpush1.bf16.msra.mxu0 %v241
    %422 = vmatprep.subr.bf16.mxu0 0
    %423 = vmatpush1.bf16.msra.mxu0 %v240
    %424 = vmatprep.subr.bf16.mxu0 0
    %425 = vmatpush2.bf16.msra.mxu0 0
    %426 = vmatprep.subr.bf16.mxu0 0
    %427 = vmatpush2.bf16.msra.mxu0 0
    %428 = vmatprep.subr.bf16.mxu0 0
    %429 = vmatpush2.bf16.msra.mxu0 0
    %430 = vmatprep.subr.bf16.mxu0 0
    %431 = vmatpush2.bf16.msra.mxu0 0
    %432 = vmatprep.subr.bf16.mxu0 0
    %433 = vmatpush2.bf16.msra.mxu0 0
    %434 = vmatprep.subr.bf16.mxu0 0
    %435 = vmatpush2.bf16.msra.mxu0 0
    %436 = vmatprep.subr.bf16.mxu0 0
    %437 = vmatpush2.bf16.msra.mxu0 0
    %438 = vmatprep.subr.bf16.mxu0 0
    %439 = vmatpush2.bf16.msra.mxu0 0
    %440 = vmatprep.mubr.bf16.mxu0 0
    %441 = vmatmul.mubr.bf16.gmra.mxu0 %v406
    %v442 = vpop.f32.mrf.mxu0
    %v443 = vadd.f32 0.0, %v442
    %v444 = vpop.f32.mrf.mxu0
    %v445 = vpop.f32.mrf.mxu0
    %v446 = vpop.f32.mrf.mxu0
    %447 = vdwg.mxu0
    %v448 = vadd.f32 %v400, %v443
    %v449 = vtanh.pop %v448
    %v450 = vxor.u32 %v448, 2147483648
    %v451 = vmul.f32 %v450, 1.442695
    %v452 = vpow.pop %v451
    %v453 = vadd.f32 %v452, 1.0
    %v454 = vrcp.pop %v453
    %v455 = vmul.f32 1.0, %v454
    %v456 = vsel %vm69, %v449, %v455
    %v457 = vmul.f32 %v456, %v386
    %459 = vrot.lane.b32.xlu0 %v456, 64
    %v460 = vpop.permute.xlu0 %459
    %v462 = vmul.f32 %v456, %v460
    %464 = vrot.lane.b32.xlu0 %v462, 32
    %v465 = vpop.permute.xlu0 %464
    %v467 = vadd.f32 %v457, %v465
    %v468 = vtanh.pop %v467
    %470 = vrot.lane.b32.xlu0 %v468, 64
    %v471 = vpop.permute.xlu0 %470
    %v473 = vmul.f32 %v456, %v471
    %475 = vrot.lane.b32.xlu0 %v473, 32
    %v476 = vpop.permute.xlu0 %475
    %s478 = scalar_lea.vmem [#allocation2], 16
    %479 = vst.msk [vmem:[%s478] sm:$0xff] %vm132, %v476
    %s480 = scalar_lea.vmem [#allocation3], 24
    %v481 = vld [vmem:[%s480] sm:$0xff]
    %v482 = vpack.c.bf16 %v473, %v473
    %484 = vrot.lane.b32.xlu0 %v482, 32
    %v485 = vpop.permute.xlu0 %484
    %v487 = vsel %vm132, %v485, 0
    %489 = vmatprep.subr.bf16.mxu0 0
    %490 = vmatpush1.bf16.msra.mxu0 0
    %491 = vmatprep.subr.bf16.mxu0 0
    %492 = vmatpush1.bf16.msra.mxu0 0
    %493 = vmatprep.subr.bf16.mxu0 0
    %494 = vmatpush1.bf16.msra.mxu0 0
    %495 = vmatprep.subr.bf16.mxu0 0
    %496 = vmatpush1.bf16.msra.mxu0 0
    %497 = vmatprep.subr.bf16.mxu0 0
    %498 = vmatpush1.bf16.msra.mxu0 0
    %499 = vmatprep.subr.bf16.mxu0 0
    %500 = vmatpush1.bf16.msra.mxu0 0
    %501 = vmatprep.subr.bf16.mxu0 0
    %502 = vmatpush1.bf16.msra.mxu0 %v241
    %503 = vmatprep.subr.bf16.mxu0 0
    %504 = vmatpush1.bf16.msra.mxu0 %v240
    %505 = vmatprep.subr.bf16.mxu0 0
    %506 = vmatpush2.bf16.msra.mxu0 0
    %507 = vmatprep.subr.bf16.mxu0 0
    %508 = vmatpush2.bf16.msra.mxu0 0
    %509 = vmatprep.subr.bf16.mxu0 0
    %510 = vmatpush2.bf16.msra.mxu0 0
    %511 = vmatprep.subr.bf16.mxu0 0
    %512 = vmatpush2.bf16.msra.mxu0 0
    %513 = vmatprep.subr.bf16.mxu0 0
    %514 = vmatpush2.bf16.msra.mxu0 0
    %515 = vmatprep.subr.bf16.mxu0 0
    %516 = vmatpush2.bf16.msra.mxu0 0
    %517 = vmatprep.subr.bf16.mxu0 0
    %518 = vmatpush2.bf16.msra.mxu0 0
    %519 = vmatprep.subr.bf16.mxu0 0
    %520 = vmatpush2.bf16.msra.mxu0 0
    %521 = vmatprep.mubr.bf16.mxu0 0
    %522 = vmatmul.mubr.bf16.gmra.mxu0 %v487
    %v523 = vpop.f32.mrf.mxu0
    %v524 = vadd.f32 0.0, %v523
    %v525 = vpop.f32.mrf.mxu0
    %v526 = vpop.f32.mrf.mxu0
    %v527 = vpop.f32.mrf.mxu0
    %528 = vdwg.mxu0
    %v529 = vadd.f32 %v481, %v524
    %v530 = vtanh.pop %v529
    %v531 = vxor.u32 %v529, 2147483648
    %v532 = vmul.f32 %v531, 1.442695
    %v533 = vpow.pop %v532
    %v534 = vadd.f32 %v533, 1.0
    %v535 = vrcp.pop %v534
    %v536 = vmul.f32 1.0, %v535
    %v537 = vsel %vm69, %v530, %v536
    %v538 = vmul.f32 %v537, %v467
    %540 = vrot.lane.b32.xlu0 %v537, 64
    %v541 = vpop.permute.xlu0 %540
    %v543 = vmul.f32 %v537, %v541
    %545 = vrot.lane.b32.xlu0 %v543, 32
    %v546 = vpop.permute.xlu0 %545
    %v548 = vadd.f32 %v538, %v546
    %v549 = vtanh.pop %v548
    %551 = vrot.lane.b32.xlu0 %v549, 64
    %v552 = vpop.permute.xlu0 %551
    %v554 = vmul.f32 %v537, %v552
    %556 = vrot.lane.b32.xlu0 %v554, 32
    %v557 = vpop.permute.xlu0 %556
    %s559 = scalar_lea.vmem [#allocation2], 24
    %560 = vst.msk [vmem:[%s559] sm:$0xff] %vm132, %v557
    %s561 = scalar_lea.vmem [#allocation3], 32
    %v562 = vld [vmem:[%s561] sm:$0xff]
    %v563 = vpack.c.bf16 %v554, %v554
    %565 = vrot.lane.b32.xlu0 %v563, 32
    %v566 = vpop.permute.xlu0 %565
    %v568 = vsel %vm132, %v566, 0
    %570 = vmatprep.subr.bf16.mxu0 0
    %571 = vmatpush1.bf16.msra.mxu0 0
    %572 = vmatprep.subr.bf16.mxu0 0
    %573 = vmatpush1.bf16.msra.mxu0 0
    %574 = vmatprep.subr.bf16.mxu0 0
    %575 = vmatpush1.bf16.msra.mxu0 0
    %576 = vmatprep.subr.bf16.mxu0 0
    %577 = vmatpush1.bf16.msra.mxu0 0
    %578 = vmatprep.subr.bf16.mxu0 0
    %579 = vmatpush1.bf16.msra.mxu0 0
    %580 = vmatprep.subr.bf16.mxu0 0
    %581 = vmatpush1.bf16.msra.mxu0 0
    %582 = vmatprep.subr.bf16.mxu0 0
    %583 = vmatpush1.bf16.msra.mxu0 %v241
    %584 = vmatprep.subr.bf16.mxu0 0
    %585 = vmatpush1.bf16.msra.mxu0 %v240
    %586 = vmatprep.subr.bf16.mxu0 0
    %587 = vmatpush2.bf16.msra.mxu0 0
    %588 = vmatprep.subr.bf16.mxu0 0
    %589 = vmatpush2.bf16.msra.mxu0 0
    %590 = vmatprep.subr.bf16.mxu0 0
    %591 = vmatpush2.bf16.msra.mxu0 0
    %592 = vmatprep.subr.bf16.mxu0 0
    %593 = vmatpush2.bf16.msra.mxu0 0
    %594 = vmatprep.subr.bf16.mxu0 0
    %595 = vmatpush2.bf16.msra.mxu0 0
    %596 = vmatprep.subr.bf16.mxu0 0
    %597 = vmatpush2.bf16.msra.mxu0 0
    %598 = vmatprep.subr.bf16.mxu0 0
    %599 = vmatpush2.bf16.msra.mxu0 0
    %600 = vmatprep.subr.bf16.mxu0 0
    %601 = vmatpush2.bf16.msra.mxu0 0
    %602 = vmatprep.mubr.bf16.mxu0 0
    %603 = vmatmul.mubr.bf16.gmra.mxu0 %v568
    %v604 = vpop.f32.mrf.mxu0
    %v605 = vadd.f32 0.0, %v604
    %v606 = vpop.f32.mrf.mxu0
    %v607 = vpop.f32.mrf.mxu0
    %v608 = vpop.f32.mrf.mxu0
    %609 = vdwg.mxu0
    %v610 = vadd.f32 %v562, %v605
    %v611 = vtanh.pop %v610
    %v612 = vxor.u32 %v610, 2147483648
    %v613 = vmul.f32 %v612, 1.442695
    %v614 = vpow.pop %v613
    %v615 = vadd.f32 %v614, 1.0
    %v616 = vrcp.pop %v615
    %v617 = vmul.f32 1.0, %v616
    %v618 = vsel %vm69, %v611, %v617
    %v619 = vmul.f32 %v618, %v548
    %621 = vrot.lane.b32.xlu0 %v618, 64
    %v622 = vpop.permute.xlu0 %621
    %v624 = vmul.f32 %v618, %v622
    %626 = vrot.lane.b32.xlu0 %v624, 32
    %v627 = vpop.permute.xlu0 %626
    %v629 = vadd.f32 %v619, %v627
    %v630 = vtanh.pop %v629
    %632 = vrot.lane.b32.xlu0 %v630, 64
    %v633 = vpop.permute.xlu0 %632
    %v635 = vmul.f32 %v618, %v633
    %637 = vrot.lane.b32.xlu0 %v635, 32
    %v638 = vpop.permute.xlu0 %637
    %s640 = scalar_lea.vmem [#allocation2], 32
    %641 = vst.msk [vmem:[%s640] sm:$0xff] %vm132, %v638
    %s642 = scalar_lea.vmem [#allocation3], 40
    %v643 = vld [vmem:[%s642] sm:$0xff]
    %v644 = vpack.c.bf16 %v635, %v635
    %646 = vrot.lane.b32.xlu0 %v644, 32
    %v647 = vpop.permute.xlu0 %646
    %v649 = vsel %vm132, %v647, 0
    %651 = vmatprep.subr.bf16.mxu0 0
    %652 = vmatpush1.bf16.msra.mxu0 0
    %653 = vmatprep.subr.bf16.mxu0 0
    %654 = vmatpush1.bf16.msra.mxu0 0
    %655 = vmatprep.subr.bf16.mxu0 0
    %656 = vmatpush1.bf16.msra.mxu0 0
    %657 = vmatprep.subr.bf16.mxu0 0
    %658 = vmatpush1.bf16.msra.mxu0 0
    %659 = vmatprep.subr.bf16.mxu0 0
    %660 = vmatpush1.bf16.msra.mxu0 0
    %661 = vmatprep.subr.bf16.mxu0 0
    %662 = vmatpush1.bf16.msra.mxu0 0
    %663 = vmatprep.subr.bf16.mxu0 0
    %664 = vmatpush1.bf16.msra.mxu0 %v241
    %665 = vmatprep.subr.bf16.mxu0 0
    %666 = vmatpush1.bf16.msra.mxu0 %v240
    %667 = vmatprep.subr.bf16.mxu0 0
    %668 = vmatpush2.bf16.msra.mxu0 0
    %669 = vmatprep.subr.bf16.mxu0 0
    %670 = vmatpush2.bf16.msra.mxu0 0
    %671 = vmatprep.subr.bf16.mxu0 0
    %672 = vmatpush2.bf16.msra.mxu0 0
    %673 = vmatprep.subr.bf16.mxu0 0
    %674 = vmatpush2.bf16.msra.mxu0 0
    %675 = vmatprep.subr.bf16.mxu0 0
    %676 = vmatpush2.bf16.msra.mxu0 0
    %677 = vmatprep.subr.bf16.mxu0 0
    %678 = vmatpush2.bf16.msra.mxu0 0
    %679 = vmatprep.subr.bf16.mxu0 0
    %680 = vmatpush2.bf16.msra.mxu0 0
    %681 = vmatprep.subr.bf16.mxu0 0
    %682 = vmatpush2.bf16.msra.mxu0 0
    %683 = vmatprep.mubr.bf16.mxu0 0
    %684 = vmatmul.mubr.bf16.gmra.mxu0 %v649
    %v685 = vpop.f32.mrf.mxu0
    %v686 = vadd.f32 0.0, %v685
    %v687 = vpop.f32.mrf.mxu0
    %v688 = vpop.f32.mrf.mxu0
    %v689 = vpop.f32.mrf.mxu0
    %690 = vdwg.mxu0
    %v691 = vadd.f32 %v643, %v686
    %v692 = vtanh.pop %v691
    %v693 = vxor.u32 %v691, 2147483648
    %v694 = vmul.f32 %v693, 1.442695
    %v695 = vpow.pop %v694
    %v696 = vadd.f32 %v695, 1.0
    %v697 = vrcp.pop %v696
    %v698 = vmul.f32 1.0, %v697
    %v699 = vsel %vm69, %v692, %v698
    %v700 = vmul.f32 %v699, %v629
    %702 = vrot.lane.b32.xlu0 %v699, 64
    %v703 = vpop.permute.xlu0 %702
    %v705 = vmul.f32 %v699, %v703
    %707 = vrot.lane.b32.xlu0 %v705, 32
    %v708 = vpop.permute.xlu0 %707
    %v710 = vadd.f32 %v700, %v708
    %v711 = vtanh.pop %v710
    %713 = vrot.lane.b32.xlu0 %v711, 64
    %v714 = vpop.permute.xlu0 %713
    %v716 = vmul.f32 %v699, %v714
    %718 = vrot.lane.b32.xlu0 %v716, 32
    %v719 = vpop.permute.xlu0 %718
    %s721 = scalar_lea.vmem [#allocation2], 40
    %722 = vst.msk [vmem:[%s721] sm:$0xff] %vm132, %v719
    %s723 = scalar_lea.vmem [#allocation3], 48
    %v724 = vld [vmem:[%s723] sm:$0xff]
    %v725 = vpack.c.bf16 %v716, %v716
    %727 = vrot.lane.b32.xlu0 %v725, 32
    %v728 = vpop.permute.xlu0 %727
    %v730 = vsel %vm132, %v728, 0
    %732 = vmatprep.subr.bf16.mxu0 0
    %733 = vmatpush1.bf16.msra.mxu0 0
    %734 = vmatprep.subr.bf16.mxu0 0
    %735 = vmatpush1.bf16.msra.mxu0 0
    %736 = vmatprep.subr.bf16.mxu0 0
    %737 = vmatpush1.bf16.msra.mxu0 0
    %738 = vmatprep.subr.bf16.mxu0 0
    %739 = vmatpush1.bf16.msra.mxu0 0
    %740 = vmatprep.subr.bf16.mxu0 0
    %741 = vmatpush1.bf16.msra.mxu0 0
    %742 = vmatprep.subr.bf16.mxu0 0
    %743 = vmatpush1.bf16.msra.mxu0 0
    %744 = vmatprep.subr.bf16.mxu0 0
    %745 = vmatpush1.bf16.msra.mxu0 %v241
    %746 = vmatprep.subr.bf16.mxu0 0
    %747 = vmatpush1.bf16.msra.mxu0 %v240
    %748 = vmatprep.subr.bf16.mxu0 0
    %749 = vmatpush2.bf16.msra.mxu0 0
    %750 = vmatprep.subr.bf16.mxu0 0
    %751 = vmatpush2.bf16.msra.mxu0 0
    %752 = vmatprep.subr.bf16.mxu0 0
    %753 = vmatpush2.bf16.msra.mxu0 0
    %754 = vmatprep.subr.bf16.mxu0 0
    %755 = vmatpush2.bf16.msra.mxu0 0
    %756 = vmatprep.subr.bf16.mxu0 0
    %757 = vmatpush2.bf16.msra.mxu0 0
    %758 = vmatprep.subr.bf16.mxu0 0
    %759 = vmatpush2.bf16.msra.mxu0 0
    %760 = vmatprep.subr.bf16.mxu0 0
    %761 = vmatpush2.bf16.msra.mxu0 0
    %762 = vmatprep.subr.bf16.mxu0 0
    %763 = vmatpush2.bf16.msra.mxu0 0
    %764 = vmatprep.mubr.bf16.mxu0 0
    %765 = vmatmul.mubr.bf16.gmra.mxu0 %v730
    %v766 = vpop.f32.mrf.mxu0
    %v767 = vadd.f32 0.0, %v766
    %v768 = vpop.f32.mrf.mxu0
    %v769 = vpop.f32.mrf.mxu0
    %v770 = vpop.f32.mrf.mxu0
    %771 = vdwg.mxu0
    %v772 = vadd.f32 %v724, %v767
    %v773 = vtanh.pop %v772
    %v774 = vxor.u32 %v772, 2147483648
    %v775 = vmul.f32 %v774, 1.442695
    %v776 = vpow.pop %v775
    %v777 = vadd.f32 %v776, 1.0
    %v778 = vrcp.pop %v777
    %v779 = vmul.f32 1.0, %v778
    %v780 = vsel %vm69, %v773, %v779
    %v781 = vmul.f32 %v780, %v710
    %783 = vrot.lane.b32.xlu0 %v780, 64
    %v784 = vpop.permute.xlu0 %783
    %v786 = vmul.f32 %v780, %v784
    %788 = vrot.lane.b32.xlu0 %v786, 32
    %v789 = vpop.permute.xlu0 %788
    %v791 = vadd.f32 %v781, %v789
    %v792 = vtanh.pop %v791
    %794 = vrot.lane.b32.xlu0 %v792, 64
    %v795 = vpop.permute.xlu0 %794
    %v797 = vmul.f32 %v780, %v795
    %799 = vrot.lane.b32.xlu0 %v797, 32
    %v800 = vpop.permute.xlu0 %799
    %s802 = scalar_lea.vmem [#allocation2], 48
    %803 = vst.msk [vmem:[%s802] sm:$0xff] %vm132, %v800
    %s804 = scalar_lea.vmem [#allocation3], 56
    %v805 = vld [vmem:[%s804] sm:$0xff]
    %v806 = vpack.c.bf16 %v797, %v797
    %808 = vrot.lane.b32.xlu0 %v806, 32
    %v809 = vpop.permute.xlu0 %808
    %v811 = vsel %vm132, %v809, 0
    %813 = vmatprep.subr.bf16.mxu0 0
    %814 = vmatpush1.bf16.msra.mxu0 0
    %815 = vmatprep.subr.bf16.mxu0 0
    %816 = vmatpush1.bf16.msra.mxu0 0
    %817 = vmatprep.subr.bf16.mxu0 0
    %818 = vmatpush1.bf16.msra.mxu0 0
    %819 = vmatprep.subr.bf16.mxu0 0
    %820 = vmatpush1.bf16.msra.mxu0 0
    %821 = vmatprep.subr.bf16.mxu0 0
    %822 = vmatpush1.bf16.msra.mxu0 0
    %823 = vmatprep.subr.bf16.mxu0 0
    %824 = vmatpush1.bf16.msra.mxu0 0
    %825 = vmatprep.subr.bf16.mxu0 0
    %826 = vmatpush1.bf16.msra.mxu0 %v241
    %827 = vmatprep.subr.bf16.mxu0 0
    %828 = vmatpush1.bf16.msra.mxu0 %v240
    %829 = vmatprep.subr.bf16.mxu0 0
    %830 = vmatpush2.bf16.msra.mxu0 0
    %831 = vmatprep.subr.bf16.mxu0 0
    %832 = vmatpush2.bf16.msra.mxu0 0
    %833 = vmatprep.subr.bf16.mxu0 0
    %834 = vmatpush2.bf16.msra.mxu0 0
    %835 = vmatprep.subr.bf16.mxu0 0
    %836 = vmatpush2.bf16.msra.mxu0 0
    %837 = vmatprep.subr.bf16.mxu0 0
    %838 = vmatpush2.bf16.msra.mxu0 0
    %839 = vmatprep.subr.bf16.mxu0 0
    %840 = vmatpush2.bf16.msra.mxu0 0
    %841 = vmatprep.subr.bf16.mxu0 0
    %842 = vmatpush2.bf16.msra.mxu0 0
    %843 = vmatprep.subr.bf16.mxu0 0
    %844 = vmatpush2.bf16.msra.mxu0 0
    %845 = vmatprep.mubr.bf16.mxu0 0
    %846 = vmatmul.mubr.bf16.gmra.mxu0 %v811
    %v847 = vpop.f32.mrf.mxu0
    %v848 = vadd.f32 0.0, %v847
    %v849 = vpop.f32.mrf.mxu0
    %v850 = vpop.f32.mrf.mxu0
    %v851 = vpop.f32.mrf.mxu0
    %852 = vdwg.mxu0
    %v853 = vadd.f32 %v805, %v848
    %v854 = vtanh.pop %v853
    %v855 = vxor.u32 %v853, 2147483648
    %v856 = vmul.f32 %v855, 1.442695
    %v857 = vpow.pop %v856
    %v858 = vadd.f32 %v857, 1.0
    %v859 = vrcp.pop %v858
    %v860 = vmul.f32 1.0, %v859
    %v861 = vsel %vm69, %v854, %v860
    %v862 = vmul.f32 %v861, %v791
    %864 = vrot.lane.b32.xlu0 %v861, 64
    %v865 = vpop.permute.xlu0 %864
    %v867 = vmul.f32 %v861, %v865
    %869 = vrot.lane.b32.xlu0 %v867, 32
    %v870 = vpop.permute.xlu0 %869
    %v872 = vadd.f32 %v862, %v870
    %v873 = vtanh.pop %v872
    %875 = vrot.lane.b32.xlu0 %v873, 64
    %v876 = vpop.permute.xlu0 %875
    %v878 = vmul.f32 %v861, %v876
    %880 = vrot.lane.b32.xlu0 %v878, 32
    %v881 = vpop.permute.xlu0 %880
    %s883 = scalar_lea.vmem [#allocation2], 56
    %884 = vst.msk [vmem:[%s883] sm:$0xff] %vm132, %v881
    %s885 = scalar_lea.vmem [#allocation3], 64
    %v886 = vld [vmem:[%s885] sm:$0xff]
    %v887 = vpack.c.bf16 %v878, %v878
    %889 = vrot.lane.b32.xlu0 %v887, 32
    %v890 = vpop.permute.xlu0 %889
    %v892 = vsel %vm132, %v890, 0
    %894 = vmatprep.subr.bf16.mxu0 0
    %895 = vmatpush1.bf16.msra.mxu0 0
    %896 = vmatprep.subr.bf16.mxu0 0
    %897 = vmatpush1.bf16.msra.mxu0 0
    %898 = vmatprep.subr.bf16.mxu0 0
    %899 = vmatpush1.bf16.msra.mxu0 0
    %900 = vmatprep.subr.bf16.mxu0 0
    %901 = vmatpush1.bf16.msra.mxu0 0
    %902 = vmatprep.subr.bf16.mxu0 0
    %903 = vmatpush1.bf16.msra.mxu0 0
    %904 = vmatprep.subr.bf16.mxu0 0
    %905 = vmatpush1.bf16.msra.mxu0 0
    %906 = vmatprep.subr.bf16.mxu0 0
    %907 = vmatpush1.bf16.msra.mxu0 %v241
    %908 = vmatprep.subr.bf16.mxu0 0
    %909 = vmatpush1.bf16.msra.mxu0 %v240
    %910 = vmatprep.subr.bf16.mxu0 0
    %911 = vmatpush2.bf16.msra.mxu0 0
    %912 = vmatprep.subr.bf16.mxu0 0
    %913 = vmatpush2.bf16.msra.mxu0 0
    %914 = vmatprep.subr.bf16.mxu0 0
    %915 = vmatpush2.bf16.msra.mxu0 0
    %916 = vmatprep.subr.bf16.mxu0 0
    %917 = vmatpush2.bf16.msra.mxu0 0
    %918 = vmatprep.subr.bf16.mxu0 0
    %919 = vmatpush2.bf16.msra.mxu0 0
    %920 = vmatprep.subr.bf16.mxu0 0
    %921 = vmatpush2.bf16.msra.mxu0 0
    %922 = vmatprep.subr.bf16.mxu0 0
    %923 = vmatpush2.bf16.msra.mxu0 0
    %924 = vmatprep.subr.bf16.mxu0 0
    %925 = vmatpush2.bf16.msra.mxu0 0
    %926 = vmatprep.mubr.bf16.mxu0 0
    %927 = vmatmul.mubr.bf16.gmra.mxu0 %v892
    %v928 = vpop.f32.mrf.mxu0
    %v929 = vadd.f32 0.0, %v928
    %v930 = vpop.f32.mrf.mxu0
    %v931 = vpop.f32.mrf.mxu0
    %v932 = vpop.f32.mrf.mxu0
    %933 = vdwg.mxu0
    %v934 = vadd.f32 %v886, %v929
    %v935 = vtanh.pop %v934
    %v936 = vxor.u32 %v934, 2147483648
    %v937 = vmul.f32 %v936, 1.442695
    %v938 = vpow.pop %v937
    %v939 = vadd.f32 %v938, 1.0
    %v940 = vrcp.pop %v939
    %v941 = vmul.f32 1.0, %v940
    %v942 = vsel %vm69, %v935, %v941
    %v943 = vmul.f32 %v942, %v872
    %945 = vrot.lane.b32.xlu0 %v942, 64
    %v946 = vpop.permute.xlu0 %945
    %v948 = vmul.f32 %v942, %v946
    %950 = vrot.lane.b32.xlu0 %v948, 32
    %v951 = vpop.permute.xlu0 %950
    %v953 = vadd.f32 %v943, %v951
    %v954 = vtanh.pop %v953
    %956 = vrot.lane.b32.xlu0 %v954, 64
    %v957 = vpop.permute.xlu0 %956
    %v959 = vmul.f32 %v942, %v957
    %961 = vrot.lane.b32.xlu0 %v959, 32
    %v962 = vpop.permute.xlu0 %961
    %s964 = scalar_lea.vmem [#allocation2], 64
    %965 = vst.msk [vmem:[%s964] sm:$0xff] %vm132, %v962
    %s966 = scalar_lea.vmem [#allocation3], 72
    %v967 = vld [vmem:[%s966] sm:$0xff]
    %v968 = vpack.c.bf16 %v959, %v959
    %970 = vrot.lane.b32.xlu0 %v968, 32
    %v971 = vpop.permute.xlu0 %970
    %v973 = vsel %vm132, %v971, 0
    %975 = vmatprep.subr.bf16.mxu0 0
    %976 = vmatpush1.bf16.msra.mxu0 0
    %977 = vmatprep.subr.bf16.mxu0 0
    %978 = vmatpush1.bf16.msra.mxu0 0
    %979 = vmatprep.subr.bf16.mxu0 0
    %980 = vmatpush1.bf16.msra.mxu0 0
    %981 = vmatprep.subr.bf16.mxu0 0
    %982 = vmatpush1.bf16.msra.mxu0 0
    %983 = vmatprep.subr.bf16.mxu0 0
    %984 = vmatpush1.bf16.msra.mxu0 0
    %985 = vmatprep.subr.bf16.mxu0 0
    %986 = vmatpush1.bf16.msra.mxu0 0
    %987 = vmatprep.subr.bf16.mxu0 0
    %988 = vmatpush1.bf16.msra.mxu0 %v241
    %989 = vmatprep.subr.bf16.mxu0 0
    %990 = vmatpush1.bf16.msra.mxu0 %v240
    %991 = vmatprep.subr.bf16.mxu0 0
    %992 = vmatpush2.bf16.msra.mxu0 0
    %993 = vmatprep.subr.bf16.mxu0 0
    %994 = vmatpush2.bf16.msra.mxu0 0
    %995 = vmatprep.subr.bf16.mxu0 0
    %996 = vmatpush2.bf16.msra.mxu0 0
    %997 = vmatprep.subr.bf16.mxu0 0
    %998 = vmatpush2.bf16.msra.mxu0 0
    %999 = vmatprep.subr.bf16.mxu0 0
    %1000 = vmatpush2.bf16.msra.mxu0 0
    %1001 = vmatprep.subr.bf16.mxu0 0
    %1002 = vmatpush2.bf16.msra.mxu0 0
    %1003 = vmatprep.subr.bf16.mxu0 0
    %1004 = vmatpush2.bf16.msra.mxu0 0
    %1005 = vmatprep.subr.bf16.mxu0 0
    %1006 = vmatpush2.bf16.msra.mxu0 0
    %1007 = vmatprep.mubr.bf16.mxu0 0
    %1008 = vmatmul.mubr.bf16.gmra.mxu0 %v973
    %v1009 = vpop.f32.mrf.mxu0
    %v1010 = vadd.f32 0.0, %v1009
    %v1011 = vpop.f32.mrf.mxu0
    %v1012 = vpop.f32.mrf.mxu0
    %v1013 = vpop.f32.mrf.mxu0
    %1014 = vdwg.mxu0
    %v1015 = vadd.f32 %v967, %v1010
    %v1016 = vtanh.pop %v1015
    %v1017 = vxor.u32 %v1015, 2147483648
    %v1018 = vmul.f32 %v1017, 1.442695
    %v1019 = vpow.pop %v1018
    %v1020 = vadd.f32 %v1019, 1.0
    %v1021 = vrcp.pop %v1020
    %v1022 = vmul.f32 1.0, %v1021
    %v1023 = vsel %vm69, %v1016, %v1022
    %v1024 = vmul.f32 %v1023, %v953
    %1026 = vrot.lane.b32.xlu0 %v1023, 64
    %v1027 = vpop.permute.xlu0 %1026
    %v1029 = vmul.f32 %v1023, %v1027
    %1031 = vrot.lane.b32.xlu0 %v1029, 32
    %v1032 = vpop.permute.xlu0 %1031
    %v1034 = vadd.f32 %v1024, %v1032
    %v1035 = vtanh.pop %v1034
    %1037 = vrot.lane.b32.xlu0 %v1035, 64
    %v1038 = vpop.permute.xlu0 %1037
    %v1040 = vmul.f32 %v1023, %v1038
    %1042 = vrot.lane.b32.xlu0 %v1040, 32
    %v1043 = vpop.permute.xlu0 %1042
    %s1045 = scalar_lea.vmem [#allocation2], 72
    %1046 = vst.msk [vmem:[%s1045] sm:$0xff] %vm132, %v1043
    %v1047 = vld [vmem:[#allocation2] sm:$0xff]
    %v1048 = vld [vmem:[#allocation2 + $0x8] sm:$0xff]
    %v1049 = vld [vmem:[#allocation2 + $0x10] sm:$0xff]
    %v1050 = vld [vmem:[#allocation2 + $0x18] sm:$0xff]
    %v1051 = vld [vmem:[#allocation2 + $0x20] sm:$0xff]
    %v1052 = vld [vmem:[#allocation2 + $0x28] sm:$0xff]
    %v1053 = vld [vmem:[#allocation2 + $0x30] sm:$0xff]
    %v1054 = vld [vmem:[#allocation2 + $0x38] sm:$0xff]
    %v1055 = vld [vmem:[#allocation2 + $0x40] sm:$0xff]
    %v1056 = vld [vmem:[#allocation2 + $0x48] sm:$0xff]
    %v1057 = vpack.c.bf16 %v1048, %v1047
    %v1058 = vpack.c.bf16 %v1050, %v1049
    %v1059 = vpack.c.bf16 %v1052, %v1051
    %v1060 = vpack.c.bf16 %v1054, %v1053
    %v1061 = vpack.c.bf16 %v1056, %v1055
    %s1062 = scalar_lea.vmem %s2, 16
    %v1063 = vld [vmem:[%s1062] sm:$0xf]
    %v1064 = vld [vmem:[%s1062 + $0x4] sm:$0xf]
    %v1065 = vld [vmem:[%s1062 + $0x8] sm:$0xf]
    %v1066 = vld [vmem:[%s1062 + $0xc] sm:$0xf]
    %s1067 = scalar_lea.vmem %s3, 16
    %v1068 = vld [vmem:[%s1067] sm:$0xf]
    %v1069 = vld [vmem:[%s1067 + $0x4] sm:$0xf]
    %v1070 = vld [vmem:[%s1067 + $0x8] sm:$0xf]
    %v1071 = vld [vmem:[%s1067 + $0xc] sm:$0xf]
    %s1072 = scalar_lea.vmem [#allocation4], 1
    %v1073 = vld [vmem:[%s1072] sm:$0x1]
    %v1075 = vlaneseq
    %v1076 = vshrl.u32 %v1075, 7
    %v1077 = vsub.s32 0, %v1076
    %v1078 = vrot.slane %v1073, %v1077
    %v1084 = vunpack.c.l.b16 %v1063
    %v1085 = vunpack.c.l.b16 %v1064
    %v1086 = vunpack.c.l.b16 %v1065
    %v1087 = vunpack.c.l.b16 %v1066
    %v1088 = vpack.c.b16 %v1085, %v1084
    %v1089 = vpack.c.b16 %v1087, %v1086
    %v1093 = vsel %vm132, %v1057, 0
    %v1096 = vsel %vm132, %v1058, 0
    %v1099 = vsel %vm132, %v1059, 0
    %v1102 = vsel %vm132, %v1060, 0
    %v1105 = vsel %vm132, %v1061, 0
    %1107 = vmatprep.subr.bf16.mxu0 0
    %1108 = vmatpush1.bf16.msra.mxu0 0
    %1109 = vmatprep.subr.bf16.mxu0 0
    %1110 = vmatpush1.bf16.msra.mxu0 0
    %1111 = vmatprep.subr.bf16.mxu0 0
    %1112 = vmatpush1.bf16.msra.mxu0 0
    %1113 = vmatprep.subr.bf16.mxu0 0
    %1114 = vmatpush1.bf16.msra.mxu0 0
    %1115 = vmatprep.subr.bf16.mxu0 0
    %1116 = vmatpush1.bf16.msra.mxu0 0
    %1117 = vmatprep.subr.bf16.mxu0 0
    %1118 = vmatpush1.bf16.msra.mxu0 0
    %1119 = vmatprep.subr.bf16.mxu0 0
    %1120 = vmatpush1.bf16.msra.mxu0 %v1089
    %1121 = vmatprep.subr.bf16.mxu0 0
    %1122 = vmatpush1.bf16.msra.mxu0 %v1088
    %1123 = vmatprep.subr.bf16.mxu0 0
    %1124 = vmatpush2.bf16.msra.mxu0 0
    %1125 = vmatprep.subr.bf16.mxu0 0
    %1126 = vmatpush2.bf16.msra.mxu0 0
    %1127 = vmatprep.subr.bf16.mxu0 0
    %1128 = vmatpush2.bf16.msra.mxu0 0
    %1129 = vmatprep.subr.bf16.mxu0 0
    %1130 = vmatpush2.bf16.msra.mxu0 0
    %1131 = vmatprep.subr.bf16.mxu0 0
    %1132 = vmatpush2.bf16.msra.mxu0 0
    %1133 = vmatprep.subr.bf16.mxu0 0
    %1134 = vmatpush2.bf16.msra.mxu0 0
    %1135 = vmatprep.subr.bf16.mxu0 0
    %1136 = vmatpush2.bf16.msra.mxu0 0
    %1137 = vmatprep.subr.bf16.mxu0 0
    %1138 = vmatpush2.bf16.msra.mxu0 0
    %1139 = vmatprep.mubr.bf16.mxu0 0
    %1140 = vmatmul.mubr.bf16.gmra.mxu0 %v1093
    %v1141 = vpop.f32.mrf.mxu0
    %v1142 = vadd.f32 %v1078, %v1141
    %v1143 = vpop.f32.mrf.mxu0
    %v1144 = vpop.f32.mrf.mxu0
    %v1145 = vadd.f32 %v1078, %v1144
    %v1146 = vpop.f32.mrf.mxu0
    %1147 = vmatprep.mubr.bf16.mxu0 0
    %1148 = vmatmul.mubr.bf16.gmra.mxu0 %v1096
    %v1149 = vpop.f32.mrf.mxu0
    %v1150 = vadd.f32 %v1078, %v1149
    %v1151 = vpop.f32.mrf.mxu0
    %v1152 = vpop.f32.mrf.mxu0
    %v1153 = vadd.f32 %v1078, %v1152
    %v1154 = vpop.f32.mrf.mxu0
    %1155 = vmatprep.mubr.bf16.mxu0 0
    %1156 = vmatmul.mubr.bf16.gmra.mxu0 %v1099
    %v1157 = vpop.f32.mrf.mxu0
    %v1158 = vadd.f32 %v1078, %v1157
    %v1159 = vpop.f32.mrf.mxu0
    %v1160 = vpop.f32.mrf.mxu0
    %v1161 = vadd.f32 %v1078, %v1160
    %v1162 = vpop.f32.mrf.mxu0
    %1163 = vmatprep.mubr.bf16.mxu0 0
    %1164 = vmatmul.mubr.bf16.gmra.mxu0 %v1102
    %v1165 = vpop.f32.mrf.mxu0
    %v1166 = vadd.f32 %v1078, %v1165
    %v1167 = vpop.f32.mrf.mxu0
    %v1168 = vpop.f32.mrf.mxu0
    %v1169 = vadd.f32 %v1078, %v1168
    %v1170 = vpop.f32.mrf.mxu0
    %1171 = vmatprep.mubr.bf16.mxu0 0
    %1172 = vmatmul.mubr.bf16.gmra.mxu0 %v1105
    %v1173 = vpop.f32.mrf.mxu0
    %v1174 = vadd.f32 %v1078, %v1173
    %v1175 = vpop.f32.mrf.mxu0
    %v1176 = vpop.f32.mrf.mxu0
    %v1177 = vadd.f32 %v1078, %v1176
    %v1178 = vpop.f32.mrf.mxu0
    %1179 = vdwg.mxu0
    %1180 = vst [vmem:[#allocation3] sm:$0xff] %v1142
    %1181 = vst [vmem:[#allocation3 + $0x8] sm:$0xff] %v1145
    %1182 = vst [vmem:[#allocation3 + $0x10] sm:$0xff] %v1150
    %1183 = vst [vmem:[#allocation3 + $0x18] sm:$0xff] %v1153
    %1184 = vst [vmem:[#allocation3 + $0x20] sm:$0xff] %v1158
    %1185 = vst [vmem:[#allocation3 + $0x28] sm:$0xff] %v1161
    %1186 = vst [vmem:[#allocation3 + $0x30] sm:$0xff] %v1166
    %1187 = vst [vmem:[#allocation3 + $0x38] sm:$0xff] %v1169
    %1188 = vst [vmem:[#allocation3 + $0x40] sm:$0xff] %v1174
    %1189 = vst [vmem:[#allocation3 + $0x48] sm:$0xff] %v1177
    %v1190 = vld [vmem:[#allocation3] sm:$0xff]
    %v1195 = vunpack.c.l.b16 %v1068
    %v1196 = vunpack.c.l.b16 %v1069
    %v1197 = vunpack.c.l.b16 %v1070
    %v1198 = vunpack.c.l.b16 %v1071
    %v1199 = vpack.c.b16 %v1196, %v1195
    %v1200 = vpack.c.b16 %v1198, %v1197
    %1203 = vmatprep.subr.bf16.mxu0 0
    %1204 = vmatpush1.bf16.msra.mxu0 0
    %1205 = vmatprep.subr.bf16.mxu0 0
    %1206 = vmatpush1.bf16.msra.mxu0 0
    %1207 = vmatprep.subr.bf16.mxu0 0
    %1208 = vmatpush1.bf16.msra.mxu0 0
    %1209 = vmatprep.subr.bf16.mxu0 0
    %1210 = vmatpush1.bf16.msra.mxu0 0
    %1211 = vmatprep.subr.bf16.mxu0 0
    %1212 = vmatpush1.bf16.msra.mxu0 0
    %1213 = vmatprep.subr.bf16.mxu0 0
    %1214 = vmatpush1.bf16.msra.mxu0 0
    %1215 = vmatprep.subr.bf16.mxu0 0
    %1216 = vmatpush1.bf16.msra.mxu0 %v1200
    %1217 = vmatprep.subr.bf16.mxu0 0
    %1218 = vmatpush1.bf16.msra.mxu0 %v1199
    %1219 = vmatprep.subr.bf16.mxu0 0
    %1220 = vmatpush2.bf16.msra.mxu0 0
    %1221 = vmatprep.subr.bf16.mxu0 0
    %1222 = vmatpush2.bf16.msra.mxu0 0
    %1223 = vmatprep.subr.bf16.mxu0 0
    %1224 = vmatpush2.bf16.msra.mxu0 0
    %1225 = vmatprep.subr.bf16.mxu0 0
    %1226 = vmatpush2.bf16.msra.mxu0 0
    %1227 = vmatprep.subr.bf16.mxu0 0
    %1228 = vmatpush2.bf16.msra.mxu0 0
    %1229 = vmatprep.subr.bf16.mxu0 0
    %1230 = vmatpush2.bf16.msra.mxu0 0
    %1231 = vmatprep.subr.bf16.mxu0 0
    %1232 = vmatpush2.bf16.msra.mxu0 0
    %1233 = vmatprep.subr.bf16.mxu0 0
    %1234 = vmatpush2.bf16.msra.mxu0 0
    %1235 = vmatprep.mubr.bf16.mxu0 0
    %1236 = vmatmul.mubr.bf16.gmra.mxu0 %v245
    %v1237 = vpop.f32.mrf.mxu0
    %v1238 = vadd.f32 0.0, %v1237
    %v1239 = vpop.f32.mrf.mxu0
    %v1240 = vpop.f32.mrf.mxu0
    %v1241 = vpop.f32.mrf.mxu0
    %1242 = vdwg.mxu0
    %v1243 = vadd.f32 %v1190, %v1238
    %v1244 = vtanh.pop %v1243
    %v1245 = vxor.u32 %v1243, 2147483648
    %v1246 = vmul.f32 %v1245, 1.442695
    %v1247 = vpow.pop %v1246
    %v1248 = vadd.f32 %v1247, 1.0
    %v1249 = vrcp.pop %v1248
    %v1250 = vmul.f32 1.0, %v1249
    %v1251 = vsel %vm69, %v1244, %v1250
    %v1252 = vmul.f32 %v1251, 0.0
    %1254 = vrot.lane.b32.xlu0 %v1251, 64
    %v1255 = vpop.permute.xlu0 %1254
    %v1257 = vmul.f32 %v1251, %v1255
    %1259 = vrot.lane.b32.xlu0 %v1257, 32
    %v1260 = vpop.permute.xlu0 %1259
    %v1262 = vadd.f32 %v1252, %v1260
    %v1263 = vtanh.pop %v1262
    %1265 = vrot.lane.b32.xlu0 %v1263, 64
    %v1266 = vpop.permute.xlu0 %1265
    %v1268 = vmul.f32 %v1251, %v1266
    %v1269 = vld [vmem:[%s318] sm:$0xff]
    %v1270 = vpack.c.bf16 %v1268, %v1268
    %1272 = vrot.lane.b32.xlu0 %v1270, 32
    %v1273 = vpop.permute.xlu0 %1272
    %v1275 = vsel %vm132, %v1273, 0
    %1277 = vmatprep.subr.bf16.mxu0 0
    %1278 = vmatpush1.bf16.msra.mxu0 0
    %1279 = vmatprep.subr.bf16.mxu0 0
    %1280 = vmatpush1.bf16.msra.mxu0 0
    %1281 = vmatprep.subr.bf16.mxu0 0
    %1282 = vmatpush1.bf16.msra.mxu0 0
    %1283 = vmatprep.subr.bf16.mxu0 0
    %1284 = vmatpush1.bf16.msra.mxu0 0
    %1285 = vmatprep.subr.bf16.mxu0 0
    %1286 = vmatpush1.bf16.msra.mxu0 0
    %1287 = vmatprep.subr.bf16.mxu0 0
    %1288 = vmatpush1.bf16.msra.mxu0 0
    %1289 = vmatprep.subr.bf16.mxu0 0
    %1290 = vmatpush1.bf16.msra.mxu0 %v1200
    %1291 = vmatprep.subr.bf16.mxu0 0
    %1292 = vmatpush1.bf16.msra.mxu0 %v1199
    %1293 = vmatprep.subr.bf16.mxu0 0
    %1294 = vmatpush2.bf16.msra.mxu0 0
    %1295 = vmatprep.subr.bf16.mxu0 0
    %1296 = vmatpush2.bf16.msra.mxu0 0
    %1297 = vmatprep.subr.bf16.mxu0 0
    %1298 = vmatpush2.bf16.msra.mxu0 0
    %1299 = vmatprep.subr.bf16.mxu0 0
    %1300 = vmatpush2.bf16.msra.mxu0 0
    %1301 = vmatprep.subr.bf16.mxu0 0
    %1302 = vmatpush2.bf16.msra.mxu0 0
    %1303 = vmatprep.subr.bf16.mxu0 0
    %1304 = vmatpush2.bf16.msra.mxu0 0
    %1305 = vmatprep.subr.bf16.mxu0 0
    %1306 = vmatpush2.bf16.msra.mxu0 0
    %1307 = vmatprep.subr.bf16.mxu0 0
    %1308 = vmatpush2.bf16.msra.mxu0 0
    %1309 = vmatprep.mubr.bf16.mxu0 0
    %1310 = vmatmul.mubr.bf16.gmra.mxu0 %v1275
    %v1311 = vpop.f32.mrf.mxu0
    %v1312 = vadd.f32 0.0, %v1311
    %v1313 = vpop.f32.mrf.mxu0
    %v1314 = vpop.f32.mrf.mxu0
    %v1315 = vpop.f32.mrf.mxu0
    %1316 = vdwg.mxu0
    %v1317 = vadd.f32 %v1269, %v1312
    %v1318 = vtanh.pop %v1317
    %v1319 = vxor.u32 %v1317, 2147483648
    %v1320 = vmul.f32 %v1319, 1.442695
    %v1321 = vpow.pop %v1320
    %v1322 = vadd.f32 %v1321, 1.0
    %v1323 = vrcp.pop %v1322
    %v1324 = vmul.f32 1.0, %v1323
    %v1325 = vsel %vm69, %v1318, %v1324
    %v1326 = vmul.f32 %v1325, %v1262
    %1328 = vrot.lane.b32.xlu0 %v1325, 64
    %v1329 = vpop.permute.xlu0 %1328
    %v1331 = vmul.f32 %v1325, %v1329
    %1333 = vrot.lane.b32.xlu0 %v1331, 32
    %v1334 = vpop.permute.xlu0 %1333
    %v1336 = vadd.f32 %v1326, %v1334
    %v1337 = vtanh.pop %v1336
    %1339 = vrot.lane.b32.xlu0 %v1337, 64
    %v1340 = vpop.permute.xlu0 %1339
    %v1342 = vmul.f32 %v1325, %v1340
    %v1343 = vld [vmem:[%s399] sm:$0xff]
    %v1344 = vpack.c.bf16 %v1342, %v1342
    %1346 = vrot.lane.b32.xlu0 %v1344, 32
    %v1347 = vpop.permute.xlu0 %1346
    %v1349 = vsel %vm132, %v1347, 0
    %1351 = vmatprep.subr.bf16.mxu0 0
    %1352 = vmatpush1.bf16.msra.mxu0 0
    %1353 = vmatprep.subr.bf16.mxu0 0
    %1354 = vmatpush1.bf16.msra.mxu0 0
    %1355 = vmatprep.subr.bf16.mxu0 0
    %1356 = vmatpush1.bf16.msra.mxu0 0
    %1357 = vmatprep.subr.bf16.mxu0 0
    %1358 = vmatpush1.bf16.msra.mxu0 0
    %1359 = vmatprep.subr.bf16.mxu0 0
    %1360 = vmatpush1.bf16.msra.mxu0 0
    %1361 = vmatprep.subr.bf16.mxu0 0
    %1362 = vmatpush1.bf16.msra.mxu0 0
    %1363 = vmatprep.subr.bf16.mxu0 0
    %1364 = vmatpush1.bf16.msra.mxu0 %v1200
    %1365 = vmatprep.subr.bf16.mxu0 0
    %1366 = vmatpush1.bf16.msra.mxu0 %v1199
    %1367 = vmatprep.subr.bf16.mxu0 0
    %1368 = vmatpush2.bf16.msra.mxu0 0
    %1369 = vmatprep.subr.bf16.mxu0 0
    %1370 = vmatpush2.bf16.msra.mxu0 0
    %1371 = vmatprep.subr.bf16.mxu0 0
    %1372 = vmatpush2.bf16.msra.mxu0 0
    %1373 = vmatprep.subr.bf16.mxu0 0
    %1374 = vmatpush2.bf16.msra.mxu0 0
    %1375 = vmatprep.subr.bf16.mxu0 0
    %1376 = vmatpush2.bf16.msra.mxu0 0
    %1377 = vmatprep.subr.bf16.mxu0 0
    %1378 = vmatpush2.bf16.msra.mxu0 0
    %1379 = vmatprep.subr.bf16.mxu0 0
    %1380 = vmatpush2.bf16.msra.mxu0 0
    %1381 = vmatprep.subr.bf16.mxu0 0
    %1382 = vmatpush2.bf16.msra.mxu0 0
    %1383 = vmatprep.mubr.bf16.mxu0 0
    %1384 = vmatmul.mubr.bf16.gmra.mxu0 %v1349
    %v1385 = vpop.f32.mrf.mxu0
    %v1386 = vadd.f32 0.0, %v1385
    %v1387 = vpop.f32.mrf.mxu0
    %v1388 = vpop.f32.mrf.mxu0
    %v1389 = vpop.f32.mrf.mxu0
    %1390 = vdwg.mxu0
    %v1391 = vadd.f32 %v1343, %v1386
    %v1392 = vtanh.pop %v1391
    %v1393 = vxor.u32 %v1391, 2147483648
    %v1394 = vmul.f32 %v1393, 1.442695
    %v1395 = vpow.pop %v1394
    %v1396 = vadd.f32 %v1395, 1.0
    %v1397 = vrcp.pop %v1396
    %v1398 = vmul.f32 1.0, %v1397
    %v1399 = vsel %vm69, %v1392, %v1398
    %v1400 = vmul.f32 %v1399, %v1336
    %1402 = vrot.lane.b32.xlu0 %v1399, 64
    %v1403 = vpop.permute.xlu0 %1402
    %v1405 = vmul.f32 %v1399, %v1403
    %1407 = vrot.lane.b32.xlu0 %v1405, 32
    %v1408 = vpop.permute.xlu0 %1407
    %v1410 = vadd.f32 %v1400, %v1408
    %v1411 = vtanh.pop %v1410
    %1413 = vrot.lane.b32.xlu0 %v1411, 64
    %v1414 = vpop.permute.xlu0 %1413
    %v1416 = vmul.f32 %v1399, %v1414
    %v1417 = vld [vmem:[%s480] sm:$0xff]
    %v1418 = vpack.c.bf16 %v1416, %v1416
    %1420 = vrot.lane.b32.xlu0 %v1418, 32
    %v1421 = vpop.permute.xlu0 %1420
    %v1423 = vsel %vm132, %v1421, 0
    %1425 = vmatprep.subr.bf16.mxu0 0
    %1426 = vmatpush1.bf16.msra.mxu0 0
    %1427 = vmatprep.subr.bf16.mxu0 0
    %1428 = vmatpush1.bf16.msra.mxu0 0
    %1429 = vmatprep.subr.bf16.mxu0 0
    %1430 = vmatpush1.bf16.msra.mxu0 0
    %1431 = vmatprep.subr.bf16.mxu0 0
    %1432 = vmatpush1.bf16.msra.mxu0 0
    %1433 = vmatprep.subr.bf16.mxu0 0
    %1434 = vmatpush1.bf16.msra.mxu0 0
    %1435 = vmatprep.subr.bf16.mxu0 0
    %1436 = vmatpush1.bf16.msra.mxu0 0
    %1437 = vmatprep.subr.bf16.mxu0 0
    %1438 = vmatpush1.bf16.msra.mxu0 %v1200
    %1439 = vmatprep.subr.bf16.mxu0 0
    %1440 = vmatpush1.bf16.msra.mxu0 %v1199
    %1441 = vmatprep.subr.bf16.mxu0 0
    %1442 = vmatpush2.bf16.msra.mxu0 0
    %1443 = vmatprep.subr.bf16.mxu0 0
    %1444 = vmatpush2.bf16.msra.mxu0 0
    %1445 = vmatprep.subr.bf16.mxu0 0
    %1446 = vmatpush2.bf16.msra.mxu0 0
    %1447 = vmatprep.subr.bf16.mxu0 0
    %1448 = vmatpush2.bf16.msra.mxu0 0
    %1449 = vmatprep.subr.bf16.mxu0 0
    %1450 = vmatpush2.bf16.msra.mxu0 0
    %1451 = vmatprep.subr.bf16.mxu0 0
    %1452 = vmatpush2.bf16.msra.mxu0 0
    %1453 = vmatprep.subr.bf16.mxu0 0
    %1454 = vmatpush2.bf16.msra.mxu0 0
    %1455 = vmatprep.subr.bf16.mxu0 0
    %1456 = vmatpush2.bf16.msra.mxu0 0
    %1457 = vmatprep.mubr.bf16.mxu0 0
    %1458 = vmatmul.mubr.bf16.gmra.mxu0 %v1423
    %v1459 = vpop.f32.mrf.mxu0
    %v1460 = vadd.f32 0.0, %v1459
    %v1461 = vpop.f32.mrf.mxu0
    %v1462 = vpop.f32.mrf.mxu0
    %v1463 = vpop.f32.mrf.mxu0
    %1464 = vdwg.mxu0
    %v1465 = vadd.f32 %v1417, %v1460
    %v1466 = vtanh.pop %v1465
    %v1467 = vxor.u32 %v1465, 2147483648
    %v1468 = vmul.f32 %v1467, 1.442695
    %v1469 = vpow.pop %v1468
    %v1470 = vadd.f32 %v1469, 1.0
    %v1471 = vrcp.pop %v1470
    %v1472 = vmul.f32 1.0, %v1471
    %v1473 = vsel %vm69, %v1466, %v1472
    %v1474 = vmul.f32 %v1473, %v1410
    %1476 = vrot.lane.b32.xlu0 %v1473, 64
    %v1477 = vpop.permute.xlu0 %1476
    %v1479 = vmul.f32 %v1473, %v1477
    %1481 = vrot.lane.b32.xlu0 %v1479, 32
    %v1482 = vpop.permute.xlu0 %1481
    %v1484 = vadd.f32 %v1474, %v1482
    %v1485 = vtanh.pop %v1484
    %1487 = vrot.lane.b32.xlu0 %v1485, 64
    %v1488 = vpop.permute.xlu0 %1487
    %v1490 = vmul.f32 %v1473, %v1488
    %v1491 = vld [vmem:[%s561] sm:$0xff]
    %v1492 = vpack.c.bf16 %v1490, %v1490
    %1494 = vrot.lane.b32.xlu0 %v1492, 32
    %v1495 = vpop.permute.xlu0 %1494
    %v1497 = vsel %vm132, %v1495, 0
    %1499 = vmatprep.subr.bf16.mxu0 0
    %1500 = vmatpush1.bf16.msra.mxu0 0
    %1501 = vmatprep.subr.bf16.mxu0 0
    %1502 = vmatpush1.bf16.msra.mxu0 0
    %1503 = vmatprep.subr.bf16.mxu0 0
    %1504 = vmatpush1.bf16.msra.mxu0 0
    %1505 = vmatprep.subr.bf16.mxu0 0
    %1506 = vmatpush1.bf16.msra.mxu0 0
    %1507 = vmatprep.subr.bf16.mxu0 0
    %1508 = vmatpush1.bf16.msra.mxu0 0
    %1509 = vmatprep.subr.bf16.mxu0 0
    %1510 = vmatpush1.bf16.msra.mxu0 0
    %1511 = vmatprep.subr.bf16.mxu0 0
    %1512 = vmatpush1.bf16.msra.mxu0 %v1200
    %1513 = vmatprep.subr.bf16.mxu0 0
    %1514 = vmatpush1.bf16.msra.mxu0 %v1199
    %1515 = vmatprep.subr.bf16.mxu0 0
    %1516 = vmatpush2.bf16.msra.mxu0 0
    %1517 = vmatprep.subr.bf16.mxu0 0
    %1518 = vmatpush2.bf16.msra.mxu0 0
    %1519 = vmatprep.subr.bf16.mxu0 0
    %1520 = vmatpush2.bf16.msra.mxu0 0
    %1521 = vmatprep.subr.bf16.mxu0 0
    %1522 = vmatpush2.bf16.msra.mxu0 0
    %1523 = vmatprep.subr.bf16.mxu0 0
    %1524 = vmatpush2.bf16.msra.mxu0 0
    %1525 = vmatprep.subr.bf16.mxu0 0
    %1526 = vmatpush2.bf16.msra.mxu0 0
    %1527 = vmatprep.subr.bf16.mxu0 0
    %1528 = vmatpush2.bf16.msra.mxu0 0
    %1529 = vmatprep.subr.bf16.mxu0 0
    %1530 = vmatpush2.bf16.msra.mxu0 0
    %1531 = vmatprep.mubr.bf16.mxu0 0
    %1532 = vmatmul.mubr.bf16.gmra.mxu0 %v1497
    %v1533 = vpop.f32.mrf.mxu0
    %v1534 = vadd.f32 0.0, %v1533
    %v1535 = vpop.f32.mrf.mxu0
    %v1536 = vpop.f32.mrf.mxu0
    %v1537 = vpop.f32.mrf.mxu0
    %1538 = vdwg.mxu0
    %v1539 = vadd.f32 %v1491, %v1534
    %v1540 = vtanh.pop %v1539
    %v1541 = vxor.u32 %v1539, 2147483648
    %v1542 = vmul.f32 %v1541, 1.442695
    %v1543 = vpow.pop %v1542
    %v1544 = vadd.f32 %v1543, 1.0
    %v1545 = vrcp.pop %v1544
    %v1546 = vmul.f32 1.0, %v1545
    %v1547 = vsel %vm69, %v1540, %v1546
    %v1548 = vmul.f32 %v1547, %v1484
    %1550 = vrot.lane.b32.xlu0 %v1547, 64
    %v1551 = vpop.permute.xlu0 %1550
    %v1553 = vmul.f32 %v1547, %v1551
    %1555 = vrot.lane.b32.xlu0 %v1553, 32
    %v1556 = vpop.permute.xlu0 %1555
    %v1558 = vadd.f32 %v1548, %v1556
    %v1559 = vtanh.pop %v1558
    %1561 = vrot.lane.b32.xlu0 %v1559, 64
    %v1562 = vpop.permute.xlu0 %1561
    %v1564 = vmul.f32 %v1547, %v1562
    %v1565 = vld [vmem:[%s642] sm:$0xff]
    %v1566 = vpack.c.bf16 %v1564, %v1564
    %1568 = vrot.lane.b32.xlu0 %v1566, 32
    %v1569 = vpop.permute.xlu0 %1568
    %v1571 = vsel %vm132, %v1569, 0
    %1573 = vmatprep.subr.bf16.mxu0 0
    %1574 = vmatpush1.bf16.msra.mxu0 0
    %1575 = vmatprep.subr.bf16.mxu0 0
    %1576 = vmatpush1.bf16.msra.mxu0 0
    %1577 = vmatprep.subr.bf16.mxu0 0
    %1578 = vmatpush1.bf16.msra.mxu0 0
    %1579 = vmatprep.subr.bf16.mxu0 0
    %1580 = vmatpush1.bf16.msra.mxu0 0
    %1581 = vmatprep.subr.bf16.mxu0 0
    %1582 = vmatpush1.bf16.msra.mxu0 0
    %1583 = vmatprep.subr.bf16.mxu0 0
    %1584 = vmatpush1.bf16.msra.mxu0 0
    %1585 = vmatprep.subr.bf16.mxu0 0
    %1586 = vmatpush1.bf16.msra.mxu0 %v1200
    %1587 = vmatprep.subr.bf16.mxu0 0
    %1588 = vmatpush1.bf16.msra.mxu0 %v1199
    %1589 = vmatprep.subr.bf16.mxu0 0
    %1590 = vmatpush2.bf16.msra.mxu0 0
    %1591 = vmatprep.subr.bf16.mxu0 0
    %1592 = vmatpush2.bf16.msra.mxu0 0
    %1593 = vmatprep.subr.bf16.mxu0 0
    %1594 = vmatpush2.bf16.msra.mxu0 0
    %1595 = vmatprep.subr.bf16.mxu0 0
    %1596 = vmatpush2.bf16.msra.mxu0 0
    %1597 = vmatprep.subr.bf16.mxu0 0
    %1598 = vmatpush2.bf16.msra.mxu0 0
    %1599 = vmatprep.subr.bf16.mxu0 0
    %1600 = vmatpush2.bf16.msra.mxu0 0
    %1601 = vmatprep.subr.bf16.mxu0 0
    %1602 = vmatpush2.bf16.msra.mxu0 0
    %1603 = vmatprep.subr.bf16.mxu0 0
    %1604 = vmatpush2.bf16.msra.mxu0 0
    %1605 = vmatprep.mubr.bf16.mxu0 0
    %1606 = vmatmul.mubr.bf16.gmra.mxu0 %v1571
    %v1607 = vpop.f32.mrf.mxu0
    %v1608 = vadd.f32 0.0, %v1607
    %v1609 = vpop.f32.mrf.mxu0
    %v1610 = vpop.f32.mrf.mxu0
    %v1611 = vpop.f32.mrf.mxu0
    %1612 = vdwg.mxu0
    %v1613 = vadd.f32 %v1565, %v1608
    %v1614 = vtanh.pop %v1613
    %v1615 = vxor.u32 %v1613, 2147483648
    %v1616 = vmul.f32 %v1615, 1.442695
    %v1617 = vpow.pop %v1616
    %v1618 = vadd.f32 %v1617, 1.0
    %v1619 = vrcp.pop %v1618
    %v1620 = vmul.f32 1.0, %v1619
    %v1621 = vsel %vm69, %v1614, %v1620
    %v1622 = vmul.f32 %v1621, %v1558
    %1624 = vrot.lane.b32.xlu0 %v1621, 64
    %v1625 = vpop.permute.xlu0 %1624
    %v1627 = vmul.f32 %v1621, %v1625
    %1629 = vrot.lane.b32.xlu0 %v1627, 32
    %v1630 = vpop.permute.xlu0 %1629
    %v1632 = vadd.f32 %v1622, %v1630
    %v1633 = vtanh.pop %v1632
    %1635 = vrot.lane.b32.xlu0 %v1633, 64
    %v1636 = vpop.permute.xlu0 %1635
    %v1638 = vmul.f32 %v1621, %v1636
    %v1639 = vld [vmem:[%s723] sm:$0xff]
    %v1640 = vpack.c.bf16 %v1638, %v1638
    %1642 = vrot.lane.b32.xlu0 %v1640, 32
    %v1643 = vpop.permute.xlu0 %1642
    %v1645 = vsel %vm132, %v1643, 0
    %1647 = vmatprep.subr.bf16.mxu0 0
    %1648 = vmatpush1.bf16.msra.mxu0 0
    %1649 = vmatprep.subr.bf16.mxu0 0
    %1650 = vmatpush1.bf16.msra.mxu0 0
    %1651 = vmatprep.subr.bf16.mxu0 0
    %1652 = vmatpush1.bf16.msra.mxu0 0
    %1653 = vmatprep.subr.bf16.mxu0 0
    %1654 = vmatpush1.bf16.msra.mxu0 0
    %1655 = vmatprep.subr.bf16.mxu0 0
    %1656 = vmatpush1.bf16.msra.mxu0 0
    %1657 = vmatprep.subr.bf16.mxu0 0
    %1658 = vmatpush1.bf16.msra.mxu0 0
    %1659 = vmatprep.subr.bf16.mxu0 0
    %1660 = vmatpush1.bf16.msra.mxu0 %v1200
    %1661 = vmatprep.subr.bf16.mxu0 0
    %1662 = vmatpush1.bf16.msra.mxu0 %v1199
    %1663 = vmatprep.subr.bf16.mxu0 0
    %1664 = vmatpush2.bf16.msra.mxu0 0
    %1665 = vmatprep.subr.bf16.mxu0 0
    %1666 = vmatpush2.bf16.msra.mxu0 0
    %1667 = vmatprep.subr.bf16.mxu0 0
    %1668 = vmatpush2.bf16.msra.mxu0 0
    %1669 = vmatprep.subr.bf16.mxu0 0
    %1670 = vmatpush2.bf16.msra.mxu0 0
    %1671 = vmatprep.subr.bf16.mxu0 0
    %1672 = vmatpush2.bf16.msra.mxu0 0
    %1673 = vmatprep.subr.bf16.mxu0 0
    %1674 = vmatpush2.bf16.msra.mxu0 0
    %1675 = vmatprep.subr.bf16.mxu0 0
    %1676 = vmatpush2.bf16.msra.mxu0 0
    %1677 = vmatprep.subr.bf16.mxu0 0
    %1678 = vmatpush2.bf16.msra.mxu0 0
    %1679 = vmatprep.mubr.bf16.mxu0 0
    %1680 = vmatmul.mubr.bf16.gmra.mxu0 %v1645
    %v1681 = vpop.f32.mrf.mxu0
    %v1682 = vadd.f32 0.0, %v1681
    %v1683 = vpop.f32.mrf.mxu0
    %v1684 = vpop.f32.mrf.mxu0
    %v1685 = vpop.f32.mrf.mxu0
    %1686 = vdwg.mxu0
    %v1687 = vadd.f32 %v1639, %v1682
    %v1688 = vtanh.pop %v1687
    %v1689 = vxor.u32 %v1687, 2147483648
    %v1690 = vmul.f32 %v1689, 1.442695
    %v1691 = vpow.pop %v1690
    %v1692 = vadd.f32 %v1691, 1.0
    %v1693 = vrcp.pop %v1692
    %v1694 = vmul.f32 1.0, %v1693
    %v1695 = vsel %vm69, %v1688, %v1694
    %v1696 = vmul.f32 %v1695, %v1632
    %1698 = vrot.lane.b32.xlu0 %v1695, 64
    %v1699 = vpop.permute.xlu0 %1698
    %v1701 = vmul.f32 %v1695, %v1699
    %1703 = vrot.lane.b32.xlu0 %v1701, 32
    %v1704 = vpop.permute.xlu0 %1703
    %v1706 = vadd.f32 %v1696, %v1704
    %v1707 = vtanh.pop %v1706
    %1709 = vrot.lane.b32.xlu0 %v1707, 64
    %v1710 = vpop.permute.xlu0 %1709
    %v1712 = vmul.f32 %v1695, %v1710
    %v1713 = vld [vmem:[%s804] sm:$0xff]
    %v1714 = vpack.c.bf16 %v1712, %v1712
    %1716 = vrot.lane.b32.xlu0 %v1714, 32
    %v1717 = vpop.permute.xlu0 %1716
    %v1719 = vsel %vm132, %v1717, 0
    %1721 = vmatprep.subr.bf16.mxu0 0
    %1722 = vmatpush1.bf16.msra.mxu0 0
    %1723 = vmatprep.subr.bf16.mxu0 0
    %1724 = vmatpush1.bf16.msra.mxu0 0
    %1725 = vmatprep.subr.bf16.mxu0 0
    %1726 = vmatpush1.bf16.msra.mxu0 0
    %1727 = vmatprep.subr.bf16.mxu0 0
    %1728 = vmatpush1.bf16.msra.mxu0 0
    %1729 = vmatprep.subr.bf16.mxu0 0
    %1730 = vmatpush1.bf16.msra.mxu0 0
    %1731 = vmatprep.subr.bf16.mxu0 0
    %1732 = vmatpush1.bf16.msra.mxu0 0
    %1733 = vmatprep.subr.bf16.mxu0 0
    %1734 = vmatpush1.bf16.msra.mxu0 %v1200
    %1735 = vmatprep.subr.bf16.mxu0 0
    %1736 = vmatpush1.bf16.msra.mxu0 %v1199
    %1737 = vmatprep.subr.bf16.mxu0 0
    %1738 = vmatpush2.bf16.msra.mxu0 0
    %1739 = vmatprep.subr.bf16.mxu0 0
    %1740 = vmatpush2.bf16.msra.mxu0 0
    %1741 = vmatprep.subr.bf16.mxu0 0
    %1742 = vmatpush2.bf16.msra.mxu0 0
    %1743 = vmatprep.subr.bf16.mxu0 0
    %1744 = vmatpush2.bf16.msra.mxu0 0
    %1745 = vmatprep.subr.bf16.mxu0 0
    %1746 = vmatpush2.bf16.msra.mxu0 0
    %1747 = vmatprep.subr.bf16.mxu0 0
    %1748 = vmatpush2.bf16.msra.mxu0 0
    %1749 = vmatprep.subr.bf16.mxu0 0
    %1750 = vmatpush2.bf16.msra.mxu0 0
    %1751 = vmatprep.subr.bf16.mxu0 0
    %1752 = vmatpush2.bf16.msra.mxu0 0
    %1753 = vmatprep.mubr.bf16.mxu0 0
    %1754 = vmatmul.mubr.bf16.gmra.mxu0 %v1719
    %v1755 = vpop.f32.mrf.mxu0
    %v1756 = vadd.f32 0.0, %v1755
    %v1757 = vpop.f32.mrf.mxu0
    %v1758 = vpop.f32.mrf.mxu0
    %v1759 = vpop.f32.mrf.mxu0
    %1760 = vdwg.mxu0
    %v1761 = vadd.f32 %v1713, %v1756
    %v1762 = vtanh.pop %v1761
    %v1763 = vxor.u32 %v1761, 2147483648
    %v1764 = vmul.f32 %v1763, 1.442695
    %v1765 = vpow.pop %v1764
    %v1766 = vadd.f32 %v1765, 1.0
    %v1767 = vrcp.pop %v1766
    %v1768 = vmul.f32 1.0, %v1767
    %v1769 = vsel %vm69, %v1762, %v1768
    %v1770 = vmul.f32 %v1769, %v1706
    %1772 = vrot.lane.b32.xlu0 %v1769, 64
    %v1773 = vpop.permute.xlu0 %1772
    %v1775 = vmul.f32 %v1769, %v1773
    %1777 = vrot.lane.b32.xlu0 %v1775, 32
    %v1778 = vpop.permute.xlu0 %1777
    %v1780 = vadd.f32 %v1770, %v1778
    %v1781 = vtanh.pop %v1780
    %1783 = vrot.lane.b32.xlu0 %v1781, 64
    %v1784 = vpop.permute.xlu0 %1783
    %v1786 = vmul.f32 %v1769, %v1784
    %v1787 = vld [vmem:[%s885] sm:$0xff]
    %v1788 = vpack.c.bf16 %v1786, %v1786
    %1790 = vrot.lane.b32.xlu0 %v1788, 32
    %v1791 = vpop.permute.xlu0 %1790
    %v1793 = vsel %vm132, %v1791, 0
    %1795 = vmatprep.subr.bf16.mxu0 0
    %1796 = vmatpush1.bf16.msra.mxu0 0
    %1797 = vmatprep.subr.bf16.mxu0 0
    %1798 = vmatpush1.bf16.msra.mxu0 0
    %1799 = vmatprep.subr.bf16.mxu0 0
    %1800 = vmatpush1.bf16.msra.mxu0 0
    %1801 = vmatprep.subr.bf16.mxu0 0
    %1802 = vmatpush1.bf16.msra.mxu0 0
    %1803 = vmatprep.subr.bf16.mxu0 0
    %1804 = vmatpush1.bf16.msra.mxu0 0
    %1805 = vmatprep.subr.bf16.mxu0 0
    %1806 = vmatpush1.bf16.msra.mxu0 0
    %1807 = vmatprep.subr.bf16.mxu0 0
    %1808 = vmatpush1.bf16.msra.mxu0 %v1200
    %1809 = vmatprep.subr.bf16.mxu0 0
    %1810 = vmatpush1.bf16.msra.mxu0 %v1199
    %1811 = vmatprep.subr.bf16.mxu0 0
    %1812 = vmatpush2.bf16.msra.mxu0 0
    %1813 = vmatprep.subr.bf16.mxu0 0
    %1814 = vmatpush2.bf16.msra.mxu0 0
    %1815 = vmatprep.subr.bf16.mxu0 0
    %1816 = vmatpush2.bf16.msra.mxu0 0
    %1817 = vmatprep.subr.bf16.mxu0 0
    %1818 = vmatpush2.bf16.msra.mxu0 0
    %1819 = vmatprep.subr.bf16.mxu0 0
    %1820 = vmatpush2.bf16.msra.mxu0 0
    %1821 = vmatprep.subr.bf16.mxu0 0
    %1822 = vmatpush2.bf16.msra.mxu0 0
    %1823 = vmatprep.subr.bf16.mxu0 0
    %1824 = vmatpush2.bf16.msra.mxu0 0
    %1825 = vmatprep.subr.bf16.mxu0 0
    %1826 = vmatpush2.bf16.msra.mxu0 0
    %1827 = vmatprep.mubr.bf16.mxu0 0
    %1828 = vmatmul.mubr.bf16.gmra.mxu0 %v1793
    %v1829 = vpop.f32.mrf.mxu0
    %v1830 = vadd.f32 0.0, %v1829
    %v1831 = vpop.f32.mrf.mxu0
    %v1832 = vpop.f32.mrf.mxu0
    %v1833 = vpop.f32.mrf.mxu0
    %1834 = vdwg.mxu0
    %v1835 = vadd.f32 %v1787, %v1830
    %v1836 = vtanh.pop %v1835
    %v1837 = vxor.u32 %v1835, 2147483648
    %v1838 = vmul.f32 %v1837, 1.442695
    %v1839 = vpow.pop %v1838
    %v1840 = vadd.f32 %v1839, 1.0
    %v1841 = vrcp.pop %v1840
    %v1842 = vmul.f32 1.0, %v1841
    %v1843 = vsel %vm69, %v1836, %v1842
    %v1844 = vmul.f32 %v1843, %v1780
    %1846 = vrot.lane.b32.xlu0 %v1843, 64
    %v1847 = vpop.permute.xlu0 %1846
    %v1849 = vmul.f32 %v1843, %v1847
    %1851 = vrot.lane.b32.xlu0 %v1849, 32
    %v1852 = vpop.permute.xlu0 %1851
    %v1854 = vadd.f32 %v1844, %v1852
    %v1855 = vtanh.pop %v1854
    %1857 = vrot.lane.b32.xlu0 %v1855, 64
    %v1858 = vpop.permute.xlu0 %1857
    %v1860 = vmul.f32 %v1843, %v1858
    %v1861 = vld [vmem:[%s966] sm:$0xff]
    %v1862 = vpack.c.bf16 %v1860, %v1860
    %1864 = vrot.lane.b32.xlu0 %v1862, 32
    %v1865 = vpop.permute.xlu0 %1864
    %v1867 = vsel %vm132, %v1865, 0
    %1869 = vmatprep.subr.bf16.mxu0 0
    %1870 = vmatpush1.bf16.msra.mxu0 0
    %1871 = vmatprep.subr.bf16.mxu0 0
    %1872 = vmatpush1.bf16.msra.mxu0 0
    %1873 = vmatprep.subr.bf16.mxu0 0
    %1874 = vmatpush1.bf16.msra.mxu0 0
    %1875 = vmatprep.subr.bf16.mxu0 0
    %1876 = vmatpush1.bf16.msra.mxu0 0
    %1877 = vmatprep.subr.bf16.mxu0 0
    %1878 = vmatpush1.bf16.msra.mxu0 0
    %1879 = vmatprep.subr.bf16.mxu0 0
    %1880 = vmatpush1.bf16.msra.mxu0 0
    %1881 = vmatprep.subr.bf16.mxu0 0
    %1882 = vmatpush1.bf16.msra.mxu0 %v1200
    %1883 = vmatprep.subr.bf16.mxu0 0
    %1884 = vmatpush1.bf16.msra.mxu0 %v1199
    %1885 = vmatprep.subr.bf16.mxu0 0
    %1886 = vmatpush2.bf16.msra.mxu0 0
    %1887 = vmatprep.subr.bf16.mxu0 0
    %1888 = vmatpush2.bf16.msra.mxu0 0
    %1889 = vmatprep.subr.bf16.mxu0 0
    %1890 = vmatpush2.bf16.msra.mxu0 0
    %1891 = vmatprep.subr.bf16.mxu0 0
    %1892 = vmatpush2.bf16.msra.mxu0 0
    %1893 = vmatprep.subr.bf16.mxu0 0
    %1894 = vmatpush2.bf16.msra.mxu0 0
    %1895 = vmatprep.subr.bf16.mxu0 0
    %1896 = vmatpush2.bf16.msra.mxu0 0
    %1897 = vmatprep.subr.bf16.mxu0 0
    %1898 = vmatpush2.bf16.msra.mxu0 0
    %1899 = vmatprep.subr.bf16.mxu0 0
    %1900 = vmatpush2.bf16.msra.mxu0 0
    %1901 = vmatprep.mubr.bf16.mxu0 0
    %1902 = vmatmul.mubr.bf16.gmra.mxu0 %v1867
    %v1903 = vpop.f32.mrf.mxu0
    %v1904 = vadd.f32 0.0, %v1903
    %v1905 = vpop.f32.mrf.mxu0
    %v1906 = vpop.f32.mrf.mxu0
    %v1907 = vpop.f32.mrf.mxu0
    %1908 = vdwg.mxu0
    %v1909 = vadd.f32 %v1861, %v1904
    %v1910 = vtanh.pop %v1909
    %v1911 = vxor.u32 %v1909, 2147483648
    %v1912 = vmul.f32 %v1911, 1.442695
    %v1913 = vpow.pop %v1912
    %v1914 = vadd.f32 %v1913, 1.0
    %v1915 = vrcp.pop %v1914
    %v1916 = vmul.f32 1.0, %v1915
    %v1917 = vsel %vm69, %v1910, %v1916
    %v1918 = vmul.f32 %v1917, %v1854
    %1920 = vrot.lane.b32.xlu0 %v1917, 64
    %v1921 = vpop.permute.xlu0 %1920
    %v1923 = vmul.f32 %v1917, %v1921
    %1925 = vrot.lane.b32.xlu0 %v1923, 32
    %v1926 = vpop.permute.xlu0 %1925
    %v1928 = vadd.f32 %v1918, %v1926
    %v1929 = vtanh.pop %v1928
    %1931 = vrot.lane.b32.xlu0 %v1929, 64
    %v1932 = vpop.permute.xlu0 %1931
    %v1934 = vmul.f32 %v1917, %v1932
    %v1935 = vld [vmem:[%s1] sm:$0xf]
    %v1936 = vld [vmem:[%s1 + $0x4] sm:$0xf]
    %v1937 = vld [vmem:[%s1 + $0x8] sm:$0xf]
    %v1938 = vld [vmem:[%s1 + $0xc] sm:$0xf]
    %v1939 = vld [vmem:[%s1 + $0x10] sm:$0xf]
    %v1940 = vld [vmem:[%s1 + $0x14] sm:$0xf]
    %v1941 = vld [vmem:[%s1 + $0x18] sm:$0xf]
    %v1942 = vld [vmem:[%s1 + $0x1c] sm:$0xf]
    %v1943 = vld [vmem:[%s5] sm:$0xf]
    %v1944 = vld [vmem:[%s5 + $0x4] sm:$0xf]
    %v1945 = vld [vmem:[%s5 + $0x8] sm:$0xf]
    %v1946 = vld [vmem:[%s5 + $0xc] sm:$0xf]
    %v1947 = vld [vmem:[#allocation7] sm:$0xf]
    %v1948 = vld [vmem:[#allocation7 + $0x4] sm:$0xf]
    %v1949 = vld [vmem:[#allocation7 + $0x8] sm:$0xf]
    %v1950 = vld [vmem:[#allocation7 + $0xc] sm:$0xf]
    %v1951 = vld [vmem:[%s7] sm:$0x1]
    %v1953 = vlaneseq
    %v1954 = vshrl.u32 %v1953, 7
    %v1955 = vsub.s32 0, %v1954
    %v1956 = vrot.slane %v1951, %v1955
    %v1966 = vunpack.c.l.b16 %v1935
    %v1967 = vunpack.c.l.b16 %v1936
    %v1968 = vunpack.c.l.b16 %v1937
    %v1969 = vunpack.c.l.b16 %v1938
    %v1970 = vunpack.c.l.b16 %v1939
    %v1971 = vunpack.c.l.b16 %v1940
    %v1972 = vunpack.c.l.b16 %v1941
    %v1973 = vunpack.c.l.b16 %v1942
    %v1974 = vpack.c.b16 %v1967, %v1966
    %v1975 = vpack.c.b16 %v1969, %v1968
    %v1976 = vpack.c.b16 %v1971, %v1970
    %v1977 = vpack.c.b16 %v1973, %v1972
    %v1982 = vunpack.c.l.b16 %v1943
    %v1983 = vunpack.c.l.b16 %v1944
    %v1984 = vunpack.c.l.b16 %v1945
    %v1985 = vunpack.c.l.b16 %v1946
    %v1986 = vpack.c.b16 %v1983, %v1982
    %v1987 = vpack.c.b16 %v1985, %v1984
    %v1991 = vsel %vm132, %v1974, 0
    %v1994 = vsel %vm132, %v1975, 0
    %v1997 = vsel %vm132, %v1976, 0
    %v2000 = vsel %vm132, %v1977, 0
    %2002 = vmatprep.subr.bf16.mxu0 0
    %2003 = vmatpush1.bf16.msra.mxu0 0
    %2004 = vmatprep.subr.bf16.mxu0 0
    %2005 = vmatpush1.bf16.msra.mxu0 0
    %2006 = vmatprep.subr.bf16.mxu0 0
    %2007 = vmatpush1.bf16.msra.mxu0 0
    %2008 = vmatprep.subr.bf16.mxu0 0
    %2009 = vmatpush1.bf16.msra.mxu0 0
    %2010 = vmatprep.subr.bf16.mxu0 0
    %2011 = vmatpush1.bf16.msra.mxu0 0
    %2012 = vmatprep.subr.bf16.mxu0 0
    %2013 = vmatpush1.bf16.msra.mxu0 0
    %2014 = vmatprep.subr.bf16.mxu0 0
    %2015 = vmatpush1.bf16.msra.mxu0 %v1987
    %2016 = vmatprep.subr.bf16.mxu0 0
    %2017 = vmatpush1.bf16.msra.mxu0 %v1986
    %2018 = vmatprep.subr.bf16.mxu0 0
    %2019 = vmatpush2.bf16.msra.mxu0 0
    %2020 = vmatprep.subr.bf16.mxu0 0
    %2021 = vmatpush2.bf16.msra.mxu0 0
    %2022 = vmatprep.subr.bf16.mxu0 0
    %2023 = vmatpush2.bf16.msra.mxu0 0
    %2024 = vmatprep.subr.bf16.mxu0 0
    %2025 = vmatpush2.bf16.msra.mxu0 0
    %2026 = vmatprep.subr.bf16.mxu0 0
    %2027 = vmatpush2.bf16.msra.mxu0 0
    %2028 = vmatprep.subr.bf16.mxu0 0
    %2029 = vmatpush2.bf16.msra.mxu0 0
    %2030 = vmatprep.subr.bf16.mxu0 0
    %2031 = vmatpush2.bf16.msra.mxu0 0
    %2032 = vmatprep.subr.bf16.mxu0 0
    %2033 = vmatpush2.bf16.msra.mxu0 0
    %2034 = vmatprep.mubr.bf16.mxu0 0
    %2035 = vmatmul.mubr.bf16.gmra.mxu0 %v1991
    %v2036 = vpop.f32.mrf.mxu0
    %v2037 = vadd.f32 %v1956, %v2036
    %v2038 = vpop.f32.mrf.mxu0
    %v2039 = vpop.f32.mrf.mxu0
    %v2040 = vadd.f32 %v1956, %v2039
    %v2041 = vpop.f32.mrf.mxu0
    %2042 = vmatprep.mubr.bf16.mxu0 0
    %2043 = vmatmul.mubr.bf16.gmra.mxu0 %v1994
    %v2044 = vpop.f32.mrf.mxu0
    %v2045 = vadd.f32 %v1956, %v2044
    %v2046 = vpop.f32.mrf.mxu0
    %v2047 = vpop.f32.mrf.mxu0
    %v2048 = vadd.f32 %v1956, %v2047
    %v2049 = vpop.f32.mrf.mxu0
    %2050 = vmatprep.mubr.bf16.mxu0 0
    %2051 = vmatmul.mubr.bf16.gmra.mxu0 %v1997
    %v2052 = vpop.f32.mrf.mxu0
    %v2053 = vadd.f32 %v1956, %v2052
    %v2054 = vpop.f32.mrf.mxu0
    %v2055 = vpop.f32.mrf.mxu0
    %v2056 = vadd.f32 %v1956, %v2055
    %v2057 = vpop.f32.mrf.mxu0
    %2058 = vmatprep.mubr.bf16.mxu0 0
    %2059 = vmatmul.mubr.bf16.gmra.mxu0 %v2000
    %v2060 = vpop.f32.mrf.mxu0
    %v2061 = vadd.f32 %v1956, %v2060
    %v2062 = vpop.f32.mrf.mxu0
    %v2063 = vpop.f32.mrf.mxu0
    %v2064 = vadd.f32 %v1956, %v2063
    %v2065 = vpop.f32.mrf.mxu0
    %2066 = vdwg.mxu0
    %2067 = vst [vmem:[#allocation3] sm:$0xff] %v2037
    %2068 = vst [vmem:[#allocation3 + $0x8] sm:$0xff] %v2040
    %2069 = vst [vmem:[#allocation3 + $0x10] sm:$0xff] %v2045
    %2070 = vst [vmem:[#allocation3 + $0x18] sm:$0xff] %v2048
    %2071 = vst [vmem:[#allocation3 + $0x20] sm:$0xff] %v2053
    %2072 = vst [vmem:[#allocation3 + $0x28] sm:$0xff] %v2056
    %2073 = vst [vmem:[#allocation3 + $0x30] sm:$0xff] %v2061
    %2074 = vst [vmem:[#allocation3 + $0x38] sm:$0xff] %v2064
    %v2075 = vld [vmem:[#allocation3] sm:$0xff]
    %v2076 = vpack.c.bf16 %v1040, %v1040
    %2078 = vrot.lane.b32.xlu0 %v2076, 32
    %v2079 = vpop.permute.xlu0 %2078
    %v2084 = vunpack.c.l.b16 %v1947
    %v2085 = vunpack.c.l.b16 %v1948
    %v2086 = vunpack.c.l.b16 %v1949
    %v2087 = vunpack.c.l.b16 %v1950
    %v2088 = vpack.c.b16 %v2085, %v2084
    %v2089 = vpack.c.b16 %v2087, %v2086
    %v2093 = vsel %vm132, %v2079, 0
    %2095 = vmatprep.subr.bf16.mxu0 0
    %2096 = vmatpush1.bf16.msra.mxu0 0
    %2097 = vmatprep.subr.bf16.mxu0 0
    %2098 = vmatpush1.bf16.msra.mxu0 0
    %2099 = vmatprep.subr.bf16.mxu0 0
    %2100 = vmatpush1.bf16.msra.mxu0 0
    %2101 = vmatprep.subr.bf16.mxu0 0
    %2102 = vmatpush1.bf16.msra.mxu0 0
    %2103 = vmatprep.subr.bf16.mxu0 0
    %2104 = vmatpush1.bf16.msra.mxu0 0
    %2105 = vmatprep.subr.bf16.mxu0 0
    %2106 = vmatpush1.bf16.msra.mxu0 0
    %2107 = vmatprep.subr.bf16.mxu0 0
    %2108 = vmatpush1.bf16.msra.mxu0 %v2089
    %2109 = vmatprep.subr.bf16.mxu0 0
    %2110 = vmatpush1.bf16.msra.mxu0 %v2088
    %2111 = vmatprep.subr.bf16.mxu0 0
    %2112 = vmatpush2.bf16.msra.mxu0 0
    %2113 = vmatprep.subr.bf16.mxu0 0
    %2114 = vmatpush2.bf16.msra.mxu0 0
    %2115 = vmatprep.subr.bf16.mxu0 0
    %2116 = vmatpush2.bf16.msra.mxu0 0
    %2117 = vmatprep.subr.bf16.mxu0 0
    %2118 = vmatpush2.bf16.msra.mxu0 0
    %2119 = vmatprep.subr.bf16.mxu0 0
    %2120 = vmatpush2.bf16.msra.mxu0 0
    %2121 = vmatprep.subr.bf16.mxu0 0
    %2122 = vmatpush2.bf16.msra.mxu0 0
    %2123 = vmatprep.subr.bf16.mxu0 0
    %2124 = vmatpush2.bf16.msra.mxu0 0
    %2125 = vmatprep.subr.bf16.mxu0 0
    %2126 = vmatpush2.bf16.msra.mxu0 0
    %2127 = vmatprep.mubr.bf16.mxu0 0
    %2128 = vmatmul.mubr.bf16.gmra.mxu0 %v2093
    %v2129 = vpop.f32.mrf.mxu0
    %v2130 = vadd.f32 0.0, %v2129
    %v2131 = vpop.f32.mrf.mxu0
    %v2132 = vpop.f32.mrf.mxu0
    %v2133 = vpop.f32.mrf.mxu0
    %2134 = vdwg.mxu0
    %v2135 = vadd.f32 %v2075, %v2130
    %v2136 = vtanh.pop %v2135
    %v2137 = vxor.u32 %v2135, 2147483648
    %v2138 = vmul.f32 %v2137, 1.442695
    %v2139 = vpow.pop %v2138
    %v2140 = vadd.f32 %v2139, 1.0
    %v2141 = vrcp.pop %v2140
    %v2142 = vmul.f32 1.0, %v2141
    %v2143 = vsel %vm69, %v2136, %v2142
    %v2144 = vmul.f32 %v2143, %v1034
    %2146 = vrot.lane.b32.xlu0 %v2143, 64
    %v2147 = vpop.permute.xlu0 %2146
    %v2149 = vmul.f32 %v2143, %v2147
    %2151 = vrot.lane.b32.xlu0 %v2149, 32
    %v2152 = vpop.permute.xlu0 %2151
    %v2154 = vadd.f32 %v2144, %v2152
    %v2155 = vtanh.pop %v2154
    %2157 = vrot.lane.b32.xlu0 %v2155, 64
    %v2158 = vpop.permute.xlu0 %2157
    %v2160 = vmul.f32 %v2143, %v2158
    %2162 = vrot.lane.b32.xlu0 %v2160, 32
    %v2163 = vpop.permute.xlu0 %2162
    %2165 = vst.msk [vmem:[#allocation2] sm:$0xff] %vm132, %v2163
    %v2166 = vld [vmem:[%s318] sm:$0xff]
    %v2167 = vpack.c.bf16 %v2160, %v2160
    %2169 = vrot.lane.b32.xlu0 %v2167, 32
    %v2170 = vpop.permute.xlu0 %2169
    %v2172 = vsel %vm132, %v2170, 0
    %2174 = vmatprep.subr.bf16.mxu0 0
    %2175 = vmatpush1.bf16.msra.mxu0 0
    %2176 = vmatprep.subr.bf16.mxu0 0
    %2177 = vmatpush1.bf16.msra.mxu0 0
    %2178 = vmatprep.subr.bf16.mxu0 0
    %2179 = vmatpush1.bf16.msra.mxu0 0
    %2180 = vmatprep.subr.bf16.mxu0 0
    %2181 = vmatpush1.bf16.msra.mxu0 0
    %2182 = vmatprep.subr.bf16.mxu0 0
    %2183 = vmatpush1.bf16.msra.mxu0 0
    %2184 = vmatprep.subr.bf16.mxu0 0
    %2185 = vmatpush1.bf16.msra.mxu0 0
    %2186 = vmatprep.subr.bf16.mxu0 0
    %2187 = vmatpush1.bf16.msra.mxu0 %v2089
    %2188 = vmatprep.subr.bf16.mxu0 0
    %2189 = vmatpush1.bf16.msra.mxu0 %v2088
    %2190 = vmatprep.subr.bf16.mxu0 0
    %2191 = vmatpush2.bf16.msra.mxu0 0
    %2192 = vmatprep.subr.bf16.mxu0 0
    %2193 = vmatpush2.bf16.msra.mxu0 0
    %2194 = vmatprep.subr.bf16.mxu0 0
    %2195 = vmatpush2.bf16.msra.mxu0 0
    %2196 = vmatprep.subr.bf16.mxu0 0
    %2197 = vmatpush2.bf16.msra.mxu0 0
    %2198 = vmatprep.subr.bf16.mxu0 0
    %2199 = vmatpush2.bf16.msra.mxu0 0
    %2200 = vmatprep.subr.bf16.mxu0 0
    %2201 = vmatpush2.bf16.msra.mxu0 0
    %2202 = vmatprep.subr.bf16.mxu0 0
    %2203 = vmatpush2.bf16.msra.mxu0 0
    %2204 = vmatprep.subr.bf16.mxu0 0
    %2205 = vmatpush2.bf16.msra.mxu0 0
    %2206 = vmatprep.mubr.bf16.mxu0 0
    %2207 = vmatmul.mubr.bf16.gmra.mxu0 %v2172
    %v2208 = vpop.f32.mrf.mxu0
    %v2209 = vadd.f32 0.0, %v2208
    %v2210 = vpop.f32.mrf.mxu0
    %v2211 = vpop.f32.mrf.mxu0
    %v2212 = vpop.f32.mrf.mxu0
    %2213 = vdwg.mxu0
    %v2214 = vadd.f32 %v2166, %v2209
    %v2215 = vtanh.pop %v2214
    %v2216 = vxor.u32 %v2214, 2147483648
    %v2217 = vmul.f32 %v2216, 1.442695
    %v2218 = vpow.pop %v2217
    %v2219 = vadd.f32 %v2218, 1.0
    %v2220 = vrcp.pop %v2219
    %v2221 = vmul.f32 1.0, %v2220
    %v2222 = vsel %vm69, %v2215, %v2221
    %v2223 = vmul.f32 %v2222, %v2154
    %2225 = vrot.lane.b32.xlu0 %v2222, 64
    %v2226 = vpop.permute.xlu0 %2225
    %v2228 = vmul.f32 %v2222, %v2226
    %2230 = vrot.lane.b32.xlu0 %v2228, 32
    %v2231 = vpop.permute.xlu0 %2230
    %v2233 = vadd.f32 %v2223, %v2231
    %v2234 = vtanh.pop %v2233
    %2236 = vrot.lane.b32.xlu0 %v2234, 64
    %v2237 = vpop.permute.xlu0 %2236
    %v2239 = vmul.f32 %v2222, %v2237
    %2241 = vrot.lane.b32.xlu0 %v2239, 32
    %v2242 = vpop.permute.xlu0 %2241
    %2244 = vst.msk [vmem:[%s397] sm:$0xff] %vm132, %v2242
    %v2245 = vld [vmem:[%s399] sm:$0xff]
    %v2246 = vpack.c.bf16 %v2239, %v2239
    %2248 = vrot.lane.b32.xlu0 %v2246, 32
    %v2249 = vpop.permute.xlu0 %2248
    %v2251 = vsel %vm132, %v2249, 0
    %2253 = vmatprep.subr.bf16.mxu0 0
    %2254 = vmatpush1.bf16.msra.mxu0 0
    %2255 = vmatprep.subr.bf16.mxu0 0
    %2256 = vmatpush1.bf16.msra.mxu0 0
    %2257 = vmatprep.subr.bf16.mxu0 0
    %2258 = vmatpush1.bf16.msra.mxu0 0
    %2259 = vmatprep.subr.bf16.mxu0 0
    %2260 = vmatpush1.bf16.msra.mxu0 0
    %2261 = vmatprep.subr.bf16.mxu0 0
    %2262 = vmatpush1.bf16.msra.mxu0 0
    %2263 = vmatprep.subr.bf16.mxu0 0
    %2264 = vmatpush1.bf16.msra.mxu0 0
    %2265 = vmatprep.subr.bf16.mxu0 0
    %2266 = vmatpush1.bf16.msra.mxu0 %v2089
    %2267 = vmatprep.subr.bf16.mxu0 0
    %2268 = vmatpush1.bf16.msra.mxu0 %v2088
    %2269 = vmatprep.subr.bf16.mxu0 0
    %2270 = vmatpush2.bf16.msra.mxu0 0
    %2271 = vmatprep.subr.bf16.mxu0 0
    %2272 = vmatpush2.bf16.msra.mxu0 0
    %2273 = vmatprep.subr.bf16.mxu0 0
    %2274 = vmatpush2.bf16.msra.mxu0 0
    %2275 = vmatprep.subr.bf16.mxu0 0
    %2276 = vmatpush2.bf16.msra.mxu0 0
    %2277 = vmatprep.subr.bf16.mxu0 0
    %2278 = vmatpush2.bf16.msra.mxu0 0
    %2279 = vmatprep.subr.bf16.mxu0 0
    %2280 = vmatpush2.bf16.msra.mxu0 0
    %2281 = vmatprep.subr.bf16.mxu0 0
    %2282 = vmatpush2.bf16.msra.mxu0 0
    %2283 = vmatprep.subr.bf16.mxu0 0
    %2284 = vmatpush2.bf16.msra.mxu0 0
    %2285 = vmatprep.mubr.bf16.mxu0 0
    %2286 = vmatmul.mubr.bf16.gmra.mxu0 %v2251
    %v2287 = vpop.f32.mrf.mxu0
    %v2288 = vadd.f32 0.0, %v2287
    %v2289 = vpop.f32.mrf.mxu0
    %v2290 = vpop.f32.mrf.mxu0
    %v2291 = vpop.f32.mrf.mxu0
    %2292 = vdwg.mxu0
    %v2293 = vadd.f32 %v2245, %v2288
    %v2294 = vtanh.pop %v2293
    %v2295 = vxor.u32 %v2293, 2147483648
    %v2296 = vmul.f32 %v2295, 1.442695
    %v2297 = vpow.pop %v2296
    %v2298 = vadd.f32 %v2297, 1.0
    %v2299 = vrcp.pop %v2298
    %v2300 = vmul.f32 1.0, %v2299
    %v2301 = vsel %vm69, %v2294, %v2300
    %v2302 = vmul.f32 %v2301, %v2233
    %2304 = vrot.lane.b32.xlu0 %v2301, 64
    %v2305 = vpop.permute.xlu0 %2304
    %v2307 = vmul.f32 %v2301, %v2305
    %2309 = vrot.lane.b32.xlu0 %v2307, 32
    %v2310 = vpop.permute.xlu0 %2309
    %v2312 = vadd.f32 %v2302, %v2310
    %v2313 = vtanh.pop %v2312
    %2315 = vrot.lane.b32.xlu0 %v2313, 64
    %v2316 = vpop.permute.xlu0 %2315
    %v2318 = vmul.f32 %v2301, %v2316
    %2320 = vrot.lane.b32.xlu0 %v2318, 32
    %v2321 = vpop.permute.xlu0 %2320
    %2323 = vst.msk [vmem:[%s478] sm:$0xff] %vm132, %v2321
    %v2324 = vld [vmem:[%s480] sm:$0xff]
    %v2325 = vpack.c.bf16 %v2318, %v2318
    %2327 = vrot.lane.b32.xlu0 %v2325, 32
    %v2328 = vpop.permute.xlu0 %2327
    %v2330 = vsel %vm132, %v2328, 0
    %2332 = vmatprep.subr.bf16.mxu0 0
    %2333 = vmatpush1.bf16.msra.mxu0 0
    %2334 = vmatprep.subr.bf16.mxu0 0
    %2335 = vmatpush1.bf16.msra.mxu0 0
    %2336 = vmatprep.subr.bf16.mxu0 0
    %2337 = vmatpush1.bf16.msra.mxu0 0
    %2338 = vmatprep.subr.bf16.mxu0 0
    %2339 = vmatpush1.bf16.msra.mxu0 0
    %2340 = vmatprep.subr.bf16.mxu0 0
    %2341 = vmatpush1.bf16.msra.mxu0 0
    %2342 = vmatprep.subr.bf16.mxu0 0
    %2343 = vmatpush1.bf16.msra.mxu0 0
    %2344 = vmatprep.subr.bf16.mxu0 0
    %2345 = vmatpush1.bf16.msra.mxu0 %v2089
    %2346 = vmatprep.subr.bf16.mxu0 0
    %2347 = vmatpush1.bf16.msra.mxu0 %v2088
    %2348 = vmatprep.subr.bf16.mxu0 0
    %2349 = vmatpush2.bf16.msra.mxu0 0
    %2350 = vmatprep.subr.bf16.mxu0 0
    %2351 = vmatpush2.bf16.msra.mxu0 0
    %2352 = vmatprep.subr.bf16.mxu0 0
    %2353 = vmatpush2.bf16.msra.mxu0 0
    %2354 = vmatprep.subr.bf16.mxu0 0
    %2355 = vmatpush2.bf16.msra.mxu0 0
    %2356 = vmatprep.subr.bf16.mxu0 0
    %2357 = vmatpush2.bf16.msra.mxu0 0
    %2358 = vmatprep.subr.bf16.mxu0 0
    %2359 = vmatpush2.bf16.msra.mxu0 0
    %2360 = vmatprep.subr.bf16.mxu0 0
    %2361 = vmatpush2.bf16.msra.mxu0 0
    %2362 = vmatprep.subr.bf16.mxu0 0
    %2363 = vmatpush2.bf16.msra.mxu0 0
    %2364 = vmatprep.mubr.bf16.mxu0 0
    %2365 = vmatmul.mubr.bf16.gmra.mxu0 %v2330
    %v2366 = vpop.f32.mrf.mxu0
    %v2367 = vadd.f32 0.0, %v2366
    %v2368 = vpop.f32.mrf.mxu0
    %v2369 = vpop.f32.mrf.mxu0
    %v2370 = vpop.f32.mrf.mxu0
    %2371 = vdwg.mxu0
    %v2372 = vadd.f32 %v2324, %v2367
    %v2373 = vtanh.pop %v2372
    %v2374 = vxor.u32 %v2372, 2147483648
    %v2375 = vmul.f32 %v2374, 1.442695
    %v2376 = vpow.pop %v2375
    %v2377 = vadd.f32 %v2376, 1.0
    %v2378 = vrcp.pop %v2377
    %v2379 = vmul.f32 1.0, %v2378
    %v2380 = vsel %vm69, %v2373, %v2379
    %v2381 = vmul.f32 %v2380, %v2312
    %2383 = vrot.lane.b32.xlu0 %v2380, 64
    %v2384 = vpop.permute.xlu0 %2383
    %v2386 = vmul.f32 %v2380, %v2384
    %2388 = vrot.lane.b32.xlu0 %v2386, 32
    %v2389 = vpop.permute.xlu0 %2388
    %v2391 = vadd.f32 %v2381, %v2389
    %v2392 = vtanh.pop %v2391
    %2394 = vrot.lane.b32.xlu0 %v2392, 64
    %v2395 = vpop.permute.xlu0 %2394
    %v2397 = vmul.f32 %v2380, %v2395
    %2399 = vrot.lane.b32.xlu0 %v2397, 32
    %v2400 = vpop.permute.xlu0 %2399
    %2402 = vst.msk [vmem:[%s559] sm:$0xff] %vm132, %v2400
    %v2403 = vld [vmem:[%s561] sm:$0xff]
    %v2404 = vpack.c.bf16 %v2397, %v2397
    %2406 = vrot.lane.b32.xlu0 %v2404, 32
    %v2407 = vpop.permute.xlu0 %2406
    %v2409 = vsel %vm132, %v2407, 0
    %2411 = vmatprep.subr.bf16.mxu0 0
    %2412 = vmatpush1.bf16.msra.mxu0 0
    %2413 = vmatprep.subr.bf16.mxu0 0
    %2414 = vmatpush1.bf16.msra.mxu0 0
    %2415 = vmatprep.subr.bf16.mxu0 0
    %2416 = vmatpush1.bf16.msra.mxu0 0
    %2417 = vmatprep.subr.bf16.mxu0 0
    %2418 = vmatpush1.bf16.msra.mxu0 0
    %2419 = vmatprep.subr.bf16.mxu0 0
    %2420 = vmatpush1.bf16.msra.mxu0 0
    %2421 = vmatprep.subr.bf16.mxu0 0
    %2422 = vmatpush1.bf16.msra.mxu0 0
    %2423 = vmatprep.subr.bf16.mxu0 0
    %2424 = vmatpush1.bf16.msra.mxu0 %v2089
    %2425 = vmatprep.subr.bf16.mxu0 0
    %2426 = vmatpush1.bf16.msra.mxu0 %v2088
    %2427 = vmatprep.subr.bf16.mxu0 0
    %2428 = vmatpush2.bf16.msra.mxu0 0
    %2429 = vmatprep.subr.bf16.mxu0 0
    %2430 = vmatpush2.bf16.msra.mxu0 0
    %2431 = vmatprep.subr.bf16.mxu0 0
    %2432 = vmatpush2.bf16.msra.mxu0 0
    %2433 = vmatprep.subr.bf16.mxu0 0
    %2434 = vmatpush2.bf16.msra.mxu0 0
    %2435 = vmatprep.subr.bf16.mxu0 0
    %2436 = vmatpush2.bf16.msra.mxu0 0
    %2437 = vmatprep.subr.bf16.mxu0 0
    %2438 = vmatpush2.bf16.msra.mxu0 0
    %2439 = vmatprep.subr.bf16.mxu0 0
    %2440 = vmatpush2.bf16.msra.mxu0 0
    %2441 = vmatprep.subr.bf16.mxu0 0
    %2442 = vmatpush2.bf16.msra.mxu0 0
    %2443 = vmatprep.mubr.bf16.mxu0 0
    %2444 = vmatmul.mubr.bf16.gmra.mxu0 %v2409
    %v2445 = vpop.f32.mrf.mxu0
    %v2446 = vadd.f32 0.0, %v2445
    %v2447 = vpop.f32.mrf.mxu0
    %v2448 = vpop.f32.mrf.mxu0
    %v2449 = vpop.f32.mrf.mxu0
    %2450 = vdwg.mxu0
    %v2451 = vadd.f32 %v2403, %v2446
    %v2452 = vtanh.pop %v2451
    %v2453 = vxor.u32 %v2451, 2147483648
    %v2454 = vmul.f32 %v2453, 1.442695
    %v2455 = vpow.pop %v2454
    %v2456 = vadd.f32 %v2455, 1.0
    %v2457 = vrcp.pop %v2456
    %v2458 = vmul.f32 1.0, %v2457
    %v2459 = vsel %vm69, %v2452, %v2458
    %v2460 = vmul.f32 %v2459, %v2391
    %2462 = vrot.lane.b32.xlu0 %v2459, 64
    %v2463 = vpop.permute.xlu0 %2462
    %v2465 = vmul.f32 %v2459, %v2463
    %2467 = vrot.lane.b32.xlu0 %v2465, 32
    %v2468 = vpop.permute.xlu0 %2467
    %v2470 = vadd.f32 %v2460, %v2468
    %v2471 = vtanh.pop %v2470
    %2473 = vrot.lane.b32.xlu0 %v2471, 64
    %v2474 = vpop.permute.xlu0 %2473
    %v2476 = vmul.f32 %v2459, %v2474
    %2478 = vrot.lane.b32.xlu0 %v2476, 32
    %v2479 = vpop.permute.xlu0 %2478
    %2481 = vst.msk [vmem:[%s640] sm:$0xff] %vm132, %v2479
    %v2482 = vld [vmem:[%s642] sm:$0xff]
    %v2483 = vpack.c.bf16 %v2476, %v2476
    %2485 = vrot.lane.b32.xlu0 %v2483, 32
    %v2486 = vpop.permute.xlu0 %2485
    %v2488 = vsel %vm132, %v2486, 0
    %2490 = vmatprep.subr.bf16.mxu0 0
    %2491 = vmatpush1.bf16.msra.mxu0 0
    %2492 = vmatprep.subr.bf16.mxu0 0
    %2493 = vmatpush1.bf16.msra.mxu0 0
    %2494 = vmatprep.subr.bf16.mxu0 0
    %2495 = vmatpush1.bf16.msra.mxu0 0
    %2496 = vmatprep.subr.bf16.mxu0 0
    %2497 = vmatpush1.bf16.msra.mxu0 0
    %2498 = vmatprep.subr.bf16.mxu0 0
    %2499 = vmatpush1.bf16.msra.mxu0 0
    %2500 = vmatprep.subr.bf16.mxu0 0
    %2501 = vmatpush1.bf16.msra.mxu0 0
    %2502 = vmatprep.subr.bf16.mxu0 0
    %2503 = vmatpush1.bf16.msra.mxu0 %v2089
    %2504 = vmatprep.subr.bf16.mxu0 0
    %2505 = vmatpush1.bf16.msra.mxu0 %v2088
    %2506 = vmatprep.subr.bf16.mxu0 0
    %2507 = vmatpush2.bf16.msra.mxu0 0
    %2508 = vmatprep.subr.bf16.mxu0 0
    %2509 = vmatpush2.bf16.msra.mxu0 0
    %2510 = vmatprep.subr.bf16.mxu0 0
    %2511 = vmatpush2.bf16.msra.mxu0 0
    %2512 = vmatprep.subr.bf16.mxu0 0
    %2513 = vmatpush2.bf16.msra.mxu0 0
    %2514 = vmatprep.subr.bf16.mxu0 0
    %2515 = vmatpush2.bf16.msra.mxu0 0
    %2516 = vmatprep.subr.bf16.mxu0 0
    %2517 = vmatpush2.bf16.msra.mxu0 0
    %2518 = vmatprep.subr.bf16.mxu0 0
    %2519 = vmatpush2.bf16.msra.mxu0 0
    %2520 = vmatprep.subr.bf16.mxu0 0
    %2521 = vmatpush2.bf16.msra.mxu0 0
    %2522 = vmatprep.mubr.bf16.mxu0 0
    %2523 = vmatmul.mubr.bf16.gmra.mxu0 %v2488
    %v2524 = vpop.f32.mrf.mxu0
    %v2525 = vadd.f32 0.0, %v2524
    %v2526 = vpop.f32.mrf.mxu0
    %v2527 = vpop.f32.mrf.mxu0
    %v2528 = vpop.f32.mrf.mxu0
    %2529 = vdwg.mxu0
    %v2530 = vadd.f32 %v2482, %v2525
    %v2531 = vtanh.pop %v2530
    %v2532 = vxor.u32 %v2530, 2147483648
    %v2533 = vmul.f32 %v2532, 1.442695
    %v2534 = vpow.pop %v2533
    %v2535 = vadd.f32 %v2534, 1.0
    %v2536 = vrcp.pop %v2535
    %v2537 = vmul.f32 1.0, %v2536
    %v2538 = vsel %vm69, %v2531, %v2537
    %v2539 = vmul.f32 %v2538, %v2470
    %2541 = vrot.lane.b32.xlu0 %v2538, 64
    %v2542 = vpop.permute.xlu0 %2541
    %v2544 = vmul.f32 %v2538, %v2542
    %2546 = vrot.lane.b32.xlu0 %v2544, 32
    %v2547 = vpop.permute.xlu0 %2546
    %v2549 = vadd.f32 %v2539, %v2547
    %v2550 = vtanh.pop %v2549
    %2552 = vrot.lane.b32.xlu0 %v2550, 64
    %v2553 = vpop.permute.xlu0 %2552
    %v2555 = vmul.f32 %v2538, %v2553
    %2557 = vrot.lane.b32.xlu0 %v2555, 32
    %v2558 = vpop.permute.xlu0 %2557
    %2560 = vst.msk [vmem:[%s721] sm:$0xff] %vm132, %v2558
    %v2561 = vld [vmem:[%s723] sm:$0xff]
    %v2562 = vpack.c.bf16 %v2555, %v2555
    %2564 = vrot.lane.b32.xlu0 %v2562, 32
    %v2565 = vpop.permute.xlu0 %2564
    %v2567 = vsel %vm132, %v2565, 0
    %2569 = vmatprep.subr.bf16.mxu0 0
    %2570 = vmatpush1.bf16.msra.mxu0 0
    %2571 = vmatprep.subr.bf16.mxu0 0
    %2572 = vmatpush1.bf16.msra.mxu0 0
    %2573 = vmatprep.subr.bf16.mxu0 0
    %2574 = vmatpush1.bf16.msra.mxu0 0
    %2575 = vmatprep.subr.bf16.mxu0 0
    %2576 = vmatpush1.bf16.msra.mxu0 0
    %2577 = vmatprep.subr.bf16.mxu0 0
    %2578 = vmatpush1.bf16.msra.mxu0 0
    %2579 = vmatprep.subr.bf16.mxu0 0
    %2580 = vmatpush1.bf16.msra.mxu0 0
    %2581 = vmatprep.subr.bf16.mxu0 0
    %2582 = vmatpush1.bf16.msra.mxu0 %v2089
    %2583 = vmatprep.subr.bf16.mxu0 0
    %2584 = vmatpush1.bf16.msra.mxu0 %v2088
    %2585 = vmatprep.subr.bf16.mxu0 0
    %2586 = vmatpush2.bf16.msra.mxu0 0
    %2587 = vmatprep.subr.bf16.mxu0 0
    %2588 = vmatpush2.bf16.msra.mxu0 0
    %2589 = vmatprep.subr.bf16.mxu0 0
    %2590 = vmatpush2.bf16.msra.mxu0 0
    %2591 = vmatprep.subr.bf16.mxu0 0
    %2592 = vmatpush2.bf16.msra.mxu0 0
    %2593 = vmatprep.subr.bf16.mxu0 0
    %2594 = vmatpush2.bf16.msra.mxu0 0
    %2595 = vmatprep.subr.bf16.mxu0 0
    %2596 = vmatpush2.bf16.msra.mxu0 0
    %2597 = vmatprep.subr.bf16.mxu0 0
    %2598 = vmatpush2.bf16.msra.mxu0 0
    %2599 = vmatprep.subr.bf16.mxu0 0
    %2600 = vmatpush2.bf16.msra.mxu0 0
    %2601 = vmatprep.mubr.bf16.mxu0 0
    %2602 = vmatmul.mubr.bf16.gmra.mxu0 %v2567
    %v2603 = vpop.f32.mrf.mxu0
    %v2604 = vadd.f32 0.0, %v2603
    %v2605 = vpop.f32.mrf.mxu0
    %v2606 = vpop.f32.mrf.mxu0
    %v2607 = vpop.f32.mrf.mxu0
    %2608 = vdwg.mxu0
    %v2609 = vadd.f32 %v2561, %v2604
    %v2610 = vtanh.pop %v2609
    %v2611 = vxor.u32 %v2609, 2147483648
    %v2612 = vmul.f32 %v2611, 1.442695
    %v2613 = vpow.pop %v2612
    %v2614 = vadd.f32 %v2613, 1.0
    %v2615 = vrcp.pop %v2614
    %v2616 = vmul.f32 1.0, %v2615
    %v2617 = vsel %vm69, %v2610, %v2616
    %v2618 = vmul.f32 %v2617, %v2549
    %2620 = vrot.lane.b32.xlu0 %v2617, 64
    %v2621 = vpop.permute.xlu0 %2620
    %v2623 = vmul.f32 %v2617, %v2621
    %2625 = vrot.lane.b32.xlu0 %v2623, 32
    %v2626 = vpop.permute.xlu0 %2625
    %v2628 = vadd.f32 %v2618, %v2626
    %v2629 = vtanh.pop %v2628
    %2631 = vrot.lane.b32.xlu0 %v2629, 64
    %v2632 = vpop.permute.xlu0 %2631
    %v2634 = vmul.f32 %v2617, %v2632
    %2636 = vrot.lane.b32.xlu0 %v2634, 32
    %v2637 = vpop.permute.xlu0 %2636
    %2639 = vst.msk [vmem:[%s802] sm:$0xff] %vm132, %v2637
    %v2640 = vld [vmem:[%s804] sm:$0xff]
    %v2641 = vpack.c.bf16 %v2634, %v2634
    %2643 = vrot.lane.b32.xlu0 %v2641, 32
    %v2644 = vpop.permute.xlu0 %2643
    %v2646 = vsel %vm132, %v2644, 0
    %2648 = vmatprep.subr.bf16.mxu0 0
    %2649 = vmatpush1.bf16.msra.mxu0 0
    %2650 = vmatprep.subr.bf16.mxu0 0
    %2651 = vmatpush1.bf16.msra.mxu0 0
    %2652 = vmatprep.subr.bf16.mxu0 0
    %2653 = vmatpush1.bf16.msra.mxu0 0
    %2654 = vmatprep.subr.bf16.mxu0 0
    %2655 = vmatpush1.bf16.msra.mxu0 0
    %2656 = vmatprep.subr.bf16.mxu0 0
    %2657 = vmatpush1.bf16.msra.mxu0 0
    %2658 = vmatprep.subr.bf16.mxu0 0
    %2659 = vmatpush1.bf16.msra.mxu0 0
    %2660 = vmatprep.subr.bf16.mxu0 0
    %2661 = vmatpush1.bf16.msra.mxu0 %v2089
    %2662 = vmatprep.subr.bf16.mxu0 0
    %2663 = vmatpush1.bf16.msra.mxu0 %v2088
    %2664 = vmatprep.subr.bf16.mxu0 0
    %2665 = vmatpush2.bf16.msra.mxu0 0
    %2666 = vmatprep.subr.bf16.mxu0 0
    %2667 = vmatpush2.bf16.msra.mxu0 0
    %2668 = vmatprep.subr.bf16.mxu0 0
    %2669 = vmatpush2.bf16.msra.mxu0 0
    %2670 = vmatprep.subr.bf16.mxu0 0
    %2671 = vmatpush2.bf16.msra.mxu0 0
    %2672 = vmatprep.subr.bf16.mxu0 0
    %2673 = vmatpush2.bf16.msra.mxu0 0
    %2674 = vmatprep.subr.bf16.mxu0 0
    %2675 = vmatpush2.bf16.msra.mxu0 0
    %2676 = vmatprep.subr.bf16.mxu0 0
    %2677 = vmatpush2.bf16.msra.mxu0 0
    %2678 = vmatprep.subr.bf16.mxu0 0
    %2679 = vmatpush2.bf16.msra.mxu0 0
    %2680 = vmatprep.mubr.bf16.mxu0 0
    %2681 = vmatmul.mubr.bf16.gmra.mxu0 %v2646
    %v2682 = vpop.f32.mrf.mxu0
    %v2683 = vadd.f32 0.0, %v2682
    %v2684 = vpop.f32.mrf.mxu0
    %v2685 = vpop.f32.mrf.mxu0
    %v2686 = vpop.f32.mrf.mxu0
    %2687 = vdwg.mxu0
    %v2688 = vadd.f32 %v2640, %v2683
    %v2689 = vtanh.pop %v2688
    %v2690 = vxor.u32 %v2688, 2147483648
    %v2691 = vmul.f32 %v2690, 1.442695
    %v2692 = vpow.pop %v2691
    %v2693 = vadd.f32 %v2692, 1.0
    %v2694 = vrcp.pop %v2693
    %v2695 = vmul.f32 1.0, %v2694
    %v2696 = vsel %vm69, %v2689, %v2695
    %v2697 = vmul.f32 %v2696, %v2628
    %2699 = vrot.lane.b32.xlu0 %v2696, 64
    %v2700 = vpop.permute.xlu0 %2699
    %v2702 = vmul.f32 %v2696, %v2700
    %2704 = vrot.lane.b32.xlu0 %v2702, 32
    %v2705 = vpop.permute.xlu0 %2704
    %v2707 = vadd.f32 %v2697, %v2705
    %v2708 = vtanh.pop %v2707
    %2710 = vrot.lane.b32.xlu0 %v2708, 64
    %v2711 = vpop.permute.xlu0 %2710
    %v2713 = vmul.f32 %v2696, %v2711
    %2715 = vrot.lane.b32.xlu0 %v2713, 32
    %v2716 = vpop.permute.xlu0 %2715
    %2718 = vst.msk [vmem:[%s883] sm:$0xff] %vm132, %v2716
    %v2719 = vld [vmem:[#allocation2] sm:$0xff]
    %v2720 = vld [vmem:[#allocation2 + $0x8] sm:$0xff]
    %v2721 = vld [vmem:[#allocation2 + $0x10] sm:$0xff]
    %v2722 = vld [vmem:[#allocation2 + $0x18] sm:$0xff]
    %v2723 = vld [vmem:[#allocation2 + $0x20] sm:$0xff]
    %v2724 = vld [vmem:[#allocation2 + $0x28] sm:$0xff]
    %v2725 = vld [vmem:[#allocation2 + $0x30] sm:$0xff]
    %v2726 = vld [vmem:[#allocation2 + $0x38] sm:$0xff]
    %v2727 = vpack.c.bf16 %v2720, %v2719
    %v2728 = vpack.c.bf16 %v2722, %v2721
    %v2729 = vpack.c.bf16 %v2724, %v2723
    %v2730 = vpack.c.bf16 %v2726, %v2725
    %s2731 = scalar_lea.vmem %s5, 16
    %v2732 = vld [vmem:[%s2731] sm:$0xf]
    %v2733 = vld [vmem:[%s2731 + $0x4] sm:$0xf]
    %v2734 = vld [vmem:[%s2731 + $0x8] sm:$0xf]
    %v2735 = vld [vmem:[%s2731 + $0xc] sm:$0xf]
    %s2736 = scalar_lea.vmem [#allocation7], 16
    %v2737 = vld [vmem:[%s2736] sm:$0xf]
    %v2738 = vld [vmem:[%s2736 + $0x4] sm:$0xf]
    %v2739 = vld [vmem:[%s2736 + $0x8] sm:$0xf]
    %v2740 = vld [vmem:[%s2736 + $0xc] sm:$0xf]
    %s2741 = scalar_lea.vmem %s7, 1
    %v2742 = vld [vmem:[%s2741] sm:$0x1]
    %v2744 = vlaneseq
    %v2745 = vshrl.u32 %v2744, 7
    %v2746 = vsub.s32 0, %v2745
    %v2747 = vrot.slane %v2742, %v2746
    %v2753 = vunpack.c.l.b16 %v2732
    %v2754 = vunpack.c.l.b16 %v2733
    %v2755 = vunpack.c.l.b16 %v2734
    %v2756 = vunpack.c.l.b16 %v2735
    %v2757 = vpack.c.b16 %v2754, %v2753
    %v2758 = vpack.c.b16 %v2756, %v2755
    %v2762 = vsel %vm132, %v2727, 0
    %v2765 = vsel %vm132, %v2728, 0
    %v2768 = vsel %vm132, %v2729, 0
    %v2771 = vsel %vm132, %v2730, 0
    %2773 = vmatprep.subr.bf16.mxu0 0
    %2774 = vmatpush1.bf16.msra.mxu0 0
    %2775 = vmatprep.subr.bf16.mxu0 0
    %2776 = vmatpush1.bf16.msra.mxu0 0
    %2777 = vmatprep.subr.bf16.mxu0 0
    %2778 = vmatpush1.bf16.msra.mxu0 0
    %2779 = vmatprep.subr.bf16.mxu0 0
    %2780 = vmatpush1.bf16.msra.mxu0 0
    %2781 = vmatprep.subr.bf16.mxu0 0
    %2782 = vmatpush1.bf16.msra.mxu0 0
    %2783 = vmatprep.subr.bf16.mxu0 0
    %2784 = vmatpush1.bf16.msra.mxu0 0
    %2785 = vmatprep.subr.bf16.mxu0 0
    %2786 = vmatpush1.bf16.msra.mxu0 %v2758
    %2787 = vmatprep.subr.bf16.mxu0 0
    %2788 = vmatpush1.bf16.msra.mxu0 %v2757
    %2789 = vmatprep.subr.bf16.mxu0 0
    %2790 = vmatpush2.bf16.msra.mxu0 0
    %2791 = vmatprep.subr.bf16.mxu0 0
    %2792 = vmatpush2.bf16.msra.mxu0 0
    %2793 = vmatprep.subr.bf16.mxu0 0
    %2794 = vmatpush2.bf16.msra.mxu0 0
    %2795 = vmatprep.subr.bf16.mxu0 0
    %2796 = vmatpush2.bf16.msra.mxu0 0
    %2797 = vmatprep.subr.bf16.mxu0 0
    %2798 = vmatpush2.bf16.msra.mxu0 0
    %2799 = vmatprep.subr.bf16.mxu0 0
    %2800 = vmatpush2.bf16.msra.mxu0 0
    %2801 = vmatprep.subr.bf16.mxu0 0
    %2802 = vmatpush2.bf16.msra.mxu0 0
    %2803 = vmatprep.subr.bf16.mxu0 0
    %2804 = vmatpush2.bf16.msra.mxu0 0
    %2805 = vmatprep.mubr.bf16.mxu0 0
    %2806 = vmatmul.mubr.bf16.gmra.mxu0 %v2762
    %v2807 = vpop.f32.mrf.mxu0
    %v2808 = vadd.f32 %v2747, %v2807
    %v2809 = vpop.f32.mrf.mxu0
    %v2810 = vpop.f32.mrf.mxu0
    %v2811 = vadd.f32 %v2747, %v2810
    %v2812 = vpop.f32.mrf.mxu0
    %2813 = vmatprep.mubr.bf16.mxu0 0
    %2814 = vmatmul.mubr.bf16.gmra.mxu0 %v2765
    %v2815 = vpop.f32.mrf.mxu0
    %v2816 = vadd.f32 %v2747, %v2815
    %v2817 = vpop.f32.mrf.mxu0
    %v2818 = vpop.f32.mrf.mxu0
    %v2819 = vadd.f32 %v2747, %v2818
    %v2820 = vpop.f32.mrf.mxu0
    %2821 = vmatprep.mubr.bf16.mxu0 0
    %2822 = vmatmul.mubr.bf16.gmra.mxu0 %v2768
    %v2823 = vpop.f32.mrf.mxu0
    %v2824 = vadd.f32 %v2747, %v2823
    %v2825 = vpop.f32.mrf.mxu0
    %v2826 = vpop.f32.mrf.mxu0
    %v2827 = vadd.f32 %v2747, %v2826
    %v2828 = vpop.f32.mrf.mxu0
    %2829 = vmatprep.mubr.bf16.mxu0 0
    %2830 = vmatmul.mubr.bf16.gmra.mxu0 %v2771
    %v2831 = vpop.f32.mrf.mxu0
    %v2832 = vadd.f32 %v2747, %v2831
    %v2833 = vpop.f32.mrf.mxu0
    %v2834 = vpop.f32.mrf.mxu0
    %v2835 = vadd.f32 %v2747, %v2834
    %v2836 = vpop.f32.mrf.mxu0
    %2837 = vdwg.mxu0
    %2838 = vst [vmem:[#allocation3] sm:$0xff] %v2808
    %2839 = vst [vmem:[#allocation3 + $0x8] sm:$0xff] %v2811
    %2840 = vst [vmem:[#allocation3 + $0x10] sm:$0xff] %v2816
    %2841 = vst [vmem:[#allocation3 + $0x18] sm:$0xff] %v2819
    %2842 = vst [vmem:[#allocation3 + $0x20] sm:$0xff] %v2824
    %2843 = vst [vmem:[#allocation3 + $0x28] sm:$0xff] %v2827
    %2844 = vst [vmem:[#allocation3 + $0x30] sm:$0xff] %v2832
    %2845 = vst [vmem:[#allocation3 + $0x38] sm:$0xff] %v2835
    %v2846 = vld [vmem:[#allocation3] sm:$0xff]
    %v2847 = vpack.c.bf16 %v1934, %v1934
    %2849 = vrot.lane.b32.xlu0 %v2847, 32
    %v2850 = vpop.permute.xlu0 %2849
    %v2855 = vunpack.c.l.b16 %v2737
    %v2856 = vunpack.c.l.b16 %v2738
    %v2857 = vunpack.c.l.b16 %v2739
    %v2858 = vunpack.c.l.b16 %v2740
    %v2859 = vpack.c.b16 %v2856, %v2855
    %v2860 = vpack.c.b16 %v2858, %v2857
    %v2864 = vsel %vm132, %v2850, 0
    %2866 = vmatprep.subr.bf16.mxu0 0
    %2867 = vmatpush1.bf16.msra.mxu0 0
    %2868 = vmatprep.subr.bf16.mxu0 0
    %2869 = vmatpush1.bf16.msra.mxu0 0
    %2870 = vmatprep.subr.bf16.mxu0 0
    %2871 = vmatpush1.bf16.msra.mxu0 0
    %2872 = vmatprep.subr.bf16.mxu0 0
    %2873 = vmatpush1.bf16.msra.mxu0 0
    %2874 = vmatprep.subr.bf16.mxu0 0
    %2875 = vmatpush1.bf16.msra.mxu0 0
    %2876 = vmatprep.subr.bf16.mxu0 0
    %2877 = vmatpush1.bf16.msra.mxu0 0
    %2878 = vmatprep.subr.bf16.mxu0 0
    %2879 = vmatpush1.bf16.msra.mxu0 %v2860
    %2880 = vmatprep.subr.bf16.mxu0 0
    %2881 = vmatpush1.bf16.msra.mxu0 %v2859
    %2882 = vmatprep.subr.bf16.mxu0 0
    %2883 = vmatpush2.bf16.msra.mxu0 0
    %2884 = vmatprep.subr.bf16.mxu0 0
    %2885 = vmatpush2.bf16.msra.mxu0 0
    %2886 = vmatprep.subr.bf16.mxu0 0
    %2887 = vmatpush2.bf16.msra.mxu0 0
    %2888 = vmatprep.subr.bf16.mxu0 0
    %2889 = vmatpush2.bf16.msra.mxu0 0
    %2890 = vmatprep.subr.bf16.mxu0 0
    %2891 = vmatpush2.bf16.msra.mxu0 0
    %2892 = vmatprep.subr.bf16.mxu0 0
    %2893 = vmatpush2.bf16.msra.mxu0 0
    %2894 = vmatprep.subr.bf16.mxu0 0
    %2895 = vmatpush2.bf16.msra.mxu0 0
    %2896 = vmatprep.subr.bf16.mxu0 0
    %2897 = vmatpush2.bf16.msra.mxu0 0
    %2898 = vmatprep.mubr.bf16.mxu0 0
    %2899 = vmatmul.mubr.bf16.gmra.mxu0 %v2864
    %v2900 = vpop.f32.mrf.mxu0
    %v2901 = vadd.f32 0.0, %v2900
    %v2902 = vpop.f32.mrf.mxu0
    %v2903 = vpop.f32.mrf.mxu0
    %v2904 = vpop.f32.mrf.mxu0
    %2905 = vdwg.mxu0
    %v2906 = vadd.f32 %v2846, %v2901
    %v2907 = vtanh.pop %v2906
    %v2908 = vxor.u32 %v2906, 2147483648
    %v2909 = vmul.f32 %v2908, 1.442695
    %v2910 = vpow.pop %v2909
    %v2911 = vadd.f32 %v2910, 1.0
    %v2912 = vrcp.pop %v2911
    %v2913 = vmul.f32 1.0, %v2912
    %v2914 = vsel %vm69, %v2907, %v2913
    %v2915 = vmul.f32 %v2914, %v1928
    %2917 = vrot.lane.b32.xlu0 %v2914, 64
    %v2918 = vpop.permute.xlu0 %2917
    %v2920 = vmul.f32 %v2914, %v2918
    %2922 = vrot.lane.b32.xlu0 %v2920, 32
    %v2923 = vpop.permute.xlu0 %2922
    %v2925 = vadd.f32 %v2915, %v2923
    %v2926 = vtanh.pop %v2925
    %2928 = vrot.lane.b32.xlu0 %v2926, 64
    %v2929 = vpop.permute.xlu0 %2928
    %v2931 = vmul.f32 %v2914, %v2929
    %2933 = vrot.lane.b32.xlu0 %v2931, 32
    %v2934 = vpop.permute.xlu0 %2933
    %2936 = vst.msk [vmem:[#allocation2] sm:$0xff] %vm132, %v2934
    %v2937 = vld [vmem:[%s318] sm:$0xff]
    %v2938 = vpack.c.bf16 %v2931, %v2931
    %2940 = vrot.lane.b32.xlu0 %v2938, 32
    %v2941 = vpop.permute.xlu0 %2940
    %v2943 = vsel %vm132, %v2941, 0
    %2945 = vmatprep.subr.bf16.mxu0 0
    %2946 = vmatpush1.bf16.msra.mxu0 0
    %2947 = vmatprep.subr.bf16.mxu0 0
    %2948 = vmatpush1.bf16.msra.mxu0 0
    %2949 = vmatprep.subr.bf16.mxu0 0
    %2950 = vmatpush1.bf16.msra.mxu0 0
    %2951 = vmatprep.subr.bf16.mxu0 0
    %2952 = vmatpush1.bf16.msra.mxu0 0
    %2953 = vmatprep.subr.bf16.mxu0 0
    %2954 = vmatpush1.bf16.msra.mxu0 0
    %2955 = vmatprep.subr.bf16.mxu0 0
    %2956 = vmatpush1.bf16.msra.mxu0 0
    %2957 = vmatprep.subr.bf16.mxu0 0
    %2958 = vmatpush1.bf16.msra.mxu0 %v2860
    %2959 = vmatprep.subr.bf16.mxu0 0
    %2960 = vmatpush1.bf16.msra.mxu0 %v2859
    %2961 = vmatprep.subr.bf16.mxu0 0
    %2962 = vmatpush2.bf16.msra.mxu0 0
    %2963 = vmatprep.subr.bf16.mxu0 0
    %2964 = vmatpush2.bf16.msra.mxu0 0
    %2965 = vmatprep.subr.bf16.mxu0 0
    %2966 = vmatpush2.bf16.msra.mxu0 0
    %2967 = vmatprep.subr.bf16.mxu0 0
    %2968 = vmatpush2.bf16.msra.mxu0 0
    %2969 = vmatprep.subr.bf16.mxu0 0
    %2970 = vmatpush2.bf16.msra.mxu0 0
    %2971 = vmatprep.subr.bf16.mxu0 0
    %2972 = vmatpush2.bf16.msra.mxu0 0
    %2973 = vmatprep.subr.bf16.mxu0 0
    %2974 = vmatpush2.bf16.msra.mxu0 0
    %2975 = vmatprep.subr.bf16.mxu0 0
    %2976 = vmatpush2.bf16.msra.mxu0 0
    %2977 = vmatprep.mubr.bf16.mxu0 0
    %2978 = vmatmul.mubr.bf16.gmra.mxu0 %v2943
    %v2979 = vpop.f32.mrf.mxu0
    %v2980 = vadd.f32 0.0, %v2979
    %v2981 = vpop.f32.mrf.mxu0
    %v2982 = vpop.f32.mrf.mxu0
    %v2983 = vpop.f32.mrf.mxu0
    %2984 = vdwg.mxu0
    %v2985 = vadd.f32 %v2937, %v2980
    %v2986 = vtanh.pop %v2985
    %v2987 = vxor.u32 %v2985, 2147483648
    %v2988 = vmul.f32 %v2987, 1.442695
    %v2989 = vpow.pop %v2988
    %v2990 = vadd.f32 %v2989, 1.0
    %v2991 = vrcp.pop %v2990
    %v2992 = vmul.f32 1.0, %v2991
    %v2993 = vsel %vm69, %v2986, %v2992
    %v2994 = vmul.f32 %v2993, %v2925
    %2996 = vrot.lane.b32.xlu0 %v2993, 64
    %v2997 = vpop.permute.xlu0 %2996
    %v2999 = vmul.f32 %v2993, %v2997
    %3001 = vrot.lane.b32.xlu0 %v2999, 32
    %v3002 = vpop.permute.xlu0 %3001
    %v3004 = vadd.f32 %v2994, %v3002
    %v3005 = vtanh.pop %v3004
    %3007 = vrot.lane.b32.xlu0 %v3005, 64
    %v3008 = vpop.permute.xlu0 %3007
    %v3010 = vmul.f32 %v2993, %v3008
    %3012 = vrot.lane.b32.xlu0 %v3010, 32
    %v3013 = vpop.permute.xlu0 %3012
    %3015 = vst.msk [vmem:[%s397] sm:$0xff] %vm132, %v3013
    %v3016 = vld [vmem:[%s399] sm:$0xff]
    %v3017 = vpack.c.bf16 %v3010, %v3010
    %3019 = vrot.lane.b32.xlu0 %v3017, 32
    %v3020 = vpop.permute.xlu0 %3019
    %v3022 = vsel %vm132, %v3020, 0
    %3024 = vmatprep.subr.bf16.mxu0 0
    %3025 = vmatpush1.bf16.msra.mxu0 0
    %3026 = vmatprep.subr.bf16.mxu0 0
    %3027 = vmatpush1.bf16.msra.mxu0 0
    %3028 = vmatprep.subr.bf16.mxu0 0
    %3029 = vmatpush1.bf16.msra.mxu0 0
    %3030 = vmatprep.subr.bf16.mxu0 0
    %3031 = vmatpush1.bf16.msra.mxu0 0
    %3032 = vmatprep.subr.bf16.mxu0 0
    %3033 = vmatpush1.bf16.msra.mxu0 0
    %3034 = vmatprep.subr.bf16.mxu0 0
    %3035 = vmatpush1.bf16.msra.mxu0 0
    %3036 = vmatprep.subr.bf16.mxu0 0
    %3037 = vmatpush1.bf16.msra.mxu0 %v2860
    %3038 = vmatprep.subr.bf16.mxu0 0
    %3039 = vmatpush1.bf16.msra.mxu0 %v2859
    %3040 = vmatprep.subr.bf16.mxu0 0
    %3041 = vmatpush2.bf16.msra.mxu0 0
    %3042 = vmatprep.subr.bf16.mxu0 0
    %3043 = vmatpush2.bf16.msra.mxu0 0
    %3044 = vmatprep.subr.bf16.mxu0 0
    %3045 = vmatpush2.bf16.msra.mxu0 0
    %3046 = vmatprep.subr.bf16.mxu0 0
    %3047 = vmatpush2.bf16.msra.mxu0 0
    %3048 = vmatprep.subr.bf16.mxu0 0
    %3049 = vmatpush2.bf16.msra.mxu0 0
    %3050 = vmatprep.subr.bf16.mxu0 0
    %3051 = vmatpush2.bf16.msra.mxu0 0
    %3052 = vmatprep.subr.bf16.mxu0 0
    %3053 = vmatpush2.bf16.msra.mxu0 0
    %3054 = vmatprep.subr.bf16.mxu0 0
    %3055 = vmatpush2.bf16.msra.mxu0 0
    %3056 = vmatprep.mubr.bf16.mxu0 0
    %3057 = vmatmul.mubr.bf16.gmra.mxu0 %v3022
    %v3058 = vpop.f32.mrf.mxu0
    %v3059 = vadd.f32 0.0, %v3058
    %v3060 = vpop.f32.mrf.mxu0
    %v3061 = vpop.f32.mrf.mxu0
    %v3062 = vpop.f32.mrf.mxu0
    %3063 = vdwg.mxu0
    %v3064 = vadd.f32 %v3016, %v3059
    %v3065 = vtanh.pop %v3064
    %v3066 = vxor.u32 %v3064, 2147483648
    %v3067 = vmul.f32 %v3066, 1.442695
    %v3068 = vpow.pop %v3067
    %v3069 = vadd.f32 %v3068, 1.0
    %v3070 = vrcp.pop %v3069
    %v3071 = vmul.f32 1.0, %v3070
    %v3072 = vsel %vm69, %v3065, %v3071
    %v3073 = vmul.f32 %v3072, %v3004
    %3075 = vrot.lane.b32.xlu0 %v3072, 64
    %v3076 = vpop.permute.xlu0 %3075
    %v3078 = vmul.f32 %v3072, %v3076
    %3080 = vrot.lane.b32.xlu0 %v3078, 32
    %v3081 = vpop.permute.xlu0 %3080
    %v3083 = vadd.f32 %v3073, %v3081
    %v3084 = vtanh.pop %v3083
    %3086 = vrot.lane.b32.xlu0 %v3084, 64
    %v3087 = vpop.permute.xlu0 %3086
    %v3089 = vmul.f32 %v3072, %v3087
    %3091 = vrot.lane.b32.xlu0 %v3089, 32
    %v3092 = vpop.permute.xlu0 %3091
    %3094 = vst.msk [vmem:[%s478] sm:$0xff] %vm132, %v3092
    %v3095 = vld [vmem:[%s480] sm:$0xff]
    %v3096 = vpack.c.bf16 %v3089, %v3089
    %3098 = vrot.lane.b32.xlu0 %v3096, 32
    %v3099 = vpop.permute.xlu0 %3098
    %v3101 = vsel %vm132, %v3099, 0
    %3103 = vmatprep.subr.bf16.mxu0 0
    %3104 = vmatpush1.bf16.msra.mxu0 0
    %3105 = vmatprep.subr.bf16.mxu0 0
    %3106 = vmatpush1.bf16.msra.mxu0 0
    %3107 = vmatprep.subr.bf16.mxu0 0
    %3108 = vmatpush1.bf16.msra.mxu0 0
    %3109 = vmatprep.subr.bf16.mxu0 0
    %3110 = vmatpush1.bf16.msra.mxu0 0
    %3111 = vmatprep.subr.bf16.mxu0 0
    %3112 = vmatpush1.bf16.msra.mxu0 0
    %3113 = vmatprep.subr.bf16.mxu0 0
    %3114 = vmatpush1.bf16.msra.mxu0 0
    %3115 = vmatprep.subr.bf16.mxu0 0
    %3116 = vmatpush1.bf16.msra.mxu0 %v2860
    %3117 = vmatprep.subr.bf16.mxu0 0
    %3118 = vmatpush1.bf16.msra.mxu0 %v2859
    %3119 = vmatprep.subr.bf16.mxu0 0
    %3120 = vmatpush2.bf16.msra.mxu0 0
    %3121 = vmatprep.subr.bf16.mxu0 0
    %3122 = vmatpush2.bf16.msra.mxu0 0
    %3123 = vmatprep.subr.bf16.mxu0 0
    %3124 = vmatpush2.bf16.msra.mxu0 0
    %3125 = vmatprep.subr.bf16.mxu0 0
    %3126 = vmatpush2.bf16.msra.mxu0 0
    %3127 = vmatprep.subr.bf16.mxu0 0
    %3128 = vmatpush2.bf16.msra.mxu0 0
    %3129 = vmatprep.subr.bf16.mxu0 0
    %3130 = vmatpush2.bf16.msra.mxu0 0
    %3131 = vmatprep.subr.bf16.mxu0 0
    %3132 = vmatpush2.bf16.msra.mxu0 0
    %3133 = vmatprep.subr.bf16.mxu0 0
    %3134 = vmatpush2.bf16.msra.mxu0 0
    %3135 = vmatprep.mubr.bf16.mxu0 0
    %3136 = vmatmul.mubr.bf16.gmra.mxu0 %v3101
    %v3137 = vpop.f32.mrf.mxu0
    %v3138 = vadd.f32 0.0, %v3137
    %v3139 = vpop.f32.mrf.mxu0
    %v3140 = vpop.f32.mrf.mxu0
    %v3141 = vpop.f32.mrf.mxu0
    %3142 = vdwg.mxu0
    %v3143 = vadd.f32 %v3095, %v3138
    %v3144 = vtanh.pop %v3143
    %v3145 = vxor.u32 %v3143, 2147483648
    %v3146 = vmul.f32 %v3145, 1.442695
    %v3147 = vpow.pop %v3146
    %v3148 = vadd.f32 %v3147, 1.0
    %v3149 = vrcp.pop %v3148
    %v3150 = vmul.f32 1.0, %v3149
    %v3151 = vsel %vm69, %v3144, %v3150
    %v3152 = vmul.f32 %v3151, %v3083
    %3154 = vrot.lane.b32.xlu0 %v3151, 64
    %v3155 = vpop.permute.xlu0 %3154
    %v3157 = vmul.f32 %v3151, %v3155
    %3159 = vrot.lane.b32.xlu0 %v3157, 32
    %v3160 = vpop.permute.xlu0 %3159
    %v3162 = vadd.f32 %v3152, %v3160
    %v3163 = vtanh.pop %v3162
    %3165 = vrot.lane.b32.xlu0 %v3163, 64
    %v3166 = vpop.permute.xlu0 %3165
    %v3168 = vmul.f32 %v3151, %v3166
    %3170 = vrot.lane.b32.xlu0 %v3168, 32
    %v3171 = vpop.permute.xlu0 %3170
    %3173 = vst.msk [vmem:[%s559] sm:$0xff] %vm132, %v3171
    %v3174 = vld [vmem:[%s561] sm:$0xff]
    %v3175 = vpack.c.bf16 %v3168, %v3168
    %3177 = vrot.lane.b32.xlu0 %v3175, 32
    %v3178 = vpop.permute.xlu0 %3177
    %v3180 = vsel %vm132, %v3178, 0
    %3182 = vmatprep.subr.bf16.mxu0 0
    %3183 = vmatpush1.bf16.msra.mxu0 0
    %3184 = vmatprep.subr.bf16.mxu0 0
    %3185 = vmatpush1.bf16.msra.mxu0 0
    %3186 = vmatprep.subr.bf16.mxu0 0
    %3187 = vmatpush1.bf16.msra.mxu0 0
    %3188 = vmatprep.subr.bf16.mxu0 0
    %3189 = vmatpush1.bf16.msra.mxu0 0
    %3190 = vmatprep.subr.bf16.mxu0 0
    %3191 = vmatpush1.bf16.msra.mxu0 0
    %3192 = vmatprep.subr.bf16.mxu0 0
    %3193 = vmatpush1.bf16.msra.mxu0 0
    %3194 = vmatprep.subr.bf16.mxu0 0
    %3195 = vmatpush1.bf16.msra.mxu0 %v2860
    %3196 = vmatprep.subr.bf16.mxu0 0
    %3197 = vmatpush1.bf16.msra.mxu0 %v2859
    %3198 = vmatprep.subr.bf16.mxu0 0
    %3199 = vmatpush2.bf16.msra.mxu0 0
    %3200 = vmatprep.subr.bf16.mxu0 0
    %3201 = vmatpush2.bf16.msra.mxu0 0
    %3202 = vmatprep.subr.bf16.mxu0 0
    %3203 = vmatpush2.bf16.msra.mxu0 0
    %3204 = vmatprep.subr.bf16.mxu0 0
    %3205 = vmatpush2.bf16.msra.mxu0 0
    %3206 = vmatprep.subr.bf16.mxu0 0
    %3207 = vmatpush2.bf16.msra.mxu0 0
    %3208 = vmatprep.subr.bf16.mxu0 0
    %3209 = vmatpush2.bf16.msra.mxu0 0
    %3210 = vmatprep.subr.bf16.mxu0 0
    %3211 = vmatpush2.bf16.msra.mxu0 0
    %3212 = vmatprep.subr.bf16.mxu0 0
    %3213 = vmatpush2.bf16.msra.mxu0 0
    %3214 = vmatprep.mubr.bf16.mxu0 0
    %3215 = vmatmul.mubr.bf16.gmra.mxu0 %v3180
    %v3216 = vpop.f32.mrf.mxu0
    %v3217 = vadd.f32 0.0, %v3216
    %v3218 = vpop.f32.mrf.mxu0
    %v3219 = vpop.f32.mrf.mxu0
    %v3220 = vpop.f32.mrf.mxu0
    %3221 = vdwg.mxu0
    %v3222 = vadd.f32 %v3174, %v3217
    %v3223 = vtanh.pop %v3222
    %v3224 = vxor.u32 %v3222, 2147483648
    %v3225 = vmul.f32 %v3224, 1.442695
    %v3226 = vpow.pop %v3225
    %v3227 = vadd.f32 %v3226, 1.0
    %v3228 = vrcp.pop %v3227
    %v3229 = vmul.f32 1.0, %v3228
    %v3230 = vsel %vm69, %v3223, %v3229
    %v3231 = vmul.f32 %v3230, %v3162
    %3233 = vrot.lane.b32.xlu0 %v3230, 64
    %v3234 = vpop.permute.xlu0 %3233
    %v3236 = vmul.f32 %v3230, %v3234
    %3238 = vrot.lane.b32.xlu0 %v3236, 32
    %v3239 = vpop.permute.xlu0 %3238
    %v3241 = vadd.f32 %v3231, %v3239
    %v3242 = vtanh.pop %v3241
    %3244 = vrot.lane.b32.xlu0 %v3242, 64
    %v3245 = vpop.permute.xlu0 %3244
    %v3247 = vmul.f32 %v3230, %v3245
    %3249 = vrot.lane.b32.xlu0 %v3247, 32
    %v3250 = vpop.permute.xlu0 %3249
    %3252 = vst.msk [vmem:[%s640] sm:$0xff] %vm132, %v3250
    %v3253 = vld [vmem:[%s642] sm:$0xff]
    %v3254 = vpack.c.bf16 %v3247, %v3247
    %3256 = vrot.lane.b32.xlu0 %v3254, 32
    %v3257 = vpop.permute.xlu0 %3256
    %v3259 = vsel %vm132, %v3257, 0
    %3261 = vmatprep.subr.bf16.mxu0 0
    %3262 = vmatpush1.bf16.msra.mxu0 0
    %3263 = vmatprep.subr.bf16.mxu0 0
    %3264 = vmatpush1.bf16.msra.mxu0 0
    %3265 = vmatprep.subr.bf16.mxu0 0
    %3266 = vmatpush1.bf16.msra.mxu0 0
    %3267 = vmatprep.subr.bf16.mxu0 0
    %3268 = vmatpush1.bf16.msra.mxu0 0
    %3269 = vmatprep.subr.bf16.mxu0 0
    %3270 = vmatpush1.bf16.msra.mxu0 0
    %3271 = vmatprep.subr.bf16.mxu0 0
    %3272 = vmatpush1.bf16.msra.mxu0 0
    %3273 = vmatprep.subr.bf16.mxu0 0
    %3274 = vmatpush1.bf16.msra.mxu0 %v2860
    %3275 = vmatprep.subr.bf16.mxu0 0
    %3276 = vmatpush1.bf16.msra.mxu0 %v2859
    %3277 = vmatprep.subr.bf16.mxu0 0
    %3278 = vmatpush2.bf16.msra.mxu0 0
    %3279 = vmatprep.subr.bf16.mxu0 0
    %3280 = vmatpush2.bf16.msra.mxu0 0
    %3281 = vmatprep.subr.bf16.mxu0 0
    %3282 = vmatpush2.bf16.msra.mxu0 0
    %3283 = vmatprep.subr.bf16.mxu0 0
    %3284 = vmatpush2.bf16.msra.mxu0 0
    %3285 = vmatprep.subr.bf16.mxu0 0
    %3286 = vmatpush2.bf16.msra.mxu0 0
    %3287 = vmatprep.subr.bf16.mxu0 0
    %3288 = vmatpush2.bf16.msra.mxu0 0
    %3289 = vmatprep.subr.bf16.mxu0 0
    %3290 = vmatpush2.bf16.msra.mxu0 0
    %3291 = vmatprep.subr.bf16.mxu0 0
    %3292 = vmatpush2.bf16.msra.mxu0 0
    %3293 = vmatprep.mubr.bf16.mxu0 0
    %3294 = vmatmul.mubr.bf16.gmra.mxu0 %v3259
    %v3295 = vpop.f32.mrf.mxu0
    %v3296 = vadd.f32 0.0, %v3295
    %v3297 = vpop.f32.mrf.mxu0
    %v3298 = vpop.f32.mrf.mxu0
    %v3299 = vpop.f32.mrf.mxu0
    %3300 = vdwg.mxu0
    %v3301 = vadd.f32 %v3253, %v3296
    %v3302 = vtanh.pop %v3301
    %v3303 = vxor.u32 %v3301, 2147483648
    %v3304 = vmul.f32 %v3303, 1.442695
    %v3305 = vpow.pop %v3304
    %v3306 = vadd.f32 %v3305, 1.0
    %v3307 = vrcp.pop %v3306
    %v3308 = vmul.f32 1.0, %v3307
    %v3309 = vsel %vm69, %v3302, %v3308
    %v3310 = vmul.f32 %v3309, %v3241
    %3312 = vrot.lane.b32.xlu0 %v3309, 64
    %v3313 = vpop.permute.xlu0 %3312
    %v3315 = vmul.f32 %v3309, %v3313
    %3317 = vrot.lane.b32.xlu0 %v3315, 32
    %v3318 = vpop.permute.xlu0 %3317
    %v3320 = vadd.f32 %v3310, %v3318
    %v3321 = vtanh.pop %v3320
    %3323 = vrot.lane.b32.xlu0 %v3321, 64
    %v3324 = vpop.permute.xlu0 %3323
    %v3326 = vmul.f32 %v3309, %v3324
    %3328 = vrot.lane.b32.xlu0 %v3326, 32
    %v3329 = vpop.permute.xlu0 %3328
    %3331 = vst.msk [vmem:[%s721] sm:$0xff] %vm132, %v3329
    %v3332 = vld [vmem:[%s723] sm:$0xff]
    %v3333 = vpack.c.bf16 %v3326, %v3326
    %3335 = vrot.lane.b32.xlu0 %v3333, 32
    %v3336 = vpop.permute.xlu0 %3335
    %v3338 = vsel %vm132, %v3336, 0
    %3340 = vmatprep.subr.bf16.mxu0 0
    %3341 = vmatpush1.bf16.msra.mxu0 0
    %3342 = vmatprep.subr.bf16.mxu0 0
    %3343 = vmatpush1.bf16.msra.mxu0 0
    %3344 = vmatprep.subr.bf16.mxu0 0
    %3345 = vmatpush1.bf16.msra.mxu0 0
    %3346 = vmatprep.subr.bf16.mxu0 0
    %3347 = vmatpush1.bf16.msra.mxu0 0
    %3348 = vmatprep.subr.bf16.mxu0 0
    %3349 = vmatpush1.bf16.msra.mxu0 0
    %3350 = vmatprep.subr.bf16.mxu0 0
    %3351 = vmatpush1.bf16.msra.mxu0 0
    %3352 = vmatprep.subr.bf16.mxu0 0
    %3353 = vmatpush1.bf16.msra.mxu0 %v2860
    %3354 = vmatprep.subr.bf16.mxu0 0
    %3355 = vmatpush1.bf16.msra.mxu0 %v2859
    %3356 = vmatprep.subr.bf16.mxu0 0
    %3357 = vmatpush2.bf16.msra.mxu0 0
    %3358 = vmatprep.subr.bf16.mxu0 0
    %3359 = vmatpush2.bf16.msra.mxu0 0
    %3360 = vmatprep.subr.bf16.mxu0 0
    %3361 = vmatpush2.bf16.msra.mxu0 0
    %3362 = vmatprep.subr.bf16.mxu0 0
    %3363 = vmatpush2.bf16.msra.mxu0 0
    %3364 = vmatprep.subr.bf16.mxu0 0
    %3365 = vmatpush2.bf16.msra.mxu0 0
    %3366 = vmatprep.subr.bf16.mxu0 0
    %3367 = vmatpush2.bf16.msra.mxu0 0
    %3368 = vmatprep.subr.bf16.mxu0 0
    %3369 = vmatpush2.bf16.msra.mxu0 0
    %3370 = vmatprep.subr.bf16.mxu0 0
    %3371 = vmatpush2.bf16.msra.mxu0 0
    %3372 = vmatprep.mubr.bf16.mxu0 0
    %3373 = vmatmul.mubr.bf16.gmra.mxu0 %v3338
    %v3374 = vpop.f32.mrf.mxu0
    %v3375 = vadd.f32 0.0, %v3374
    %v3376 = vpop.f32.mrf.mxu0
    %v3377 = vpop.f32.mrf.mxu0
    %v3378 = vpop.f32.mrf.mxu0
    %3379 = vdwg.mxu0
    %v3380 = vadd.f32 %v3332, %v3375
    %v3381 = vtanh.pop %v3380
    %v3382 = vxor.u32 %v3380, 2147483648
    %v3383 = vmul.f32 %v3382, 1.442695
    %v3384 = vpow.pop %v3383
    %v3385 = vadd.f32 %v3384, 1.0
    %v3386 = vrcp.pop %v3385
    %v3387 = vmul.f32 1.0, %v3386
    %v3388 = vsel %vm69, %v3381, %v3387
    %v3389 = vmul.f32 %v3388, %v3320
    %3391 = vrot.lane.b32.xlu0 %v3388, 64
    %v3392 = vpop.permute.xlu0 %3391
    %v3394 = vmul.f32 %v3388, %v3392
    %3396 = vrot.lane.b32.xlu0 %v3394, 32
    %v3397 = vpop.permute.xlu0 %3396
    %v3399 = vadd.f32 %v3389, %v3397
    %v3400 = vtanh.pop %v3399
    %3402 = vrot.lane.b32.xlu0 %v3400, 64
    %v3403 = vpop.permute.xlu0 %3402
    %v3405 = vmul.f32 %v3388, %v3403
    %3407 = vrot.lane.b32.xlu0 %v3405, 32
    %v3408 = vpop.permute.xlu0 %3407
    %3410 = vst.msk [vmem:[%s802] sm:$0xff] %vm132, %v3408
    %v3411 = vld [vmem:[%s804] sm:$0xff]
    %v3412 = vpack.c.bf16 %v3405, %v3405
    %3414 = vrot.lane.b32.xlu0 %v3412, 32
    %v3415 = vpop.permute.xlu0 %3414
    %v3417 = vsel %vm132, %v3415, 0
    %3419 = vmatprep.subr.bf16.mxu0 0
    %3420 = vmatpush1.bf16.msra.mxu0 0
    %3421 = vmatprep.subr.bf16.mxu0 0
    %3422 = vmatpush1.bf16.msra.mxu0 0
    %3423 = vmatprep.subr.bf16.mxu0 0
    %3424 = vmatpush1.bf16.msra.mxu0 0
    %3425 = vmatprep.subr.bf16.mxu0 0
    %3426 = vmatpush1.bf16.msra.mxu0 0
    %3427 = vmatprep.subr.bf16.mxu0 0
    %3428 = vmatpush1.bf16.msra.mxu0 0
    %3429 = vmatprep.subr.bf16.mxu0 0
    %3430 = vmatpush1.bf16.msra.mxu0 0
    %3431 = vmatprep.subr.bf16.mxu0 0
    %3432 = vmatpush1.bf16.msra.mxu0 %v2860
    %3433 = vmatprep.subr.bf16.mxu0 0
    %3434 = vmatpush1.bf16.msra.mxu0 %v2859
    %3435 = vmatprep.subr.bf16.mxu0 0
    %3436 = vmatpush2.bf16.msra.mxu0 0
    %3437 = vmatprep.subr.bf16.mxu0 0
    %3438 = vmatpush2.bf16.msra.mxu0 0
    %3439 = vmatprep.subr.bf16.mxu0 0
    %3440 = vmatpush2.bf16.msra.mxu0 0
    %3441 = vmatprep.subr.bf16.mxu0 0
    %3442 = vmatpush2.bf16.msra.mxu0 0
    %3443 = vmatprep.subr.bf16.mxu0 0
    %3444 = vmatpush2.bf16.msra.mxu0 0
    %3445 = vmatprep.subr.bf16.mxu0 0
    %3446 = vmatpush2.bf16.msra.mxu0 0
    %3447 = vmatprep.subr.bf16.mxu0 0
    %3448 = vmatpush2.bf16.msra.mxu0 0
    %3449 = vmatprep.subr.bf16.mxu0 0
    %3450 = vmatpush2.bf16.msra.mxu0 0
    %3451 = vmatprep.mubr.bf16.mxu0 0
    %3452 = vmatmul.mubr.bf16.gmra.mxu0 %v3417
    %v3453 = vpop.f32.mrf.mxu0
    %v3454 = vadd.f32 0.0, %v3453
    %v3455 = vpop.f32.mrf.mxu0
    %v3456 = vpop.f32.mrf.mxu0
    %v3457 = vpop.f32.mrf.mxu0
    %3458 = vdwg.mxu0
    %v3459 = vadd.f32 %v3411, %v3454
    %v3460 = vtanh.pop %v3459
    %v3461 = vxor.u32 %v3459, 2147483648
    %v3462 = vmul.f32 %v3461, 1.442695
    %v3463 = vpow.pop %v3462
    %v3464 = vadd.f32 %v3463, 1.0
    %v3465 = vrcp.pop %v3464
    %v3466 = vmul.f32 1.0, %v3465
    %v3467 = vsel %vm69, %v3460, %v3466
    %v3468 = vmul.f32 %v3467, %v3399
    %3470 = vrot.lane.b32.xlu0 %v3467, 64
    %v3471 = vpop.permute.xlu0 %3470
    %v3473 = vmul.f32 %v3467, %v3471
    %3475 = vrot.lane.b32.xlu0 %v3473, 32
    %v3476 = vpop.permute.xlu0 %3475
    %v3478 = vadd.f32 %v3468, %v3476
    %v3479 = vtanh.pop %v3478
    %3481 = vrot.lane.b32.xlu0 %v3479, 64
    %v3482 = vpop.permute.xlu0 %3481
    %v3484 = vmul.f32 %v3467, %v3482
    %3486 = vrot.lane.b32.xlu0 %v3484, 32
    %v3487 = vpop.permute.xlu0 %3486
    %3489 = vst.msk [vmem:[%s883] sm:$0xff] %vm132, %v3487
    %v3490 = vld [vmem:[#allocation2] sm:$0xff]
    %v3491 = vld [vmem:[#allocation2 + $0x8] sm:$0xff]
    %v3492 = vld [vmem:[#allocation2 + $0x10] sm:$0xff]
    %v3493 = vld [vmem:[#allocation2 + $0x18] sm:$0xff]
    %v3494 = vld [vmem:[#allocation2 + $0x20] sm:$0xff]
    %v3495 = vld [vmem:[#allocation2 + $0x28] sm:$0xff]
    %v3496 = vld [vmem:[#allocation2 + $0x30] sm:$0xff]
    %v3497 = vld [vmem:[#allocation2 + $0x38] sm:$0xff]
    %v3498 = vpack.c.bf16 %v3491, %v3490
    %v3499 = vpack.c.bf16 %v3493, %v3492
    %v3500 = vpack.c.bf16 %v3495, %v3494
    %v3501 = vpack.c.bf16 %v3497, %v3496
    %v3502 = vld [vmem:[%s8] sm:$0xf]
    %v3503 = vld [vmem:[%s8 + $0x4] sm:$0xf]
    %v3504 = vld [vmem:[%s8 + $0x8] sm:$0xf]
    %v3505 = vld [vmem:[%s8 + $0xc] sm:$0xf]
    %v3506 = vld [vmem:[%s9] sm:$0x1]
    %v3508 = vlaneseq
    %v3509 = vshrl.u32 %v3508, 7
    %v3510 = vsub.s32 0, %v3509
    %v3511 = vrot.slane %v3506, %v3510
    %v3517 = vunpack.c.l.b16 %v3502
    %v3518 = vunpack.c.l.b16 %v3503
    %v3519 = vunpack.c.l.b16 %v3504
    %v3520 = vunpack.c.l.b16 %v3505
    %v3521 = vpack.c.b16 %v3518, %v3517
    %v3522 = vpack.c.b16 %v3520, %v3519
    %v3526 = vsel %vm132, %v3498, 0
    %v3529 = vsel %vm132, %v3499, 0
    %v3532 = vsel %vm132, %v3500, 0
    %v3535 = vsel %vm132, %v3501, 0
    %3537 = vmatprep.subr.bf16.mxu0 0
    %3538 = vmatpush1.bf16.msra.mxu0 0
    %3539 = vmatprep.subr.bf16.mxu0 0
    %3540 = vmatpush1.bf16.msra.mxu0 0
    %3541 = vmatprep.subr.bf16.mxu0 0
    %3542 = vmatpush1.bf16.msra.mxu0 0
    %3543 = vmatprep.subr.bf16.mxu0 0
    %3544 = vmatpush1.bf16.msra.mxu0 0
    %3545 = vmatprep.subr.bf16.mxu0 0
    %3546 = vmatpush1.bf16.msra.mxu0 0
    %3547 = vmatprep.subr.bf16.mxu0 0
    %3548 = vmatpush1.bf16.msra.mxu0 0
    %3549 = vmatprep.subr.bf16.mxu0 0
    %3550 = vmatpush1.bf16.msra.mxu0 %v3522
    %3551 = vmatprep.subr.bf16.mxu0 0
    %3552 = vmatpush1.bf16.msra.mxu0 %v3521
    %3553 = vmatprep.subr.bf16.mxu0 0
    %3554 = vmatpush2.bf16.msra.mxu0 0
    %3555 = vmatprep.subr.bf16.mxu0 0
    %3556 = vmatpush2.bf16.msra.mxu0 0
    %3557 = vmatprep.subr.bf16.mxu0 0
    %3558 = vmatpush2.bf16.msra.mxu0 0
    %3559 = vmatprep.subr.bf16.mxu0 0
    %3560 = vmatpush2.bf16.msra.mxu0 0
    %3561 = vmatprep.subr.bf16.mxu0 0
    %3562 = vmatpush2.bf16.msra.mxu0 0
    %3563 = vmatprep.subr.bf16.mxu0 0
    %3564 = vmatpush2.bf16.msra.mxu0 0
    %3565 = vmatprep.subr.bf16.mxu0 0
    %3566 = vmatpush2.bf16.msra.mxu0 0
    %3567 = vmatprep.subr.bf16.mxu0 0
    %3568 = vmatpush2.bf16.msra.mxu0 0
    %3569 = vmatprep.mubr.bf16.mxu0 0
    %3570 = vmatmul.mubr.bf16.gmra.mxu0 %v3526
    %v3571 = vpop.f32.mrf.mxu0
    %v3572 = vadd.f32 %v3511, %v3571
    %v3573 = vpop.f32.mrf.mxu0
    %v3574 = vpop.f32.mrf.mxu0
    %v3575 = vadd.f32 %v3511, %v3574
    %v3576 = vpop.f32.mrf.mxu0
    %3577 = vmatprep.mubr.bf16.mxu0 0
    %3578 = vmatmul.mubr.bf16.gmra.mxu0 %v3529
    %v3579 = vpop.f32.mrf.mxu0
    %v3580 = vadd.f32 %v3511, %v3579
    %v3581 = vpop.f32.mrf.mxu0
    %v3582 = vpop.f32.mrf.mxu0
    %v3583 = vadd.f32 %v3511, %v3582
    %v3584 = vpop.f32.mrf.mxu0
    %3585 = vmatprep.mubr.bf16.mxu0 0
    %3586 = vmatmul.mubr.bf16.gmra.mxu0 %v3532
    %v3587 = vpop.f32.mrf.mxu0
    %v3588 = vadd.f32 %v3511, %v3587
    %v3589 = vpop.f32.mrf.mxu0
    %v3590 = vpop.f32.mrf.mxu0
    %v3591 = vadd.f32 %v3511, %v3590
    %v3592 = vpop.f32.mrf.mxu0
    %3593 = vmatprep.mubr.bf16.mxu0 0
    %3594 = vmatmul.mubr.bf16.gmra.mxu0 %v3535
    %v3595 = vpop.f32.mrf.mxu0
    %v3596 = vadd.f32 %v3511, %v3595
    %v3597 = vpop.f32.mrf.mxu0
    %v3598 = vpop.f32.mrf.mxu0
    %v3599 = vadd.f32 %v3511, %v3598
    %v3600 = vpop.f32.mrf.mxu0
    %3601 = vdwg.mxu0
    %3602 = vst [vmem:[#allocation9] sm:$0xff] %v3572
    %3603 = vst [vmem:[#allocation9 + $0x8] sm:$0xff] %v3575
    %3604 = vst [vmem:[#allocation9 + $0x10] sm:$0xff] %v3580
    %3605 = vst [vmem:[#allocation9 + $0x18] sm:$0xff] %v3583
    %3606 = vst [vmem:[#allocation9 + $0x20] sm:$0xff] %v3588
    %3607 = vst [vmem:[#allocation9 + $0x28] sm:$0xff] %v3591
    %3608 = vst [vmem:[#allocation9 + $0x30] sm:$0xff] %v3596
    %3609 = vst [vmem:[#allocation9 + $0x38] sm:$0xff] %v3599
    // Predicated region
    $region50: #{_seq2seq_pallas.1} parent=1 // pred_check
      _
    $region51: #{_seq2seq_pallas.1} parent=1 // pred_check_branch
      %3611 = sbr.rel (0) target = $region53
    $region52: #{_seq2seq_pallas.1} parent=1 // pred_region
      %s3613 = ssub.s32 1024, 1024
      %3614 = vsyncadd [#allocation6], %s3613
      %s3615 = sshll.u32 [#allocation9], 4
      %s3616 = int_to_ptr.vmem [resolvable:$true] %s3615
      %3621 = dma.vmem_to_hbm [thread:$0]  %s3616, 1024, %s10, [#allocation6], 128, 128, 8
    $region53: #{_seq2seq_pallas.1} parent=1 // pred_fallthru
      _
    // Predicated region
    $region54: #{_seq2seq_pallas.1} parent=1 // pred_check
      _
    $region55: #{_seq2seq_pallas.1} parent=1 // pred_check_branch
      %3623 = sbr.rel (0) target = $region57
    $region56: #{_seq2seq_pallas.1} parent=1 // pred_region
      %3624 = dma.done [#allocation6], 1024
    $region57: #{_seq2seq_pallas.1} parent=1 // pred_fallthru
      _
    %3625 = vsyncpa [#allocation5], 1
    %3626 = vsyncpa [#allocation8], 1
    %3627 = vsyncpa [#allocation6], 1

</llo_original>
